<compile_context>
chip_gen: v5e
topology: v5e:2x2
jax: 0.10.0
libtpu: 0.0.40
codegen_flags: <defaults>
</compile_context>

<pallas_src>
import jax
import jax.numpy as jnp
from jax.experimental import pallas as pl
from jax.experimental.pallas import tpu as pltpu

_BN_EPS = 1e-5
_LANE = 128


# ----------------------------- small helpers -----------------------------

def _round_up(n, m):
    return ((n + m - 1) // m) * m


def _vmem_limit_bytes():
    # Per-generation scoped-VMEM budget (v5e/v6e: 128 MiB, v7x: 64 MiB physical).
    try:
        return int(pltpu.get_tpu_info().vmem_capacity_bytes * 3 // 4)
    except Exception:
        return 48 * 1024 * 1024


def _compiler_params():
    return pltpu.CompilerParams(dimension_semantics=("parallel",),
                                vmem_limit_bytes=_vmem_limit_bytes())


# ----------------------------- kernel bodies -----------------------------

def _make_conv_stats_kernel(tap_offsets, m_win):
    """Conv as shifted-window matmuls (bf16 in, f32 accumulate) fused with
    per-channel BatchNorm partial statistics (masked sum, sum of squares)."""

    def kernel(x_ref, w_ref, mask_ref, y_ref, sum_ref, sq_ref, acc_ref):
        for t, off in enumerate(tap_offsets):
            lhs = x_ref[0, off:off + m_win, :]
            contrib = jnp.dot(lhs, w_ref[t], preferred_element_type=jnp.float32)
            if t == 0:
                acc_ref[...] = contrib
            else:
                acc_ref[...] += contrib
        acc = acc_ref[...]
        y_ref[0] = acc.astype(y_ref.dtype)
        msk = mask_ref[...]                      # (m_win, 1): 1.0 real / 0.0 throwaway col
        sum_ref[0] = jnp.sum(acc * msk, axis=0, keepdims=True)
        sq_ref[0] = jnp.sum(acc * acc * msk, axis=0, keepdims=True)

    return kernel


def _make_epilogue_kernel(m_win, id_offset):
    """Folded BN on the residual branch + (optionally folded-BN) shortcut add
    + ReLU; bf16 output.  For the identity shortcut, the shortcut block is
    conv1's padded plane tensor and we slice the interior window in-kernel."""

    def kernel(y_ref, s_ref, ysc_ref, ysh_ref, ssc_ref, ssh_ref, o_ref):
        y = y_ref[0].astype(jnp.float32)
        if id_offset is None:
            s = s_ref[0].astype(jnp.float32)
        else:
            s = s_ref[0, id_offset:id_offset + m_win, :].astype(jnp.float32)
        res = y * ysc_ref[...] + ysh_ref[...] + s * ssc_ref[...] + ssh_ref[...]
        o_ref[0] = jnp.maximum(res, 0.0).astype(o_ref.dtype)

    return kernel


# ----------------------------- pallas wrappers -----------------------------

def _conv_stats(x_planes, w, mask, tap_offsets, m_win):
    """x_planes: (N, P*Lp, Cin_pad) bf16 flattened padded planes.
    w: (T, Cin_pad, Cout_pad) bf16.  Returns (y bf16 (N, m_win, Cout_pad),
    per-image BN sums, per-image BN sum-of-squares)."""
    n, plane_len, cin_p = x_planes.shape
    t, _, cout_p = w.shape
    flops = 2 * n * t * m_win * cin_p * cout_p
    bytes_accessed = int(x_planes.size * 2 + w.size * 2 + n * m_win * cout_p * 2)
    return pl.pallas_call(
        _make_conv_stats_kernel(tuple(tap_offsets), m_win),
        out_shape=(
            jax.ShapeDtypeStruct((n, m_win, cout_p), jnp.bfloat16),
            jax.ShapeDtypeStruct((n, 1, cout_p), jnp.float32),
            jax.ShapeDtypeStruct((n, 1, cout_p), jnp.float32),
        ),
        grid=(n,),
        in_specs=[
            pl.BlockSpec((1, plane_len, cin_p), lambda b: (b, 0, 0)),
            pl.BlockSpec((t, cin_p, cout_p), lambda b: (0, 0, 0)),   # VMEM-resident
            pl.BlockSpec((m_win, 1), lambda b: (0, 0)),              # VMEM-resident
        ],
        out_specs=(
            pl.BlockSpec((1, m_win, cout_p), lambda b: (b, 0, 0)),
            pl.BlockSpec((1, 1, cout_p), lambda b: (b, 0, 0)),
            pl.BlockSpec((1, 1, cout_p), lambda b: (b, 0, 0)),
        ),
        scratch_shapes=[pltpu.VMEM((m_win, cout_p), jnp.float32)],
        compiler_params=_compiler_params(),
        cost_estimate=pl.CostEstimate(flops=flops, transcendentals=0,
                                      bytes_accessed=bytes_accessed),
    )(x_planes, w, mask)


def _bn_add_relu(y2, shortcut, scale2, shift2, sscale, sshift, id_offset=None):
    """Fused BN2 + shortcut(-BN) + add + ReLU, bf16 output."""
    n, m_win, c_pad = y2.shape
    sc_len = shortcut.shape[1]
    bytes_accessed = int(y2.size * 2 + shortcut.size * 2 + n * m_win * c_pad * 2)
    return pl.pallas_call(
        _make_epilogue_kernel(m_win, id_offset),
        out_shape=jax.ShapeDtypeStruct((n, m_win, c_pad), jnp.bfloat16),
        grid=(n,),
        in_specs=[
            pl.BlockSpec((1, m_win, c_pad), lambda b: (b, 0, 0)),
            pl.BlockSpec((1, sc_len, c_pad), lambda b: (b, 0, 0)),
            pl.BlockSpec((1, c_pad), lambda b: (0, 0)),
            pl.BlockSpec((1, c_pad), lambda b: (0, 0)),
            pl.BlockSpec((1, c_pad), lambda b: (0, 0)),
            pl.BlockSpec((1, c_pad), lambda b: (0, 0)),
        ],
        out_specs=pl.BlockSpec((1, m_win, c_pad), lambda b: (b, 0, 0)),
        compiler_params=_compiler_params(),
        cost_estimate=pl.CostEstimate(flops=6 * n * m_win * c_pad, transcendentals=0,
                                      bytes_accessed=bytes_accessed),
    )(y2, shortcut, scale2, shift2, sscale, sshift)


# ----------------------------- glue (plain JAX; tiny or fused data movement) -

def _bn_fold(sums, sqsums, m_real, gamma, beta, c_pad):
    """Global training-mode BN stats (sufficient statistics, var clamped >= 0)
    folded with gamma/beta into a single per-channel scale/shift.  O(C)."""
    s = jnp.sum(sums, axis=(0, 1))
    q = jnp.sum(sqsums, axis=(0, 1))
    mean = s / float(m_real)
    var = jnp.maximum(q / float(m_real) - mean * mean, 0.0)
    inv = jax.lax.rsqrt(var + _BN_EPS)
    g = jnp.pad(gamma, (0, c_pad - gamma.shape[0]), constant_values=1.0)
    b = jnp.pad(beta, (0, c_pad - beta.shape[0]))
    scale = g * inv
    shift = b - mean * scale
    return scale.reshape(1, c_pad), shift.reshape(1, c_pad)


def _col_mask(m_win, pw, wo):
    cols = jnp.arange(m_win, dtype=jnp.int32) % pw
    return (cols < wo).astype(jnp.float32).reshape(m_win, 1)


def _pad_weight(w, cin_pad, cout_pad):
    t, cin, cout = w.shape
    return jnp.pad(w, ((0, 0), (0, cin_pad - cin),
                       (0, cout_pad - cout))).astype(jnp.bfloat16)


def _build_3x3_planes(x_nhwc, stride):
    """Spatially pad (+ phase-decompose when stride>1) and flatten so every
    3x3 tap is a contiguous row window at a constant flat offset.
    Returns (planes (N, P*Lp, C), tap offsets, row pitch pw, m_win, ho, wo)."""
    n, h, w, cp = x_nhwc.shape
    ho = (h - 1) // stride + 1
    wo = (w - 1) // stride + 1
    pw = wo + 2 // stride                  # output row pitch (incl. throwaway cols)
    m_win = ho * pw
    xpad = jnp.pad(x_nhwc, ((0, 0), (1, 1), (1, 1), (0, 0)))
    if stride == 1:
        plane_list = [xpad.reshape(n, (h + 2) * (w + 2), cp)]
        raw = [(0, kh * pw + kw) for kh in range(3) for kw in range(3)]
    else:
        s = stride
        ph = ho + 2 // s
        plane_list = []
        for a in range(s):
            for b in range(s):
                p = xpad[:, a::s, b::s, :][:, :ph, :pw, :]
                p = jnp.pad(p, ((0, 0), (0, ph - p.shape[1]),
                                (0, pw - p.shape[2]), (0, 0)))
                plane_list.append(p.reshape(n, ph * pw, cp))
        raw = [((kh % s) * s + (kw % s), (kh // s) * pw + (kw // s))
               for kh in range(3) for kw in range(3)]
    l_need = max(off for _, off in raw) + m_win
    lp = max([l_need] + [p.shape[1] for p in plane_list])
    plane_list = [jnp.pad(p, ((0, 0), (0, lp - p.shape[1]), (0, 0)))
                  for p in plane_list]
    planes = plane_list[0] if len(plane_list) == 1 else jnp.concatenate(plane_list, axis=1)
    taps = [pi * lp + off for pi, off in raw]
    return planes, taps, pw, m_win, ho, wo


def _build_1x1_planes(x_nhwc, stride, pw_out):
    """Strided-subsampled x laid out with the same row pitch as the residual
    branch output so the epilogue add is elementwise-aligned."""
    n = x_nhwc.shape[0]
    cp = x_nhwc.shape[3]
    xs = x_nhwc[:, ::stride, ::stride, :]
    ho, wo = xs.shape[1], xs.shape[2]
    xs = jnp.pad(xs, ((0, 0), (0, 0), (0, pw_out - wo), (0, 0)))
    m_win = ho * pw_out
    return xs.reshape(n, m_win, cp), [0], m_win, wo


def init_params(key, in_channels, out_channels, stride):
    """Deterministic synthetic parameters matching the PyTorch module shapes."""
    ks = jax.random.split(key, 9)
    w1 = 0.1 * jax.random.normal(ks[0], (out_channels, in_channels, 3, 3), jnp.float32)
    w2 = 0.1 * jax.random.normal(ks[1], (out_channels, out_channels, 3, 3), jnp.float32)
    proj = (stride != 1) or (in_channels != out_channels)
    params = {
        "proj": proj,
        "cout": out_channels,
        # (Cout,Cin,kh,kw) -> (kh,kw,Cin,Cout) -> (9,Cin,Cout); tap t = kh*3+kw
        "w1": jnp.transpose(w1, (2, 3, 1, 0)).reshape(9, in_channels, out_channels),
        "w2": jnp.transpose(w2, (2, 3, 1, 0)).reshape(9, out_channels, out_channels),
        "g1": 1.0 + 0.1 * jax.random.normal(ks[2], (out_channels,), jnp.float32),
        "b1": 0.1 * jax.random.normal(ks[3], (out_channels,), jnp.float32),
        "g2": 1.0 + 0.1 * jax.random.normal(ks[4], (out_channels,), jnp.float32),
        "b2": 0.1 * jax.random.normal(ks[5], (out_channels,), jnp.float32),
    }
    if proj:
        wsc = 0.1 * jax.random.normal(ks[6], (out_channels, in_channels, 1, 1), jnp.float32)
        params["wsc"] = jnp.transpose(wsc, (2, 3, 1, 0)).reshape(1, in_channels, out_channels)
        params["gsc"] = 1.0 + 0.1 * jax.random.normal(ks[7], (out_channels,), jnp.float32)
        params["bsc"] = 0.1 * jax.random.normal(ks[8], (out_channels,), jnp.float32)
    return params


def basic_block_forward(x_nchw, params, stride):
    """BasicBlock forward (training-mode BatchNorm).  NCHW in/out."""
    # TODO(synk): nn.BatchNorm2d running_mean/running_var buffers are not
    # produced/updated here (forward-only batch statistics).
    n, cin, h, w = x_nchw.shape
    cout = params["cout"]
    cin_pad = _round_up(cin, _LANE)
    c_pad = _round_up(cout, _LANE)

    # NCHW -> NHWC, bf16, channel-padded (one fused XLA pass over x).
    x_nhwc = jnp.pad(jnp.transpose(x_nchw, (0, 2, 3, 1)).astype(jnp.bfloat16),
                     ((0, 0), (0, 0), (0, 0), (0, cin_pad - cin)))

    # ---- conv1 (3x3, stride) + BN1 statistics --------------------------------
    planes1, taps1, pw1, mwin1, ho, wo = _build_3x3_planes(x_nhwc, stride)
    mask1 = _col_mask(mwin1, pw1, wo)
    w1p = _pad_weight(params["w1"], cin_pad, c_pad)
    y1, s1, q1 = _conv_stats(planes1, w1p, mask1, taps1, mwin1)
    m_real = n * ho * wo
    scale1, shift1 = _bn_fold(s1, q1, m_real, params["g1"], params["b1"], c_pad)

    # ---- BN1-apply + ReLU + re-pad for conv2: plain jnp, one fused XLA pass --
    y1t = y1.reshape(n, ho, pw1, c_pad)[:, :, :wo, :].astype(jnp.float32)
    a1 = jnp.maximum(y1t * scale1.reshape(1, 1, 1, c_pad)
                     + shift1.reshape(1, 1, 1, c_pad), 0.0).astype(jnp.bfloat16)

    # ---- conv2 (3x3, stride 1) + BN2 statistics -------------------------------
    planes2, taps2, pw2, mwin2, ho2, wo2 = _build_3x3_planes(a1, 1)
    mask2 = _col_mask(mwin2, pw2, wo2)
    w2p = _pad_weight(params["w2"], c_pad, c_pad)
    y2, s2, q2 = _conv_stats(planes2, w2p, mask2, taps2, mwin2)
    scale2, shift2 = _bn_fold(s2, q2, m_real, params["g2"], params["b2"], c_pad)

    # ---- shortcut branch + fused BN + add + ReLU epilogue ---------------------
    if params["proj"]:
        sp, taps_s, mwin_s, wo_s = _build_1x1_planes(x_nhwc, stride, pw2)
        mask_s = _col_mask(mwin_s, pw2, wo_s)
        wsp = _pad_weight(params["wsc"], cin_pad, c_pad)
        ysc, ss, qs = _conv_stats(sp, wsp, mask_s, taps_s, mwin_s)
        sscale, sshift = _bn_fold(ss, qs, m_real, params["gsc"], params["bsc"], c_pad)
        out = _bn_add_relu(y2, ysc, scale2, shift2, sscale, sshift)
    else:
        # Identity shortcut: x is read out of conv1's padded plane tensor
        # (interior window, offset pw1+1) -> no extra materialization of x.
        ones = jnp.ones((1, c_pad), jnp.float32)
        zeros = jnp.zeros((1, c_pad), jnp.float32)
        out = _bn_add_relu(y2, planes1, scale2, shift2, ones, zeros,
                           id_offset=pw1 + 1)

    # ---- strip throwaway columns / channel padding, back to NCHW --------------
    out = out.reshape(n, ho2, pw2, c_pad)[:, :, :wo2, :cout]
    return jnp.transpose(out, (0, 3, 1, 2)).astype(x_nchw.dtype)


if __name__ == "__main__":
    key = jax.random.PRNGKey(0)
    k_param, k_x = jax.random.split(key)

    # Downsampling block (projection shortcut), stride 2.
    in_channels, out_channels, stride = 4, 8, 2
    params = init_params(k_param, in_channels, out_channels, stride)
    x = jax.random.normal(k_x, (2, in_channels, 16, 16), jnp.float32)   # NCHW
    fwd = jax.jit(lambda t: basic_block_forward(t, params, stride))
    out = fwd(x)
    jax.block_until_ready(out)
    assert out.shape == (2, out_channels, 8, 8)

    # Identity-shortcut block (stride 1, equal channels) exercises the
    # in-kernel identity-window read and the stride-1 conv path.
    params_id = init_params(k_param, 8, 8, 1)
    x_id = jax.random.normal(k_x, (2, 8, 16, 16), jnp.float32)
    fwd_id = jax.jit(lambda t: basic_block_forward(t, params_id, 1))
    out_id = fwd_id(x_id)
    jax.block_until_ready(out_id)
    assert out_id.shape == (2, 8, 16, 16)

    print("KERNEL_OK")
</pallas_src>

<mosaic_0001>
module attributes {stable_mosaic.version = 11 : i64} {
  func.func @kernel(%arg0: i32, %arg1: memref<1x80x128xbf16, #tpu.memory_space<vmem>>, %arg2: memref<1x128x128xbf16, #tpu.memory_space<vmem>>, %arg3: memref<80x1xf32, #tpu.memory_space<vmem>>, %arg4: memref<1x80x128xbf16, #tpu.memory_space<vmem>>, %arg5: memref<1x1x128xf32, #tpu.memory_space<vmem>>, %arg6: memref<1x1x128xf32, #tpu.memory_space<vmem>>, %arg7: memref<80x128xf32, #tpu.memory_space<vmem>>) attributes {dimension_semantics = [#tpu.dimension_semantics<parallel>], iteration_bounds = array<i64: 2>, scalar_prefetch = 0 : i64, scratch_operands = 1 : i64, tpu.core_type = #tpu.core_type<tc>, window_params = [{transform_indices = @transform_0, window_bounds = array<i64: 1, 80, 128>}, {pipeline_mode = #tpu.pipeline_mode<synchronous>, transform_indices = @transform_1, window_bounds = array<i64: 1, 128, 128>}, {pipeline_mode = #tpu.pipeline_mode<synchronous>, transform_indices = @transform_2, window_bounds = array<i64: 80, 1>}, {transform_indices = @transform_3, window_bounds = array<i64: 1, 80, 128>}, {transform_indices = @transform_4, window_bounds = array<i64: 1, 1, 128>}, {transform_indices = @transform_5, window_bounds = array<i64: 1, 1, 128>}]} {
    %c0 = arith.constant 0 : index
    %c0_0 = arith.constant 0 : index
    %c0_1 = arith.constant 0 : index
    %0 = vector.load %arg1[%c0, %c0_0, %c0_1] : memref<1x80x128xbf16, #tpu.memory_space<vmem>>, vector<1x80x128xbf16>
    %1 = vector.shape_cast %0 : vector<1x80x128xbf16> to vector<80x128xbf16>
    %c0_2 = arith.constant 0 : index
    %c0_3 = arith.constant 0 : index
    %c0_4 = arith.constant 0 : index
    %2 = vector.load %arg2[%c0_2, %c0_3, %c0_4] : memref<1x128x128xbf16, #tpu.memory_space<vmem>>, vector<1x128x128xbf16>
    %3 = vector.shape_cast %2 : vector<1x128x128xbf16> to vector<128x128xbf16>
    %cst = arith.constant dense<0.000000e+00> : vector<80x128xf32>
    %4 = tpu.matmul %1, %3, %cst {dimension_numbers = #tpu.dot_dimension_numbers<[1], [0], [0], [1], [0, 0, 1, 1], [], []>} : vector<80x128xbf16>, vector<128x128xbf16>, vector<80x128xf32> -> vector<80x128xf32>
    %c0_5 = arith.constant 0 : index
    %c0_6 = arith.constant 0 : index
    %5 = vector.load %arg7[%c0_5, %c0_6] : memref<80x128xf32, #tpu.memory_space<vmem>>, vector<80x128xf32>
    tpu.vector_store %arg7[%c0_5, %c0_6], %4 {strides = array<i32>} : memref<80x128xf32, #tpu.memory_space<vmem>>, vector<80x128xf32>,
    %c0_7 = arith.constant 0 : index
    %c0_8 = arith.constant 0 : index
    %6 = vector.load %arg7[%c0_7, %c0_8] : memref<80x128xf32, #tpu.memory_space<vmem>>, vector<80x128xf32>
    %7 = arith.truncf %6 : vector<80x128xf32> to vector<80x128xbf16>
    %c0_9 = arith.constant 0 : index
    %c0_10 = arith.constant 0 : index
    %c0_11 = arith.constant 0 : index
    %8 = vector.load %arg4[%c0_9, %c0_10, %c0_11] : memref<1x80x128xbf16, #tpu.memory_space<vmem>>, vector<1x80x128xbf16>
    %9 = vector.shape_cast %8 : vector<1x80x128xbf16> to vector<80x128xbf16>
    %10 = vector.shape_cast %7 : vector<80x128xbf16> to vector<1x80x128xbf16>
    tpu.vector_store %arg4[%c0_9, %c0_10, %c0_11], %10 {strides = array<i32>} : memref<1x80x128xbf16, #tpu.memory_space<vmem>>, vector<1x80x128xbf16>,
    %c0_12 = arith.constant 0 : index
    %c0_13 = arith.constant 0 : index
    %11 = vector.load %arg3[%c0_12, %c0_13] : memref<80x1xf32, #tpu.memory_space<vmem>>, vector<80x1xf32>
    %12 = vector.broadcast %11 : vector<80x1xf32> to vector<80x128xf32>
    %13 = arith.mulf %6, %12 : vector<80x128xf32>
    %cst_14 = arith.constant dense<0.000000e+00> : vector<128xf32>
    %14 = vector.multi_reduction <add>, %13, %cst_14 [0] : vector<80x128xf32> to vector<128xf32>
    %15 = vector.shape_cast %14 : vector<128xf32> to vector<1x128xf32>
    %c0_15 = arith.constant 0 : index
    %c0_16 = arith.constant 0 : index
    %c0_17 = arith.constant 0 : index
    %16 = vector.load %arg5[%c0_15, %c0_16, %c0_17] : memref<1x1x128xf32, #tpu.memory_space<vmem>>, vector<1x1x128xf32>
    %17 = vector.shape_cast %16 : vector<1x1x128xf32> to vector<1x128xf32>
    %18 = vector.shape_cast %15 : vector<1x128xf32> to vector<1x1x128xf32>
    tpu.vector_store %arg5[%c0_15, %c0_16, %c0_17], %18 {strides = array<i32>} : memref<1x1x128xf32, #tpu.memory_space<vmem>>, vector<1x1x128xf32>,
    %19 = arith.mulf %6, %6 : vector<80x128xf32>
    %20 = vector.broadcast %11 : vector<80x1xf32> to vector<80x128xf32>
    %21 = arith.mulf %19, %20 : vector<80x128xf32>
    %cst_18 = arith.constant dense<0.000000e+00> : vector<128xf32>
    %22 = vector.multi_reduction <add>, %21, %cst_18 [0] : vector<80x128xf32> to vector<128xf32>
    %23 = vector.shape_cast %22 : vector<128xf32> to vector<1x128xf32>
    %c0_19 = arith.constant 0 : index
    %c0_20 = arith.constant 0 : index
    %c0_21 = arith.constant 0 : index
    %24 = vector.load %arg6[%c0_19, %c0_20, %c0_21] : memref<1x1x128xf32, #tpu.memory_space<vmem>>, vector<1x1x128xf32>
    %25 = vector.shape_cast %24 : vector<1x1x128xf32> to vector<1x128xf32>
    %26 = vector.shape_cast %23 : vector<1x128xf32> to vector<1x1x128xf32>
    tpu.vector_store %arg6[%c0_19, %c0_20, %c0_21], %26 {strides = array<i32>} : memref<1x1x128xf32, #tpu.memory_space<vmem>>, vector<1x1x128xf32>,
    return
  }
  func.func @transform_0(%arg0: i32) -> (i32, i32, i32) {
    %c0_i32 = arith.constant 0 : i32
    %c0_i32_0 = arith.constant 0 : i32
    %c0_i32_1 = arith.constant 0 : i32
    return %arg0, %c0_i32, %c0_i32_0 : i32, i32, i32
  }
  func.func @transform_1(%arg0: i32) -> (i32, i32, i32) {
    %c0_i32 = arith.constant 0 : i32
    %c0_i32_0 = arith.constant 0 : i32
    %c0_i32_1 = arith.constant 0 : i32
    %c0_i32_2 = arith.constant 0 : i32
    return %c0_i32, %c0_i32_0, %c0_i32_1 : i32, i32, i32
  }
  func.func @transform_2(%arg0: i32) -> (i32, i32) {
    %c0_i32 = arith.constant 0 : i32
    %c0_i32_0 = arith.constant 0 : i32
    %c0_i32_1 = arith.constant 0 : i32
    return %c0_i32, %c0_i32_0 : i32, i32
  }
  func.func @transform_3(%arg0: i32) -> (i32, i32, i32) {
    %c0_i32 = arith.constant 0 : i32
    %c0_i32_0 = arith.constant 0 : i32
    %c0_i32_1 = arith.constant 0 : i32
    return %arg0, %c0_i32, %c0_i32_0 : i32, i32, i32
  }
  func.func @transform_4(%arg0: i32) -> (i32, i32, i32) {
    %c0_i32 = arith.constant 0 : i32
    %c0_i32_0 = arith.constant 0 : i32
    %c0_i32_1 = arith.constant 0 : i32
    return %arg0, %c0_i32, %c0_i32_0 : i32, i32, i32
  }
  func.func @transform_5(%arg0: i32) -> (i32, i32, i32) {
    %c0_i32 = arith.constant 0 : i32
    %c0_i32_0 = arith.constant 0 : i32
    %c0_i32_1 = arith.constant 0 : i32
    return %arg0, %c0_i32, %c0_i32_0 : i32, i32, i32
  }
}

module attributes {stable_mosaic.version = 11 : i64} {
  func.func @kernel(%arg0: i32, %arg1: memref<1x328x128xbf16, #tpu.memory_space<vmem>>, %arg2: memref<9x128x128xbf16, #tpu.memory_space<vmem>>, %arg3: memref<72x1xf32, #tpu.memory_space<vmem>>, %arg4: memref<1x72x128xbf16, #tpu.memory_space<vmem>>, %arg5: memref<1x1x128xf32, #tpu.memory_space<vmem>>, %arg6: memref<1x1x128xf32, #tpu.memory_space<vmem>>, %arg7: memref<72x128xf32, #tpu.memory_space<vmem>>) attributes {dimension_semantics = [#tpu.dimension_semantics<parallel>], iteration_bounds = array<i64: 2>, scalar_prefetch = 0 : i64, scratch_operands = 1 : i64, tpu.core_type = #tpu.core_type<tc>, window_params = [{transform_indices = @transform_0, window_bounds = array<i64: 1, 328, 128>}, {pipeline_mode = #tpu.pipeline_mode<synchronous>, transform_indices = @transform_1, window_bounds = array<i64: 9, 128, 128>}, {pipeline_mode = #tpu.pipeline_mode<synchronous>, transform_indices = @transform_2, window_bounds = array<i64: 72, 1>}, {transform_indices = @transform_3, window_bounds = array<i64: 1, 72, 128>}, {transform_indices = @transform_4, window_bounds = array<i64: 1, 1, 128>}, {transform_indices = @transform_5, window_bounds = array<i64: 1, 1, 128>}]} {
    %c0 = arith.constant 0 : index
    %c0_0 = arith.constant 0 : index
    %c0_1 = arith.constant 0 : index
    %0 = vector.load %arg1[%c0, %c0_0, %c0_1] : memref<1x328x128xbf16, #tpu.memory_space<vmem>>, vector<1x72x128xbf16>
    %1 = vector.shape_cast %0 : vector<1x72x128xbf16> to vector<72x128xbf16>
    %c0_2 = arith.constant 0 : index
    %c0_3 = arith.constant 0 : index
    %c0_4 = arith.constant 0 : index
    %2 = vector.load %arg2[%c0_2, %c0_3, %c0_4] : memref<9x128x128xbf16, #tpu.memory_space<vmem>>, vector<1x128x128xbf16>
    %3 = vector.shape_cast %2 : vector<1x128x128xbf16> to vector<128x128xbf16>
    %cst = arith.constant dense<0.000000e+00> : vector<72x128xf32>
    %4 = tpu.matmul %1, %3, %cst {dimension_numbers = #tpu.dot_dimension_numbers<[1], [0], [0], [1], [0, 0, 1, 1], [], []>} : vector<72x128xbf16>, vector<128x128xbf16>, vector<72x128xf32> -> vector<72x128xf32>
    %c0_5 = arith.constant 0 : index
    %c0_6 = arith.constant 0 : index
    %5 = vector.load %arg7[%c0_5, %c0_6] : memref<72x128xf32, #tpu.memory_space<vmem>>, vector<72x128xf32>
    tpu.vector_store %arg7[%c0_5, %c0_6], %4 {strides = array<i32>} : memref<72x128xf32, #tpu.memory_space<vmem>>, vector<72x128xf32>,
    %c0_7 = arith.constant 0 : index
    %c82 = arith.constant 82 : index
    %c0_8 = arith.constant 0 : index
    %6 = vector.load %arg1[%c0_7, %c82, %c0_8] : memref<1x328x128xbf16, #tpu.memory_space<vmem>>, vector<1x72x128xbf16>
    %7 = vector.shape_cast %6 : vector<1x72x128xbf16> to vector<72x128xbf16>
    %c1 = arith.constant 1 : index
    %c0_9 = arith.constant 0 : index
    %c0_10 = arith.constant 0 : index
    %8 = vector.load %arg2[%c1, %c0_9, %c0_10] : memref<9x128x128xbf16, #tpu.memory_space<vmem>>, vector<1x128x128xbf16>
    %9 = vector.shape_cast %8 : vector<1x128x128xbf16> to vector<128x128xbf16>
    %cst_11 = arith.constant dense<0.000000e+00> : vector<72x128xf32>
    %10 = tpu.matmul %7, %9, %cst_11 {dimension_numbers = #tpu.dot_dimension_numbers<[1], [0], [0], [1], [0, 0, 1, 1], [], []>} : vector<72x128xbf16>, vector<128x128xbf16>, vector<72x128xf32> -> vector<72x128xf32>
    %c0_12 = arith.constant 0 : index
    %c0_13 = arith.constant 0 : index
    %11 = vector.load %arg7[%c0_12, %c0_13] : memref<72x128xf32, #tpu.memory_space<vmem>>, vector<72x128xf32>
    %12 = arith.addf %11, %10 : vector<72x128xf32>
    %c0_14 = arith.constant 0 : index
    %c0_15 = arith.constant 0 : index
    %13 = vector.load %arg7[%c0_14, %c0_15] : memref<72x128xf32, #tpu.memory_space<vmem>>, vector<72x128xf32>
    tpu.vector_store %arg7[%c0_14, %c0_15], %12 {strides = array<i32>} : memref<72x128xf32, #tpu.memory_space<vmem>>, vector<72x128xf32>,
    %c0_16 = arith.constant 0 : index
    %c1_17 = arith.constant 1 : index
    %c0_18 = arith.constant 0 : index
    %14 = vector.load %arg1[%c0_16, %c1_17, %c0_18] : memref<1x328x128xbf16, #tpu.memory_space<vmem>>, vector<1x72x128xbf16>
    %15 = vector.shape_cast %14 : vector<1x72x128xbf16> to vector<72x128xbf16>
    %c2 = arith.constant 2 : index
    %c0_19 = arith.constant 0 : index
    %c0_20 = arith.constant 0 : index
    %16 = vector.load %arg2[%c2, %c0_19, %c0_20] : memref<9x128x128xbf16, #tpu.memory_space<vmem>>, vector<1x128x128xbf16>
    %17 = vector.shape_cast %16 : vector<1x128x128xbf16> to vector<128x128xbf16>
    %cst_21 = arith.constant dense<0.000000e+00> : vector<72x128xf32>
    %18 = tpu.matmul %15, %17, %cst_21 {dimension_numbers = #tpu.dot_dimension_numbers<[1], [0], [0], [1], [0, 0, 1, 1], [], []>} : vector<72x128xbf16>, vector<128x128xbf16>, vector<72x128xf32> -> vector<72x128xf32>
    %c0_22 = arith.constant 0 : index
    %c0_23 = arith.constant 0 : index
    %19 = vector.load %arg7[%c0_22, %c0_23] : memref<72x128xf32, #tpu.memory_space<vmem>>, vector<72x128xf32>
    %20 = arith.addf %19, %18 : vector<72x128xf32>
    %c0_24 = arith.constant 0 : index
    %c0_25 = arith.constant 0 : index
    %21 = vector.load %arg7[%c0_24, %c0_25] : memref<72x128xf32, #tpu.memory_space<vmem>>, vector<72x128xf32>
    tpu.vector_store %arg7[%c0_24, %c0_25], %20 {strides = array<i32>} : memref<72x128xf32, #tpu.memory_space<vmem>>, vector<72x128xf32>,
    %c0_26 = arith.constant 0 : index
    %c164 = arith.constant 164 : index
    %c0_27 = arith.constant 0 : index
    %22 = vector.load %arg1[%c0_26, %c164, %c0_27] : memref<1x328x128xbf16, #tpu.memory_space<vmem>>, vector<1x72x128xbf16>
    %23 = vector.shape_cast %22 : vector<1x72x128xbf16> to vector<72x128xbf16>
    %c3 = arith.constant 3 : index
    %c0_28 = arith.constant 0 : index
    %c0_29 = arith.constant 0 : index
    %24 = vector.load %arg2[%c3, %c0_28, %c0_29] : memref<9x128x128xbf16, #tpu.memory_space<vmem>>, vector<1x128x128xbf16>
    %25 = vector.shape_cast %24 : vector<1x128x128xbf16> to vector<128x128xbf16>
    %cst_30 = arith.constant dense<0.000000e+00> : vector<72x128xf32>
    %26 = tpu.matmul %23, %25, %cst_30 {dimension_numbers = #tpu.dot_dimension_numbers<[1], [0], [0], [1], [0, 0, 1, 1], [], []>} : vector<72x128xbf16>, vector<128x128xbf16>, vector<72x128xf32> -> vector<72x128xf32>
    %c0_31 = arith.constant 0 : index
    %c0_32 = arith.constant 0 : index
    %27 = vector.load %arg7[%c0_31, %c0_32] : memref<72x128xf32, #tpu.memory_space<vmem>>, vector<72x128xf32>
    %28 = arith.addf %27, %26 : vector<72x128xf32>
    %c0_33 = arith.constant 0 : index
    %c0_34 = arith.constant 0 : index
    %29 = vector.load %arg7[%c0_33, %c0_34] : memref<72x128xf32, #tpu.memory_space<vmem>>, vector<72x128xf32>
    tpu.vector_store %arg7[%c0_33, %c0_34], %28 {strides = array<i32>} : memref<72x128xf32, #tpu.memory_space<vmem>>, vector<72x128xf32>,
    %c0_35 = arith.constant 0 : index
    %c246 = arith.constant 246 : index
    %c0_36 = arith.constant 0 : index
    %30 = vector.load %arg1[%c0_35, %c246, %c0_36] : memref<1x328x128xbf16, #tpu.memory_space<vmem>>, vector<1x72x128xbf16>
    %31 = vector.shape_cast %30 : vector<1x72x128xbf16> to vector<72x128xbf16>
    %c4 = arith.constant 4 : index
    %c0_37 = arith.constant 0 : index
    %c0_38 = arith.constant 0 : index
    %32 = vector.load %arg2[%c4, %c0_37, %c0_38] : memref<9x128x128xbf16, #tpu.memory_space<vmem>>, vector<1x128x128xbf16>
    %33 = vector.shape_cast %32 : vector<1x128x128xbf16> to vector<128x128xbf16>
    %cst_39 = arith.constant dense<0.000000e+00> : vector<72x128xf32>
    %34 = tpu.matmul %31, %33, %cst_39 {dimension_numbers = #tpu.dot_dimension_numbers<[1], [0], [0], [1], [0, 0, 1, 1], [], []>} : vector<72x128xbf16>, vector<128x128xbf16>, vector<72x128xf32> -> vector<72x128xf32>
    %c0_40 = arith.constant 0 : index
    %c0_41 = arith.constant 0 : index
    %35 = vector.load %arg7[%c0_40, %c0_41] : memref<72x128xf32, #tpu.memory_space<vmem>>, vector<72x128xf32>
    %36 = arith.addf %35, %34 : vector<72x128xf32>
    %c0_42 = arith.constant 0 : index
    %c0_43 = arith.constant 0 : index
    %37 = vector.load %arg7[%c0_42, %c0_43] : memref<72x128xf32, #tpu.memory_space<vmem>>, vector<72x128xf32>
    tpu.vector_store %arg7[%c0_42, %c0_43], %36 {strides = array<i32>} : memref<72x128xf32, #tpu.memory_space<vmem>>, vector<72x128xf32>,
    %c0_44 = arith.constant 0 : index
    %c165 = arith.constant 165 : index
    %c0_45 = arith.constant 0 : index
    %38 = vector.load %arg1[%c0_44, %c165, %c0_45] : memref<1x328x128xbf16, #tpu.memory_space<vmem>>, vector<1x72x128xbf16>
    %39 = vector.shape_cast %38 : vector<1x72x128xbf16> to vector<72x128xbf16>
    %c5 = arith.constant 5 : index
    %c0_46 = arith.constant 0 : index
    %c0_47 = arith.constant 0 : index
    %40 = vector.load %arg2[%c5, %c0_46, %c0_47] : memref<9x128x128xbf16, #tpu.memory_space<vmem>>, vector<1x128x128xbf16>
    %41 = vector.shape_cast %40 : vector<1x128x128xbf16> to vector<128x128xbf16>
    %cst_48 = arith.constant dense<0.000000e+00> : vector<72x128xf32>
    %42 = tpu.matmul %39, %41, %cst_48 {dimension_numbers = #tpu.dot_dimension_numbers<[1], [0], [0], [1], [0, 0, 1, 1], [], []>} : vector<72x128xbf16>, vector<128x128xbf16>, vector<72x128xf32> -> vector<72x128xf32>
    %c0_49 = arith.constant 0 : index
    %c0_50 = arith.constant 0 : index
    %43 = vector.load %arg7[%c0_49, %c0_50] : memref<72x128xf32, #tpu.memory_space<vmem>>, vector<72x128xf32>
    %44 = arith.addf %43, %42 : vector<72x128xf32>
    %c0_51 = arith.constant 0 : index
    %c0_52 = arith.constant 0 : index
    %45 = vector.load %arg7[%c0_51, %c0_52] : memref<72x128xf32, #tpu.memory_space<vmem>>, vector<72x128xf32>
    tpu.vector_store %arg7[%c0_51, %c0_52], %44 {strides = array<i32>} : memref<72x128xf32, #tpu.memory_space<vmem>>, vector<72x128xf32>,
    %c0_53 = arith.constant 0 : index
    %c9 = arith.constant 9 : index
    %c0_54 = arith.constant 0 : index
    %46 = vector.load %arg1[%c0_53, %c9, %c0_54] : memref<1x328x128xbf16, #tpu.memory_space<vmem>>, vector<1x72x128xbf16>
    %47 = vector.shape_cast %46 : vector<1x72x128xbf16> to vector<72x128xbf16>
    %c6 = arith.constant 6 : index
    %c0_55 = arith.constant 0 : index
    %c0_56 = arith.constant 0 : index
    %48 = vector.load %arg2[%c6, %c0_55, %c0_56] : memref<9x128x128xbf16, #tpu.memory_space<vmem>>, vector<1x128x128xbf16>
    %49 = vector.shape_cast %48 : vector<1x128x128xbf16> to vector<128x128xbf16>
    %cst_57 = arith.constant dense<0.000000e+00> : vector<72x128xf32>
    %50 = tpu.matmul %47, %49, %cst_57 {dimension_numbers = #tpu.dot_dimension_numbers<[1], [0], [0], [1], [0, 0, 1, 1], [], []>} : vector<72x128xbf16>, vector<128x128xbf16>, vector<72x128xf32> -> vector<72x128xf32>
    %c0_58 = arith.constant 0 : index
    %c0_59 = arith.constant 0 : index
    %51 = vector.load %arg7[%c0_58, %c0_59] : memref<72x128xf32, #tpu.memory_space<vmem>>, vector<72x128xf32>
    %52 = arith.addf %51, %50 : vector<72x128xf32>
    %c0_60 = arith.constant 0 : index
    %c0_61 = arith.constant 0 : index
    %53 = vector.load %arg7[%c0_60, %c0_61] : memref<72x128xf32, #tpu.memory_space<vmem>>, vector<72x128xf32>
    tpu.vector_store %arg7[%c0_60, %c0_61], %52 {strides = array<i32>} : memref<72x128xf32, #tpu.memory_space<vmem>>, vector<72x128xf32>,
    %c0_62 = arith.constant 0 : index
    %c91 = arith.constant 91 : index
    %c0_63 = arith.constant 0 : index
    %54 = vector.load %arg1[%c0_62, %c91, %c0_63] : memref<1x328x128xbf16, #tpu.memory_space<vmem>>, vector<1x72x128xbf16>
    %55 = vector.shape_cast %54 : vector<1x72x128xbf16> to vector<72x128xbf16>
    %c7 = arith.constant 7 : index
    %c0_64 = arith.constant 0 : index
    %c0_65 = arith.constant 0 : index
    %56 = vector.load %arg2[%c7, %c0_64, %c0_65] : memref<9x128x128xbf16, #tpu.memory_space<vmem>>, vector<1x128x128xbf16>
    %57 = vector.shape_cast %56 : vector<1x128x128xbf16> to vector<128x128xbf16>
    %cst_66 = arith.constant dense<0.000000e+00> : vector<72x128xf32>
    %58 = tpu.matmul %55, %57, %cst_66 {dimension_numbers = #tpu.dot_dimension_numbers<[1], [0], [0], [1], [0, 0, 1, 1], [], []>} : vector<72x128xbf16>, vector<128x128xbf16>, vector<72x128xf32> -> vector<72x128xf32>
    %c0_67 = arith.constant 0 : index
    %c0_68 = arith.constant 0 : index
    %59 = vector.load %arg7[%c0_67, %c0_68] : memref<72x128xf32, #tpu.memory_space<vmem>>, vector<72x128xf32>
    %60 = arith.addf %59, %58 : vector<72x128xf32>
    %c0_69 = arith.constant 0 : index
    %c0_70 = arith.constant 0 : index
    %61 = vector.load %arg7[%c0_69, %c0_70] : memref<72x128xf32, #tpu.memory_space<vmem>>, vector<72x128xf32>
    tpu.vector_store %arg7[%c0_69, %c0_70], %60 {strides = array<i32>} : memref<72x128xf32, #tpu.memory_space<vmem>>, vector<72x128xf32>,
    %c0_71 = arith.constant 0 : index
    %c10 = arith.constant 10 : index
    %c0_72 = arith.constant 0 : index
    %62 = vector.load %arg1[%c0_71, %c10, %c0_72] : memref<1x328x128xbf16, #tpu.memory_space<vmem>>, vector<1x72x128xbf16>
    %63 = vector.shape_cast %62 : vector<1x72x128xbf16> to vector<72x128xbf16>
    %c8 = arith.constant 8 : index
    %c0_73 = arith.constant 0 : index
    %c0_74 = arith.constant 0 : index
    %64 = vector.load %arg2[%c8, %c0_73, %c0_74] : memref<9x128x128xbf16, #tpu.memory_space<vmem>>, vector<1x128x128xbf16>
    %65 = vector.shape_cast %64 : vector<1x128x128xbf16> to vector<128x128xbf16>
    %cst_75 = arith.constant dense<0.000000e+00> : vector<72x128xf32>
    %66 = tpu.matmul %63, %65, %cst_75 {dimension_numbers = #tpu.dot_dimension_numbers<[1], [0], [0], [1], [0, 0, 1, 1], [], []>} : vector<72x128xbf16>, vector<128x128xbf16>, vector<72x128xf32> -> vector<72x128xf32>
    %c0_76 = arith.constant 0 : index
    %c0_77 = arith.constant 0 : index
    %67 = vector.load %arg7[%c0_76, %c0_77] : memref<72x128xf32, #tpu.memory_space<vmem>>, vector<72x128xf32>
    %68 = arith.addf %67, %66 : vector<72x128xf32>
    %c0_78 = arith.constant 0 : index
    %c0_79 = arith.constant 0 : index
    %69 = vector.load %arg7[%c0_78, %c0_79] : memref<72x128xf32, #tpu.memory_space<vmem>>, vector<72x128xf32>
    tpu.vector_store %arg7[%c0_78, %c0_79], %68 {strides = array<i32>} : memref<72x128xf32, #tpu.memory_space<vmem>>, vector<72x128xf32>,
    %c0_80 = arith.constant 0 : index
    %c0_81 = arith.constant 0 : index
    %70 = vector.load %arg7[%c0_80, %c0_81] : memref<72x128xf32, #tpu.memory_space<vmem>>, vector<72x128xf32>
    %71 = arith.truncf %70 : vector<72x128xf32> to vector<72x128xbf16>
    %c0_82 = arith.constant 0 : index
    %c0_83 = arith.constant 0 : index
    %c0_84 = arith.constant 0 : index
    %72 = vector.load %arg4[%c0_82, %c0_83, %c0_84] : memref<1x72x128xbf16, #tpu.memory_space<vmem>>, vector<1x72x128xbf16>
    %73 = vector.shape_cast %72 : vector<1x72x128xbf16> to vector<72x128xbf16>
    %74 = vector.shape_cast %71 : vector<72x128xbf16> to vector<1x72x128xbf16>
    tpu.vector_store %arg4[%c0_82, %c0_83, %c0_84], %74 {strides = array<i32>} : memref<1x72x128xbf16, #tpu.memory_space<vmem>>, vector<1x72x128xbf16>,
    %c0_85 = arith.constant 0 : index
    %c0_86 = arith.constant 0 : index
    %75 = vector.load %arg3[%c0_85, %c0_86] : memref<72x1xf32, #tpu.memory_space<vmem>>, vector<72x1xf32>
    %76 = vector.broadcast %75 : vector<72x1xf32> to vector<72x128xf32>
    %77 = arith.mulf %70, %76 : vector<72x128xf32>
    %cst_87 = arith.constant dense<0.000000e+00> : vector<128xf32>
    %78 = vector.multi_reduction <add>, %77, %cst_87 [0] : vector<72x128xf32> to vector<128xf32>
    %79 = vector.shape_cast %78 : vector<128xf32> to vector<1x128xf32>
    %c0_88 = arith.constant 0 : index
    %c0_89 = arith.constant 0 : index
    %c0_90 = arith.constant 0 : index
    %80 = vector.load %arg5[%c0_88, %c0_89, %c0_90] : memref<1x1x128xf32, #tpu.memory_space<vmem>>, vector<1x1x128xf32>
    %81 = vector.shape_cast %80 : vector<1x1x128xf32> to vector<1x128xf32>
    %82 = vector.shape_cast %79 : vector<1x128xf32> to vector<1x1x128xf32>
    tpu.vector_store %arg5[%c0_88, %c0_89, %c0_90], %82 {strides = array<i32>} : memref<1x1x128xf32, #tpu.memory_space<vmem>>, vector<1x1x128xf32>,
    %83 = arith.mulf %70, %70 : vector<72x128xf32>
    %84 = vector.broadcast %75 : vector<72x1xf32> to vector<72x128xf32>
    %85 = arith.mulf %83, %84 : vector<72x128xf32>
    %cst_91 = arith.constant dense<0.000000e+00> : vector<128xf32>
    %86 = vector.multi_reduction <add>, %85, %cst_91 [0] : vector<72x128xf32> to vector<128xf32>
    %87 = vector.shape_cast %86 : vector<128xf32> to vector<1x128xf32>
    %c0_92 = arith.constant 0 : index
    %c0_93 = arith.constant 0 : index
    %c0_94 = arith.constant 0 : index
    %88 = vector.load %arg6[%c0_92, %c0_93, %c0_94] : memref<1x1x128xf32, #tpu.memory_space<vmem>>, vector<1x1x128xf32>
    %89 = vector.shape_cast %88 : vector<1x1x128xf32> to vector<1x128xf32>
    %90 = vector.shape_cast %87 : vector<1x128xf32> to vector<1x1x128xf32>
    tpu.vector_store %arg6[%c0_92, %c0_93, %c0_94], %90 {strides = array<i32>} : memref<1x1x128xf32, #tpu.memory_space<vmem>>, vector<1x1x128xf32>,
    return
  }
  func.func @transform_0(%arg0: i32) -> (i32, i32, i32) {
    %c0_i32 = arith.constant 0 : i32
    %c0_i32_0 = arith.constant 0 : i32
    %c0_i32_1 = arith.constant 0 : i32
    return %arg0, %c0_i32, %c0_i32_0 : i32, i32, i32
  }
  func.func @transform_1(%arg0: i32) -> (i32, i32, i32) {
    %c0_i32 = arith.constant 0 : i32
    %c0_i32_0 = arith.constant 0 : i32
    %c0_i32_1 = arith.constant 0 : i32
    %c0_i32_2 = arith.constant 0 : i32
    return %c0_i32, %c0_i32_0, %c0_i32_1 : i32, i32, i32
  }
  func.func @transform_2(%arg0: i32) -> (i32, i32) {
    %c0_i32 = arith.constant 0 : i32
    %c0_i32_0 = arith.constant 0 : i32
    %c0_i32_1 = arith.constant 0 : i32
    return %c0_i32, %c0_i32_0 : i32, i32
  }
  func.func @transform_3(%arg0: i32) -> (i32, i32, i32) {
    %c0_i32 = arith.constant 0 : i32
    %c0_i32_0 = arith.constant 0 : i32
    %c0_i32_1 = arith.constant 0 : i32
    return %arg0, %c0_i32, %c0_i32_0 : i32, i32, i32
  }
  func.func @transform_4(%arg0: i32) -> (i32, i32, i32) {
    %c0_i32 = arith.constant 0 : i32
    %c0_i32_0 = arith.constant 0 : i32
    %c0_i32_1 = arith.constant 0 : i32
    return %arg0, %c0_i32, %c0_i32_0 : i32, i32, i32
  }
  func.func @transform_5(%arg0: i32) -> (i32, i32, i32) {
    %c0_i32 = arith.constant 0 : i32
    %c0_i32_0 = arith.constant 0 : i32
    %c0_i32_1 = arith.constant 0 : i32
    return %arg0, %c0_i32, %c0_i32_0 : i32, i32, i32
  }
}

module attributes {stable_mosaic.version = 11 : i64} {
  func.func @kernel(%arg0: i32, %arg1: memref<1x80x128xbf16, #tpu.memory_space<vmem>>, %arg2: memref<1x80x128xbf16, #tpu.memory_space<vmem>>, %arg3: memref<1x128xf32, #tpu.memory_space<vmem>>, %arg4: memref<1x128xf32, #tpu.memory_space<vmem>>, %arg5: memref<1x128xf32, #tpu.memory_space<vmem>>, %arg6: memref<1x128xf32, #tpu.memory_space<vmem>>, %arg7: memref<1x80x128xbf16, #tpu.memory_space<vmem>>) attributes {dimension_semantics = [#tpu.dimension_semantics<parallel>], iteration_bounds = array<i64: 2>, scalar_prefetch = 0 : i64, scratch_operands = 0 : i64, tpu.core_type = #tpu.core_type<tc>, window_params = [{transform_indices = @transform_0, window_bounds = array<i64: 1, 80, 128>}, {transform_indices = @transform_1, window_bounds = array<i64: 1, 80, 128>}, {pipeline_mode = #tpu.pipeline_mode<synchronous>, transform_indices = @transform_2, window_bounds = array<i64: 1, 128>}, {pipeline_mode = #tpu.pipeline_mode<synchronous>, transform_indices = @transform_3, window_bounds = array<i64: 1, 128>}, {pipeline_mode = #tpu.pipeline_mode<synchronous>, transform_indices = @transform_4, window_bounds = array<i64: 1, 128>}, {pipeline_mode = #tpu.pipeline_mode<synchronous>, transform_indices = @transform_5, window_bounds = array<i64: 1, 128>}, {transform_indices = @transform_6, window_bounds = array<i64: 1, 80, 128>}]} {
    %c0 = arith.constant 0 : index
    %c0_0 = arith.constant 0 : index
    %c0_1 = arith.constant 0 : index
    %0 = vector.load %arg1[%c0, %c0_0, %c0_1] : memref<1x80x128xbf16, #tpu.memory_space<vmem>>, vector<1x80x128xbf16>
    %1 = vector.shape_cast %0 : vector<1x80x128xbf16> to vector<80x128xbf16>
    %2 = arith.extf %1 : vector<80x128xbf16> to vector<80x128xf32>
    %c0_2 = arith.constant 0 : index
    %c0_3 = arith.constant 0 : index
    %c0_4 = arith.constant 0 : index
    %3 = vector.load %arg2[%c0_2, %c0_3, %c0_4] : memref<1x80x128xbf16, #tpu.memory_space<vmem>>, vector<1x80x128xbf16>
    %4 = vector.shape_cast %3 : vector<1x80x128xbf16> to vector<80x128xbf16>
    %5 = arith.extf %4 : vector<80x128xbf16> to vector<80x128xf32>
    %c0_5 = arith.constant 0 : index
    %c0_6 = arith.constant 0 : index
    %6 = vector.load %arg3[%c0_5, %c0_6] : memref<1x128xf32, #tpu.memory_space<vmem>>, vector<1x128xf32>
    %7 = vector.broadcast %6 : vector<1x128xf32> to vector<80x128xf32>
    %8 = arith.mulf %2, %7 : vector<80x128xf32>
    %c0_7 = arith.constant 0 : index
    %c0_8 = arith.constant 0 : index
    %9 = vector.load %arg4[%c0_7, %c0_8] : memref<1x128xf32, #tpu.memory_space<vmem>>, vector<1x128xf32>
    %10 = vector.broadcast %9 : vector<1x128xf32> to vector<80x128xf32>
    %11 = arith.addf %8, %10 : vector<80x128xf32>
    %c0_9 = arith.constant 0 : index
    %c0_10 = arith.constant 0 : index
    %12 = vector.load %arg5[%c0_9, %c0_10] : memref<1x128xf32, #tpu.memory_space<vmem>>, vector<1x128xf32>
    %13 = vector.broadcast %12 : vector<1x128xf32> to vector<80x128xf32>
    %14 = arith.mulf %5, %13 : vector<80x128xf32>
    %15 = arith.addf %11, %14 : vector<80x128xf32>
    %c0_11 = arith.constant 0 : index
    %c0_12 = arith.constant 0 : index
    %16 = vector.load %arg6[%c0_11, %c0_12] : memref<1x128xf32, #tpu.memory_space<vmem>>, vector<1x128xf32>
    %17 = vector.broadcast %16 : vector<1x128xf32> to vector<80x128xf32>
    %18 = arith.addf %15, %17 : vector<80x128xf32>
    %cst = arith.constant 0.000000e+00 : f32
    %19 = vector.broadcast %cst : f32 to vector<80x128xf32>
    %20 = arith.maximumf %18, %19 : vector<80x128xf32>
    %21 = arith.truncf %20 : vector<80x128xf32> to vector<80x128xbf16>
    %c0_13 = arith.constant 0 : index
    %c0_14 = arith.constant 0 : index
    %c0_15 = arith.constant 0 : index
    %22 = vector.load %arg7[%c0_13, %c0_14, %c0_15] : memref<1x80x128xbf16, #tpu.memory_space<vmem>>, vector<1x80x128xbf16>
    %23 = vector.shape_cast %22 : vector<1x80x128xbf16> to vector<80x128xbf16>
    %24 = vector.shape_cast %21 : vector<80x128xbf16> to vector<1x80x128xbf16>
    tpu.vector_store %arg7[%c0_13, %c0_14, %c0_15], %24 {strides = array<i32>} : memref<1x80x128xbf16, #tpu.memory_space<vmem>>, vector<1x80x128xbf16>,
    return
  }
  func.func @transform_0(%arg0: i32) -> (i32, i32, i32) {
    %c0_i32 = arith.constant 0 : i32
    %c0_i32_0 = arith.constant 0 : i32
    %c0_i32_1 = arith.constant 0 : i32
    return %arg0, %c0_i32, %c0_i32_0 : i32, i32, i32
  }
  func.func @transform_1(%arg0: i32) -> (i32, i32, i32) {
    %c0_i32 = arith.constant 0 : i32
    %c0_i32_0 = arith.constant 0 : i32
    %c0_i32_1 = arith.constant 0 : i32
    return %arg0, %c0_i32, %c0_i32_0 : i32, i32, i32
  }
  func.func @transform_2(%arg0: i32) -> (i32, i32) {
    %c0_i32 = arith.constant 0 : i32
    %c0_i32_0 = arith.constant 0 : i32
    %c0_i32_1 = arith.constant 0 : i32
    return %c0_i32, %c0_i32_0 : i32, i32
  }
  func.func @transform_3(%arg0: i32) -> (i32, i32) {
    %c0_i32 = arith.constant 0 : i32
    %c0_i32_0 = arith.constant 0 : i32
    %c0_i32_1 = arith.constant 0 : i32
    return %c0_i32, %c0_i32_0 : i32, i32
  }
  func.func @transform_4(%arg0: i32) -> (i32, i32) {
    %c0_i32 = arith.constant 0 : i32
    %c0_i32_0 = arith.constant 0 : i32
    %c0_i32_1 = arith.constant 0 : i32
    return %c0_i32, %c0_i32_0 : i32, i32
  }
  func.func @transform_5(%arg0: i32) -> (i32, i32) {
    %c0_i32 = arith.constant 0 : i32
    %c0_i32_0 = arith.constant 0 : i32
    %c0_i32_1 = arith.constant 0 : i32
    return %c0_i32, %c0_i32_0 : i32, i32
  }
  func.func @transform_6(%arg0: i32) -> (i32, i32, i32) {
    %c0_i32 = arith.constant 0 : i32
    %c0_i32_0 = arith.constant 0 : i32
    %c0_i32_1 = arith.constant 0 : i32
    return %arg0, %c0_i32, %c0_i32_0 : i32, i32, i32
  }
}

module attributes {stable_mosaic.version = 11 : i64} {
  func.func @kernel(%arg0: i32, %arg1: memref<1x102x128xbf16, #tpu.memory_space<vmem>>, %arg2: memref<9x128x128xbf16, #tpu.memory_space<vmem>>, %arg3: memref<80x1xf32, #tpu.memory_space<vmem>>, %arg4: memref<1x80x128xbf16, #tpu.memory_space<vmem>>, %arg5: memref<1x1x128xf32, #tpu.memory_space<vmem>>, %arg6: memref<1x1x128xf32, #tpu.memory_space<vmem>>, %arg7: memref<80x128xf32, #tpu.memory_space<vmem>>) attributes {dimension_semantics = [#tpu.dimension_semantics<parallel>], iteration_bounds = array<i64: 2>, scalar_prefetch = 0 : i64, scratch_operands = 1 : i64, tpu.core_type = #tpu.core_type<tc>, window_params = [{transform_indices = @transform_0, window_bounds = array<i64: 1, 102, 128>}, {pipeline_mode = #tpu.pipeline_mode<synchronous>, transform_indices = @transform_1, window_bounds = array<i64: 9, 128, 128>}, {pipeline_mode = #tpu.pipeline_mode<synchronous>, transform_indices = @transform_2, window_bounds = array<i64: 80, 1>}, {transform_indices = @transform_3, window_bounds = array<i64: 1, 80, 128>}, {transform_indices = @transform_4, window_bounds = array<i64: 1, 1, 128>}, {transform_indices = @transform_5, window_bounds = array<i64: 1, 1, 128>}]} {
    %c0 = arith.constant 0 : index
    %c0_0 = arith.constant 0 : index
    %c0_1 = arith.constant 0 : index
    %0 = vector.load %arg1[%c0, %c0_0, %c0_1] : memref<1x102x128xbf16, #tpu.memory_space<vmem>>, vector<1x80x128xbf16>
    %1 = vector.shape_cast %0 : vector<1x80x128xbf16> to vector<80x128xbf16>
    %c0_2 = arith.constant 0 : index
    %c0_3 = arith.constant 0 : index
    %c0_4 = arith.constant 0 : index
    %2 = vector.load %arg2[%c0_2, %c0_3, %c0_4] : memref<9x128x128xbf16, #tpu.memory_space<vmem>>, vector<1x128x128xbf16>
    %3 = vector.shape_cast %2 : vector<1x128x128xbf16> to vector<128x128xbf16>
    %cst = arith.constant dense<0.000000e+00> : vector<80x128xf32>
    %4 = tpu.matmul %1, %3, %cst {dimension_numbers = #tpu.dot_dimension_numbers<[1], [0], [0], [1], [0, 0, 1, 1], [], []>} : vector<80x128xbf16>, vector<128x128xbf16>, vector<80x128xf32> -> vector<80x128xf32>
    %c0_5 = arith.constant 0 : index
    %c0_6 = arith.constant 0 : index
    %5 = vector.load %arg7[%c0_5, %c0_6] : memref<80x128xf32, #tpu.memory_space<vmem>>, vector<80x128xf32>
    tpu.vector_store %arg7[%c0_5, %c0_6], %4 {strides = array<i32>} : memref<80x128xf32, #tpu.memory_space<vmem>>, vector<80x128xf32>,
    %c0_7 = arith.constant 0 : index
    %c1 = arith.constant 1 : index
    %c0_8 = arith.constant 0 : index
    %6 = vector.load %arg1[%c0_7, %c1, %c0_8] : memref<1x102x128xbf16, #tpu.memory_space<vmem>>, vector<1x80x128xbf16>
    %7 = vector.shape_cast %6 : vector<1x80x128xbf16> to vector<80x128xbf16>
    %c1_9 = arith.constant 1 : index
    %c0_10 = arith.constant 0 : index
    %c0_11 = arith.constant 0 : index
    %8 = vector.load %arg2[%c1_9, %c0_10, %c0_11] : memref<9x128x128xbf16, #tpu.memory_space<vmem>>, vector<1x128x128xbf16>
    %9 = vector.shape_cast %8 : vector<1x128x128xbf16> to vector<128x128xbf16>
    %cst_12 = arith.constant dense<0.000000e+00> : vector<80x128xf32>
    %10 = tpu.matmul %7, %9, %cst_12 {dimension_numbers = #tpu.dot_dimension_numbers<[1], [0], [0], [1], [0, 0, 1, 1], [], []>} : vector<80x128xbf16>, vector<128x128xbf16>, vector<80x128xf32> -> vector<80x128xf32>
    %c0_13 = arith.constant 0 : index
    %c0_14 = arith.constant 0 : index
    %11 = vector.load %arg7[%c0_13, %c0_14] : memref<80x128xf32, #tpu.memory_space<vmem>>, vector<80x128xf32>
    %12 = arith.addf %11, %10 : vector<80x128xf32>
    %c0_15 = arith.constant 0 : index
    %c0_16 = arith.constant 0 : index
    %13 = vector.load %arg7[%c0_15, %c0_16] : memref<80x128xf32, #tpu.memory_space<vmem>>, vector<80x128xf32>
    tpu.vector_store %arg7[%c0_15, %c0_16], %12 {strides = array<i32>} : memref<80x128xf32, #tpu.memory_space<vmem>>, vector<80x128xf32>,
    %c0_17 = arith.constant 0 : index
    %c2 = arith.constant 2 : index
    %c0_18 = arith.constant 0 : index
    %14 = vector.load %arg1[%c0_17, %c2, %c0_18] : memref<1x102x128xbf16, #tpu.memory_space<vmem>>, vector<1x80x128xbf16>
    %15 = vector.shape_cast %14 : vector<1x80x128xbf16> to vector<80x128xbf16>
    %c2_19 = arith.constant 2 : index
    %c0_20 = arith.constant 0 : index
    %c0_21 = arith.constant 0 : index
    %16 = vector.load %arg2[%c2_19, %c0_20, %c0_21] : memref<9x128x128xbf16, #tpu.memory_space<vmem>>, vector<1x128x128xbf16>
    %17 = vector.shape_cast %16 : vector<1x128x128xbf16> to vector<128x128xbf16>
    %cst_22 = arith.constant dense<0.000000e+00> : vector<80x128xf32>
    %18 = tpu.matmul %15, %17, %cst_22 {dimension_numbers = #tpu.dot_dimension_numbers<[1], [0], [0], [1], [0, 0, 1, 1], [], []>} : vector<80x128xbf16>, vector<128x128xbf16>, vector<80x128xf32> -> vector<80x128xf32>
    %c0_23 = arith.constant 0 : index
    %c0_24 = arith.constant 0 : index
    %19 = vector.load %arg7[%c0_23, %c0_24] : memref<80x128xf32, #tpu.memory_space<vmem>>, vector<80x128xf32>
    %20 = arith.addf %19, %18 : vector<80x128xf32>
    %c0_25 = arith.constant 0 : index
    %c0_26 = arith.constant 0 : index
    %21 = vector.load %arg7[%c0_25, %c0_26] : memref<80x128xf32, #tpu.memory_space<vmem>>, vector<80x128xf32>
    tpu.vector_store %arg7[%c0_25, %c0_26], %20 {strides = array<i32>} : memref<80x128xf32, #tpu.memory_space<vmem>>, vector<80x128xf32>,
    %c0_27 = arith.constant 0 : index
    %c10 = arith.constant 10 : index
    %c0_28 = arith.constant 0 : index
    %22 = vector.load %arg1[%c0_27, %c10, %c0_28] : memref<1x102x128xbf16, #tpu.memory_space<vmem>>, vector<1x80x128xbf16>
    %23 = vector.shape_cast %22 : vector<1x80x128xbf16> to vector<80x128xbf16>
    %c3 = arith.constant 3 : index
    %c0_29 = arith.constant 0 : index
    %c0_30 = arith.constant 0 : index
    %24 = vector.load %arg2[%c3, %c0_29, %c0_30] : memref<9x128x128xbf16, #tpu.memory_space<vmem>>, vector<1x128x128xbf16>
    %25 = vector.shape_cast %24 : vector<1x128x128xbf16> to vector<128x128xbf16>
    %cst_31 = arith.constant dense<0.000000e+00> : vector<80x128xf32>
    %26 = tpu.matmul %23, %25, %cst_31 {dimension_numbers = #tpu.dot_dimension_numbers<[1], [0], [0], [1], [0, 0, 1, 1], [], []>} : vector<80x128xbf16>, vector<128x128xbf16>, vector<80x128xf32> -> vector<80x128xf32>
    %c0_32 = arith.constant 0 : index
    %c0_33 = arith.constant 0 : index
    %27 = vector.load %arg7[%c0_32, %c0_33] : memref<80x128xf32, #tpu.memory_space<vmem>>, vector<80x128xf32>
    %28 = arith.addf %27, %26 : vector<80x128xf32>
    %c0_34 = arith.constant 0 : index
    %c0_35 = arith.constant 0 : index
    %29 = vector.load %arg7[%c0_34, %c0_35] : memref<80x128xf32, #tpu.memory_space<vmem>>, vector<80x128xf32>
    tpu.vector_store %arg7[%c0_34, %c0_35], %28 {strides = array<i32>} : memref<80x128xf32, #tpu.memory_space<vmem>>, vector<80x128xf32>,
    %c0_36 = arith.constant 0 : index
    %c11 = arith.constant 11 : index
    %c0_37 = arith.constant 0 : index
    %30 = vector.load %arg1[%c0_36, %c11, %c0_37] : memref<1x102x128xbf16, #tpu.memory_space<vmem>>, vector<1x80x128xbf16>
    %31 = vector.shape_cast %30 : vector<1x80x128xbf16> to vector<80x128xbf16>
    %c4 = arith.constant 4 : index
    %c0_38 = arith.constant 0 : index
    %c0_39 = arith.constant 0 : index
    %32 = vector.load %arg2[%c4, %c0_38, %c0_39] : memref<9x128x128xbf16, #tpu.memory_space<vmem>>, vector<1x128x128xbf16>
    %33 = vector.shape_cast %32 : vector<1x128x128xbf16> to vector<128x128xbf16>
    %cst_40 = arith.constant dense<0.000000e+00> : vector<80x128xf32>
    %34 = tpu.matmul %31, %33, %cst_40 {dimension_numbers = #tpu.dot_dimension_numbers<[1], [0], [0], [1], [0, 0, 1, 1], [], []>} : vector<80x128xbf16>, vector<128x128xbf16>, vector<80x128xf32> -> vector<80x128xf32>
    %c0_41 = arith.constant 0 : index
    %c0_42 = arith.constant 0 : index
    %35 = vector.load %arg7[%c0_41, %c0_42] : memref<80x128xf32, #tpu.memory_space<vmem>>, vector<80x128xf32>
    %36 = arith.addf %35, %34 : vector<80x128xf32>
    %c0_43 = arith.constant 0 : index
    %c0_44 = arith.constant 0 : index
    %37 = vector.load %arg7[%c0_43, %c0_44] : memref<80x128xf32, #tpu.memory_space<vmem>>, vector<80x128xf32>
    tpu.vector_store %arg7[%c0_43, %c0_44], %36 {strides = array<i32>} : memref<80x128xf32, #tpu.memory_space<vmem>>, vector<80x128xf32>,
    %c0_45 = arith.constant 0 : index
    %c12 = arith.constant 12 : index
    %c0_46 = arith.constant 0 : index
    %38 = vector.load %arg1[%c0_45, %c12, %c0_46] : memref<1x102x128xbf16, #tpu.memory_space<vmem>>, vector<1x80x128xbf16>
    %39 = vector.shape_cast %38 : vector<1x80x128xbf16> to vector<80x128xbf16>
    %c5 = arith.constant 5 : index
    %c0_47 = arith.constant 0 : index
    %c0_48 = arith.constant 0 : index
    %40 = vector.load %arg2[%c5, %c0_47, %c0_48] : memref<9x128x128xbf16, #tpu.memory_space<vmem>>, vector<1x128x128xbf16>
    %41 = vector.shape_cast %40 : vector<1x128x128xbf16> to vector<128x128xbf16>
    %cst_49 = arith.constant dense<0.000000e+00> : vector<80x128xf32>
    %42 = tpu.matmul %39, %41, %cst_49 {dimension_numbers = #tpu.dot_dimension_numbers<[1], [0], [0], [1], [0, 0, 1, 1], [], []>} : vector<80x128xbf16>, vector<128x128xbf16>, vector<80x128xf32> -> vector<80x128xf32>
    %c0_50 = arith.constant 0 : index
    %c0_51 = arith.constant 0 : index
    %43 = vector.load %arg7[%c0_50, %c0_51] : memref<80x128xf32, #tpu.memory_space<vmem>>, vector<80x128xf32>
    %44 = arith.addf %43, %42 : vector<80x128xf32>
    %c0_52 = arith.constant 0 : index
    %c0_53 = arith.constant 0 : index
    %45 = vector.load %arg7[%c0_52, %c0_53] : memref<80x128xf32, #tpu.memory_space<vmem>>, vector<80x128xf32>
    tpu.vector_store %arg7[%c0_52, %c0_53], %44 {strides = array<i32>} : memref<80x128xf32, #tpu.memory_space<vmem>>, vector<80x128xf32>,
    %c0_54 = arith.constant 0 : index
    %c20 = arith.constant 20 : index
    %c0_55 = arith.constant 0 : index
    %46 = vector.load %arg1[%c0_54, %c20, %c0_55] : memref<1x102x128xbf16, #tpu.memory_space<vmem>>, vector<1x80x128xbf16>
    %47 = vector.shape_cast %46 : vector<1x80x128xbf16> to vector<80x128xbf16>
    %c6 = arith.constant 6 : index
    %c0_56 = arith.constant 0 : index
    %c0_57 = arith.constant 0 : index
    %48 = vector.load %arg2[%c6, %c0_56, %c0_57] : memref<9x128x128xbf16, #tpu.memory_space<vmem>>, vector<1x128x128xbf16>
    %49 = vector.shape_cast %48 : vector<1x128x128xbf16> to vector<128x128xbf16>
    %cst_58 = arith.constant dense<0.000000e+00> : vector<80x128xf32>
    %50 = tpu.matmul %47, %49, %cst_58 {dimension_numbers = #tpu.dot_dimension_numbers<[1], [0], [0], [1], [0, 0, 1, 1], [], []>} : vector<80x128xbf16>, vector<128x128xbf16>, vector<80x128xf32> -> vector<80x128xf32>
    %c0_59 = arith.constant 0 : index
    %c0_60 = arith.constant 0 : index
    %51 = vector.load %arg7[%c0_59, %c0_60] : memref<80x128xf32, #tpu.memory_space<vmem>>, vector<80x128xf32>
    %52 = arith.addf %51, %50 : vector<80x128xf32>
    %c0_61 = arith.constant 0 : index
    %c0_62 = arith.constant 0 : index
    %53 = vector.load %arg7[%c0_61, %c0_62] : memref<80x128xf32, #tpu.memory_space<vmem>>, vector<80x128xf32>
    tpu.vector_store %arg7[%c0_61, %c0_62], %52 {strides = array<i32>} : memref<80x128xf32, #tpu.memory_space<vmem>>, vector<80x128xf32>,
    %c0_63 = arith.constant 0 : index
    %c21 = arith.constant 21 : index
    %c0_64 = arith.constant 0 : index
    %54 = vector.load %arg1[%c0_63, %c21, %c0_64] : memref<1x102x128xbf16, #tpu.memory_space<vmem>>, vector<1x80x128xbf16>
    %55 = vector.shape_cast %54 : vector<1x80x128xbf16> to vector<80x128xbf16>
    %c7 = arith.constant 7 : index
    %c0_65 = arith.constant 0 : index
    %c0_66 = arith.constant 0 : index
    %56 = vector.load %arg2[%c7, %c0_65, %c0_66] : memref<9x128x128xbf16, #tpu.memory_space<vmem>>, vector<1x128x128xbf16>
    %57 = vector.shape_cast %56 : vector<1x128x128xbf16> to vector<128x128xbf16>
    %cst_67 = arith.constant dense<0.000000e+00> : vector<80x128xf32>
    %58 = tpu.matmul %55, %57, %cst_67 {dimension_numbers = #tpu.dot_dimension_numbers<[1], [0], [0], [1], [0, 0, 1, 1], [], []>} : vector<80x128xbf16>, vector<128x128xbf16>, vector<80x128xf32> -> vector<80x128xf32>
    %c0_68 = arith.constant 0 : index
    %c0_69 = arith.constant 0 : index
    %59 = vector.load %arg7[%c0_68, %c0_69] : memref<80x128xf32, #tpu.memory_space<vmem>>, vector<80x128xf32>
    %60 = arith.addf %59, %58 : vector<80x128xf32>
    %c0_70 = arith.constant 0 : index
    %c0_71 = arith.constant 0 : index
    %61 = vector.load %arg7[%c0_70, %c0_71] : memref<80x128xf32, #tpu.memory_space<vmem>>, vector<80x128xf32>
    tpu.vector_store %arg7[%c0_70, %c0_71], %60 {strides = array<i32>} : memref<80x128xf32, #tpu.memory_space<vmem>>, vector<80x128xf32>,
    %c0_72 = arith.constant 0 : index
    %c22 = arith.constant 22 : index
    %c0_73 = arith.constant 0 : index
    %62 = vector.load %arg1[%c0_72, %c22, %c0_73] : memref<1x102x128xbf16, #tpu.memory_space<vmem>>, vector<1x80x128xbf16>
    %63 = vector.shape_cast %62 : vector<1x80x128xbf16> to vector<80x128xbf16>
    %c8 = arith.constant 8 : index
    %c0_74 = arith.constant 0 : index
    %c0_75 = arith.constant 0 : index
    %64 = vector.load %arg2[%c8, %c0_74, %c0_75] : memref<9x128x128xbf16, #tpu.memory_space<vmem>>, vector<1x128x128xbf16>
    %65 = vector.shape_cast %64 : vector<1x128x128xbf16> to vector<128x128xbf16>
    %cst_76 = arith.constant dense<0.000000e+00> : vector<80x128xf32>
    %66 = tpu.matmul %63, %65, %cst_76 {dimension_numbers = #tpu.dot_dimension_numbers<[1], [0], [0], [1], [0, 0, 1, 1], [], []>} : vector<80x128xbf16>, vector<128x128xbf16>, vector<80x128xf32> -> vector<80x128xf32>
    %c0_77 = arith.constant 0 : index
    %c0_78 = arith.constant 0 : index
    %67 = vector.load %arg7[%c0_77, %c0_78] : memref<80x128xf32, #tpu.memory_space<vmem>>, vector<80x128xf32>
    %68 = arith.addf %67, %66 : vector<80x128xf32>
    %c0_79 = arith.constant 0 : index
    %c0_80 = arith.constant 0 : index
    %69 = vector.load %arg7[%c0_79, %c0_80] : memref<80x128xf32, #tpu.memory_space<vmem>>, vector<80x128xf32>
    tpu.vector_store %arg7[%c0_79, %c0_80], %68 {strides = array<i32>} : memref<80x128xf32, #tpu.memory_space<vmem>>, vector<80x128xf32>,
    %c0_81 = arith.constant 0 : index
    %c0_82 = arith.constant 0 : index
    %70 = vector.load %arg7[%c0_81, %c0_82] : memref<80x128xf32, #tpu.memory_space<vmem>>, vector<80x128xf32>
    %71 = arith.truncf %70 : vector<80x128xf32> to vector<80x128xbf16>
    %c0_83 = arith.constant 0 : index
    %c0_84 = arith.constant 0 : index
    %c0_85 = arith.constant 0 : index
    %72 = vector.load %arg4[%c0_83, %c0_84, %c0_85] : memref<1x80x128xbf16, #tpu.memory_space<vmem>>, vector<1x80x128xbf16>
    %73 = vector.shape_cast %72 : vector<1x80x128xbf16> to vector<80x128xbf16>
    %74 = vector.shape_cast %71 : vector<80x128xbf16> to vector<1x80x128xbf16>
    tpu.vector_store %arg4[%c0_83, %c0_84, %c0_85], %74 {strides = array<i32>} : memref<1x80x128xbf16, #tpu.memory_space<vmem>>, vector<1x80x128xbf16>,
    %c0_86 = arith.constant 0 : index
    %c0_87 = arith.constant 0 : index
    %75 = vector.load %arg3[%c0_86, %c0_87] : memref<80x1xf32, #tpu.memory_space<vmem>>, vector<80x1xf32>
    %76 = vector.broadcast %75 : vector<80x1xf32> to vector<80x128xf32>
    %77 = arith.mulf %70, %76 : vector<80x128xf32>
    %cst_88 = arith.constant dense<0.000000e+00> : vector<128xf32>
    %78 = vector.multi_reduction <add>, %77, %cst_88 [0] : vector<80x128xf32> to vector<128xf32>
    %79 = vector.shape_cast %78 : vector<128xf32> to vector<1x128xf32>
    %c0_89 = arith.constant 0 : index
    %c0_90 = arith.constant 0 : index
    %c0_91 = arith.constant 0 : index
    %80 = vector.load %arg5[%c0_89, %c0_90, %c0_91] : memref<1x1x128xf32, #tpu.memory_space<vmem>>, vector<1x1x128xf32>
    %81 = vector.shape_cast %80 : vector<1x1x128xf32> to vector<1x128xf32>
    %82 = vector.shape_cast %79 : vector<1x128xf32> to vector<1x1x128xf32>
    tpu.vector_store %arg5[%c0_89, %c0_90, %c0_91], %82 {strides = array<i32>} : memref<1x1x128xf32, #tpu.memory_space<vmem>>, vector<1x1x128xf32>,
    %83 = arith.mulf %70, %70 : vector<80x128xf32>
    %84 = vector.broadcast %75 : vector<80x1xf32> to vector<80x128xf32>
    %85 = arith.mulf %83, %84 : vector<80x128xf32>
    %cst_92 = arith.constant dense<0.000000e+00> : vector<128xf32>
    %86 = vector.multi_reduction <add>, %85, %cst_92 [0] : vector<80x128xf32> to vector<128xf32>
    %87 = vector.shape_cast %86 : vector<128xf32> to vector<1x128xf32>
    %c0_93 = arith.constant 0 : index
    %c0_94 = arith.constant 0 : index
    %c0_95 = arith.constant 0 : index
    %88 = vector.load %arg6[%c0_93, %c0_94, %c0_95] : memref<1x1x128xf32, #tpu.memory_space<vmem>>, vector<1x1x128xf32>
    %89 = vector.shape_cast %88 : vector<1x1x128xf32> to vector<1x128xf32>
    %90 = vector.shape_cast %87 : vector<1x128xf32> to vector<1x1x128xf32>
    tpu.vector_store %arg6[%c0_93, %c0_94, %c0_95], %90 {strides = array<i32>} : memref<1x1x128xf32, #tpu.memory_space<vmem>>, vector<1x1x128xf32>,
    return
  }
  func.func @transform_0(%arg0: i32) -> (i32, i32, i32) {
    %c0_i32 = arith.constant 0 : i32
    %c0_i32_0 = arith.constant 0 : i32
    %c0_i32_1 = arith.constant 0 : i32
    return %arg0, %c0_i32, %c0_i32_0 : i32, i32, i32
  }
  func.func @transform_1(%arg0: i32) -> (i32, i32, i32) {
    %c0_i32 = arith.constant 0 : i32
    %c0_i32_0 = arith.constant 0 : i32
    %c0_i32_1 = arith.constant 0 : i32
    %c0_i32_2 = arith.constant 0 : i32
    return %c0_i32, %c0_i32_0, %c0_i32_1 : i32, i32, i32
  }
  func.func @transform_2(%arg0: i32) -> (i32, i32) {
    %c0_i32 = arith.constant 0 : i32
    %c0_i32_0 = arith.constant 0 : i32
    %c0_i32_1 = arith.constant 0 : i32
    return %c0_i32, %c0_i32_0 : i32, i32
  }
  func.func @transform_3(%arg0: i32) -> (i32, i32, i32) {
    %c0_i32 = arith.constant 0 : i32
    %c0_i32_0 = arith.constant 0 : i32
    %c0_i32_1 = arith.constant 0 : i32
    return %arg0, %c0_i32, %c0_i32_0 : i32, i32, i32
  }
  func.func @transform_4(%arg0: i32) -> (i32, i32, i32) {
    %c0_i32 = arith.constant 0 : i32
    %c0_i32_0 = arith.constant 0 : i32
    %c0_i32_1 = arith.constant 0 : i32
    return %arg0, %c0_i32, %c0_i32_0 : i32, i32, i32
  }
  func.func @transform_5(%arg0: i32) -> (i32, i32, i32) {
    %c0_i32 = arith.constant 0 : i32
    %c0_i32_0 = arith.constant 0 : i32
    %c0_i32_1 = arith.constant 0 : i32
    return %arg0, %c0_i32, %c0_i32_0 : i32, i32, i32
  }
}

</mosaic_0001>

<llo_original>
// kernel: _lambda_.6
$region0: #{_lambda_.6}
  #allocation0 [shape = 'u32[]', space=smem, size = 0x4, offset = 0x4, fixed_abs, tag = 'smem constant byte address 0x4 - core index']
  #allocation1 [shape = 'u32[72,128]{1,0:T(1,128)}', space=vmem, size = 0x9000, scoped, tag = 'internal scratch']
  #allocation2 [shape = 'f32[80,128]{1,0:T(8,128)}', space=vmem, size = 0xa000, scoped, tag = 'scratch operand']
  %s0 = inlined_call_operand.vmem [shape: bf16[2,80,128], index: 0, kind: input, shape index: {}]
  %s1 = inlined_call_operand.vmem [shape: bf16[1,128,128], index: 1, kind: input, shape index: {}]
  %s2 = inlined_call_operand.vmem [shape: f32[80,1], index: 2, kind: input, shape index: {}]
  %s3 = inlined_call_operand.vmem [shape: bf16[2,80,128], index: 3, kind: output, shape index: {0}]
  %s4 = inlined_call_operand.vmem [shape: f32[2,1,128], index: 4, kind: output, shape index: {1}]
  %s5 = inlined_call_operand.vmem [shape: f32[2,1,128], index: 5, kind: output, shape index: {2}]
  %6 = xla_tuple %s3, %s4, %s5
  %s7 = sld [smem:[#allocation0]]
  $region61: #{_lambda_.6} parent=0
    _
  %s9 = ssub.s32 1, %s7
  %s10 = scalar_select 0, %s9, %s7
  loop: start=0, step=1, limit=4
  $region2: #{_lambda_.6} parent=0 // loop_pre_header
    _
  $region3: #{_lambda_.6} parent=0 // loop_header
    %s12 = sphi 0, %s16
    %p13 = scmp.ge.s32.totalorder %s12, 4
    %s22 = sphi 0, %s24
    %s25 = sphi 0, %s22
    %s26 = sphi 0, %s25
    %s42 = sphi 0, %s26
    %s46 = sphi 0, %s46
    %s48 = sphi 0, %s46
    %s49 = sphi 0, %s48
    %s63 = sphi 0, %s49
    %s67 = sphi 0, %s67
    %s69 = sphi 0, %s67
    %s70 = sphi 0, %s69
    %s84 = sphi 0, %s70
    %s90 = sphi 0, %s92
    %s93 = sphi 0, %s90
    %s94 = sphi 0, %s93
    %s110 = sphi 0, %s94
    %s116 = sphi 0, %s118
    %s119 = sphi 0, %s116
    %s120 = sphi 0, %s119
    %s136 = sphi 0, %s120
    %s142 = sphi 0, %s144
    %s145 = sphi 0, %s142
    %s146 = sphi 0, %s145
    %s162 = sphi 0, %s146
  $region4: #{_lambda_.6} parent=0 // loop_header_branch
    %15 = sbr.rel (%p13) target = $region8
  $region5: #{_lambda_.6} parent=0 // loop_body
    %s17 = ssub.s32 %s12, 1
    %s18 = ssub.s32 %s12, 2
    %s19 = sadd.s32 %s12, 1
    %s20 = ssub.s32 %s12, %s19
    %p21 = scmp.eq.s32.totalorder %s20, 0
    %s23 = sadd.s32 %s22, 1
    %s24 = scalar_select %p21, %s22, %s23
    %p27 = pneg %p21
    %p28 = scmp.eq.s32.totalorder %s12, 1
    %p29 = por %p27, %p28
    %p30 = scmp.ne.s32.totalorder %s22, %s25
    %p31 = scmp.eq.s32.totalorder %s12, 0
    %p32 = por %p30, %p31
    %p33 = scmp.ne.s32.totalorder %s22, %s25
    %p34 = scmp.eq.s32.totalorder %s17, 1
    %p35 = por %p33, %p34
    %p36 = scmp.ne.s32.totalorder %s25, %s26
    %p37 = scmp.eq.s32.totalorder %s17, 0
    %p38 = por %p36, %p37
    %p39 = scmp.ne.s32.totalorder %s25, %s26
    %p40 = scmp.eq.s32.totalorder %s18, 1
    %p41 = por %p39, %p40
    %p43 = scmp.ne.s32.totalorder %s26, %s42
    %p44 = scmp.eq.s32.totalorder %s18, 0
    %p45 = por %p43, %p44
    %s47 = sadd.s32 %s46, 1
    %p50 = scmp.eq.s32.totalorder %s12, 1
    %p51 = scmp.ne.s32.totalorder %s46, %s48
    %p52 = scmp.eq.s32.totalorder %s12, 0
    %p53 = por %p51, %p52
    %p54 = scmp.ne.s32.totalorder %s46, %s48
    %p55 = scmp.eq.s32.totalorder %s17, 1
    %p56 = por %p54, %p55
    %p57 = scmp.ne.s32.totalorder %s48, %s49
    %p58 = scmp.eq.s32.totalorder %s17, 0
    %p59 = por %p57, %p58
    %p60 = scmp.ne.s32.totalorder %s48, %s49
    %p61 = scmp.eq.s32.totalorder %s18, 1
    %p62 = por %p60, %p61
    %p64 = scmp.ne.s32.totalorder %s49, %s63
    %p65 = scmp.eq.s32.totalorder %s18, 0
    %p66 = por %p64, %p65
    %s68 = sadd.s32 %s67, 1
    %p71 = scmp.eq.s32.totalorder %s12, 1
    %p72 = scmp.ne.s32.totalorder %s67, %s69
    %p73 = scmp.eq.s32.totalorder %s12, 0
    %p74 = por %p72, %p73
    %p75 = scmp.ne.s32.totalorder %s67, %s69
    %p76 = scmp.eq.s32.totalorder %s17, 1
    %p77 = por %p75, %p76
    %p78 = scmp.ne.s32.totalorder %s69, %s70
    %p79 = scmp.eq.s32.totalorder %s17, 0
    %p80 = por %p78, %p79
    %p81 = scmp.ne.s32.totalorder %s69, %s70
    %p82 = scmp.eq.s32.totalorder %s18, 1
    %p83 = por %p81, %p82
    %p85 = scmp.ne.s32.totalorder %s70, %s84
    %p86 = scmp.eq.s32.totalorder %s18, 0
    %p87 = por %p85, %p86
    %s88 = ssub.s32 %s12, %s19
    %p89 = scmp.eq.s32.totalorder %s88, 0
    %s91 = sadd.s32 %s90, 1
    %s92 = scalar_select %p89, %s90, %s91
    %p95 = pneg %p89
    %p96 = scmp.eq.s32.totalorder %s12, 1
    %p97 = por %p95, %p96
    %p98 = scmp.ne.s32.totalorder %s90, %s93
    %p99 = scmp.eq.s32.totalorder %s12, 0
    %p100 = por %p98, %p99
    %p101 = scmp.ne.s32.totalorder %s90, %s93
    %p102 = scmp.eq.s32.totalorder %s17, 1
    %p103 = por %p101, %p102
    %p104 = scmp.ne.s32.totalorder %s93, %s94
    %p105 = scmp.eq.s32.totalorder %s17, 0
    %p106 = por %p104, %p105
    %p107 = scmp.ne.s32.totalorder %s93, %s94
    %p108 = scmp.eq.s32.totalorder %s18, 1
    %p109 = por %p107, %p108
    %p111 = scmp.ne.s32.totalorder %s94, %s110
    %p112 = scmp.eq.s32.totalorder %s18, 0
    %p113 = por %p111, %p112
    %s114 = ssub.s32 %s12, %s19
    %p115 = scmp.eq.s32.totalorder %s114, 0
    %s117 = sadd.s32 %s116, 1
    %s118 = scalar_select %p115, %s116, %s117
    %p121 = pneg %p115
    %p122 = scmp.eq.s32.totalorder %s12, 1
    %p123 = por %p121, %p122
    %p124 = scmp.ne.s32.totalorder %s116, %s119
    %p125 = scmp.eq.s32.totalorder %s12, 0
    %p126 = por %p124, %p125
    %p127 = scmp.ne.s32.totalorder %s116, %s119
    %p128 = scmp.eq.s32.totalorder %s17, 1
    %p129 = por %p127, %p128
    %p130 = scmp.ne.s32.totalorder %s119, %s120
    %p131 = scmp.eq.s32.totalorder %s17, 0
    %p132 = por %p130, %p131
    %p133 = scmp.ne.s32.totalorder %s119, %s120
    %p134 = scmp.eq.s32.totalorder %s18, 1
    %p135 = por %p133, %p134
    %p137 = scmp.ne.s32.totalorder %s120, %s136
    %p138 = scmp.eq.s32.totalorder %s18, 0
    %p139 = por %p137, %p138
    %s140 = ssub.s32 %s12, %s19
    %p141 = scmp.eq.s32.totalorder %s140, 0
    %s143 = sadd.s32 %s142, 1
    %s144 = scalar_select %p141, %s142, %s143
    %p147 = pneg %p141
    %p148 = scmp.eq.s32.totalorder %s12, 1
    %p149 = por %p147, %p148
    %p150 = scmp.ne.s32.totalorder %s142, %s145
    %p151 = scmp.eq.s32.totalorder %s12, 0
    %p152 = por %p150, %p151
    %p153 = scmp.ne.s32.totalorder %s142, %s145
    %p154 = scmp.eq.s32.totalorder %s17, 1
    %p155 = por %p153, %p154
    %p156 = scmp.ne.s32.totalorder %s145, %s146
    %p157 = scmp.eq.s32.totalorder %s17, 0
    %p158 = por %p156, %p157
    %p159 = scmp.ne.s32.totalorder %s145, %s146
    %p160 = scmp.eq.s32.totalorder %s18, 1
    %p161 = por %p159, %p160
    %p163 = scmp.ne.s32.totalorder %s146, %s162
    %p164 = scmp.eq.s32.totalorder %s18, 0
    %p165 = por %p163, %p164
    %p166 = scmp.le.s32.totalorder 1, %s12
    %p167 = scmp.lt.s32.totalorder %s12, 3
    %p168 = pnand %p166, %p167
    %p169 = pneg %p168
    // Predicated region
    $region9: #{_lambda_.6} parent=5 // pred_check
      _
    $region10: #{_lambda_.6} parent=5 // pred_check_branch
      %171 = sbr.rel (%p168) target = $region12
    $region11: #{_lambda_.6} parent=5 // pred_region
      %s172 = ssub.s32 %s12, 1
      // Predicated region
      $region13: #{_lambda_.6} parent=11 // pred_check
        %p173 = pneg %p59
      $region14: #{_lambda_.6} parent=11 // pred_check_branch
        %175 = sbr.rel (%p173) target = $region16
      $region15: #{_lambda_.6} parent=11 // pred_region
        _
      $region16: #{_lambda_.6} parent=11 // pred_fallthru
        _
      // Predicated region
      $region17: #{_lambda_.6} parent=11 // pred_check
        %p176 = pneg %p80
      $region18: #{_lambda_.6} parent=11 // pred_check_branch
        %178 = sbr.rel (%p176) target = $region20
      $region19: #{_lambda_.6} parent=11 // pred_region
        _
      $region20: #{_lambda_.6} parent=11 // pred_fallthru
        _
    $region12: #{_lambda_.6} parent=5 // pred_fallthru
      _
    %p179 = scmp.lt.s32.totalorder %s12, 2
    // Predicated region
    $region21: #{_lambda_.6} parent=5 // pred_check
      %p180 = pneg %p179
    $region22: #{_lambda_.6} parent=5 // pred_check_branch
      %182 = sbr.rel (%p180) target = $region24
    $region23: #{_lambda_.6} parent=5 // pred_region
      // Predicated region
      $region25: #{_lambda_.6} parent=23 // pred_check
        %p183 = pneg %p32
      $region26: #{_lambda_.6} parent=23 // pred_check_branch
        %185 = sbr.rel (%p183) target = $region28
      $region27: #{_lambda_.6} parent=23 // pred_region
        %p186 = scmp.lt.s32.totalorder %s12, 1
        %s187 = scalar_select %p186, %s12, 1
        %s188 = smul.addr %s187, 10
        %s189 = smul.addr %s188, 4
        %s190 = scalar_lea.vmem %s0, %s189
      $region28: #{_lambda_.6} parent=23 // pred_fallthru
        _
    $region24: #{_lambda_.6} parent=5 // pred_fallthru
      _
    %p191 = scmp.le.s32.totalorder 1, %s12
    %p192 = scmp.lt.s32.totalorder %s12, 3
    %p193 = pnand %p191, %p192
    %p194 = pneg %p193
    // Predicated region
    $region29: #{_lambda_.6} parent=5 // pred_check
      _
    $region30: #{_lambda_.6} parent=5 // pred_check_branch
      %196 = sbr.rel (%p193) target = $region32
    $region31: #{_lambda_.6} parent=5 // pred_region
      %s197 = ssub.s32 %s12, 1
      %p198 = scmp.lt.s32.totalorder %s17, 1
      %s199 = scalar_select %p198, %s17, 1
      %s200 = smul.addr %s199, 10
      %s201 = smul.addr %s200, 4
      %s202 = scalar_lea.vmem %s0, %s201
      %p203 = pneg %p38
      %p204 = pneg %p35
      %p205 = pneg %p59
      %p206 = pneg %p56
      %p207 = pneg %p80
      %p208 = pneg %p77
      %p209 = pneg %p106
      %p210 = pneg %p103
      %p211 = scmp.lt.s32.totalorder %s17, 1
      %s212 = scalar_select %p211, %s17, 1
      %s213 = smul.addr %s212, 10
      %s214 = smul.addr %s213, 4
      %s215 = scalar_lea.vmem %s3, %s214
      %p216 = pneg %p132
      %p217 = pneg %p129
      %p218 = scmp.lt.s32.totalorder %s17, 1
      %s219 = scalar_select %p218, %s17, 1
      %s220 = scalar_lea.vmem %s4, %s219
      %p221 = pneg %p158
      %p222 = pneg %p155
      %p223 = scmp.lt.s32.totalorder %s17, 1
      %s224 = scalar_select %p223, %s17, 1
      %s225 = scalar_lea.vmem %s5, %s224
      %p226 = scmp.lt.s32.totalorder %s17, 1
      %s227 = scalar_select %p226, %s17, 1
      %s228 = smul.addr %s227, 10
      %s229 = smul.addr %s228, 4
      %s230 = scalar_lea.vmem %s0, %s229
      %p231 = scmp.lt.s32.totalorder %s17, 1
      %s232 = scalar_select %p231, %s17, 1
      %s233 = smul.addr %s232, 10
      %s234 = smul.addr %s233, 4
      %s235 = scalar_lea.vmem %s3, %s234
      %p236 = scmp.lt.s32.totalorder %s17, 1
      %s237 = scalar_select %p236, %s17, 1
      %s238 = scalar_lea.vmem %s4, %s237
      %p239 = scmp.lt.s32.totalorder %s17, 1
      %s240 = scalar_select %p239, %s17, 1
      %s241 = scalar_lea.vmem %s5, %s240
      %v242 = vld [vmem:[%s230] sm:$0xf]
      %v243 = vld [vmem:[%s230 + $0x4] sm:$0xf]
      %v244 = vld [vmem:[%s230 + $0x8] sm:$0xf]
      %v245 = vld [vmem:[%s230 + $0xc] sm:$0xf]
      %v246 = vld [vmem:[%s230 + $0x10] sm:$0xf]
      %v247 = vld [vmem:[%s230 + $0x14] sm:$0xf]
      %v248 = vld [vmem:[%s230 + $0x18] sm:$0xf]
      %v249 = vld [vmem:[%s230 + $0x1c] sm:$0xf]
      %v250 = vld [vmem:[%s230 + $0x20] sm:$0xf]
      %v251 = vld [vmem:[%s230 + $0x24] sm:$0xf]
      %v252 = vld [vmem:[%s1] sm:$0xf]
      %v253 = vld [vmem:[%s1 + $0x4] sm:$0xf]
      %v254 = vld [vmem:[%s1 + $0x8] sm:$0xf]
      %v255 = vld [vmem:[%s1 + $0xc] sm:$0xf]
      %v256 = vld [vmem:[%s1 + $0x10] sm:$0xf]
      %v257 = vld [vmem:[%s1 + $0x14] sm:$0xf]
      %v258 = vld [vmem:[%s1 + $0x18] sm:$0xf]
      %v259 = vld [vmem:[%s1 + $0x1c] sm:$0xf]
      %v260 = vld [vmem:[%s1 + $0x20] sm:$0xf]
      %v261 = vld [vmem:[%s1 + $0x24] sm:$0xf]
      %v262 = vld [vmem:[%s1 + $0x28] sm:$0xf]
      %v263 = vld [vmem:[%s1 + $0x2c] sm:$0xf]
      %v264 = vld [vmem:[%s1 + $0x30] sm:$0xf]
      %v265 = vld [vmem:[%s1 + $0x34] sm:$0xf]
      %v266 = vld [vmem:[%s1 + $0x38] sm:$0xf]
      %v267 = vld [vmem:[%s1 + $0x3c] sm:$0xf]
      %v278 = vunpack.c.l.b16 %v242
      %v279 = vunpack.c.l.b16 %v243
      %v280 = vunpack.c.l.b16 %v244
      %v281 = vunpack.c.l.b16 %v245
      %v282 = vunpack.c.l.b16 %v246
      %v283 = vunpack.c.l.b16 %v247
      %v284 = vunpack.c.l.b16 %v248
      %v285 = vunpack.c.l.b16 %v249
      %v286 = vunpack.c.l.b16 %v250
      %v287 = vunpack.c.l.b16 %v251
      %v288 = vpack.c.b16 %v279, %v278
      %v289 = vpack.c.b16 %v281, %v280
      %v290 = vpack.c.b16 %v283, %v282
      %v291 = vpack.c.b16 %v285, %v284
      %v292 = vpack.c.b16 %v287, %v286
      %v314 = vunpack.c.l.b16 %v252
      %v315 = vunpack.c.l.b16 %v253
      %v316 = vunpack.c.l.b16 %v254
      %v317 = vunpack.c.l.b16 %v255
      %v318 = vunpack.c.l.b16 %v256
      %v319 = vunpack.c.l.b16 %v257
      %v320 = vunpack.c.l.b16 %v258
      %v321 = vunpack.c.l.b16 %v259
      %v322 = vunpack.c.l.b16 %v260
      %v323 = vunpack.c.l.b16 %v261
      %v324 = vunpack.c.l.b16 %v262
      %v325 = vunpack.c.l.b16 %v263
      %v326 = vunpack.c.l.b16 %v264
      %v327 = vunpack.c.l.b16 %v265
      %v328 = vunpack.c.l.b16 %v266
      %v329 = vunpack.c.l.b16 %v267
      %v330 = vpack.c.b16 %v315, %v314
      %v331 = vpack.c.b16 %v317, %v316
      %v332 = vpack.c.b16 %v319, %v318
      %v333 = vpack.c.b16 %v321, %v320
      %v334 = vpack.c.b16 %v323, %v322
      %v335 = vpack.c.b16 %v325, %v324
      %v336 = vpack.c.b16 %v327, %v326
      %v337 = vpack.c.b16 %v329, %v328
      %346 = vmatpush.bf16.msra.mxu0 %v337
      %347 = vmatpush.bf16.msra.mxu0 %v336
      %348 = vmatpush.bf16.msra.mxu0 %v335
      %349 = vmatpush.bf16.msra.mxu0 %v334
      %350 = vmatpush.bf16.msra.mxu0 %v333
      %351 = vmatpush.bf16.msra.mxu0 %v332
      %352 = vmatpush.bf16.msra.mxu0 %v331
      %353 = vmatpush.bf16.msra.mxu0 %v330
      %354 = vmatmul.bf16.gmra.mxu0 %v288
      %v355 = vpop.f32.mrf.mxu0
      %v356 = vadd.f32 0.0, %v355
      %v357 = vpop.f32.mrf.mxu0
      %v358 = vadd.f32 0.0, %v357
      %359 = vmatmul.bf16.gmra.mxu0 %v289
      %v360 = vpop.f32.mrf.mxu0
      %v361 = vadd.f32 0.0, %v360
      %v362 = vpop.f32.mrf.mxu0
      %v363 = vadd.f32 0.0, %v362
      %364 = vmatmul.bf16.gmra.mxu0 %v290
      %v365 = vpop.f32.mrf.mxu0
      %v366 = vadd.f32 0.0, %v365
      %v367 = vpop.f32.mrf.mxu0
      %v368 = vadd.f32 0.0, %v367
      %369 = vmatmul.bf16.gmra.mxu0 %v291
      %v370 = vpop.f32.mrf.mxu0
      %v371 = vadd.f32 0.0, %v370
      %v372 = vpop.f32.mrf.mxu0
      %v373 = vadd.f32 0.0, %v372
      %374 = vmatmul.bf16.gmra.mxu0 %v292
      %v375 = vpop.f32.mrf.mxu0
      %v376 = vadd.f32 0.0, %v375
      %v377 = vpop.f32.mrf.mxu0
      %v378 = vadd.f32 0.0, %v377
      %379 = vdwg.mxu0
      %380 = vst [vmem:[#allocation2] sm:$0xff] %v356
      %381 = vst [vmem:[#allocation2 + $0x8] sm:$0xff] %v358
      %382 = vst [vmem:[#allocation2 + $0x10] sm:$0xff] %v361
      %383 = vst [vmem:[#allocation2 + $0x18] sm:$0xff] %v363
      %384 = vst [vmem:[#allocation2 + $0x20] sm:$0xff] %v366
      %385 = vst [vmem:[#allocation2 + $0x28] sm:$0xff] %v368
      %386 = vst [vmem:[#allocation2 + $0x30] sm:$0xff] %v371
      %387 = vst [vmem:[#allocation2 + $0x38] sm:$0xff] %v373
      %388 = vst [vmem:[#allocation2 + $0x40] sm:$0xff] %v376
      %389 = vst [vmem:[#allocation2 + $0x48] sm:$0xff] %v378
      %v390 = vld [vmem:[#allocation2] sm:$0xff]
      %v391 = vld [vmem:[#allocation2 + $0x8] sm:$0xff]
      %v392 = vld [vmem:[#allocation2 + $0x10] sm:$0xff]
      %v393 = vld [vmem:[#allocation2 + $0x18] sm:$0xff]
      %v394 = vld [vmem:[#allocation2 + $0x20] sm:$0xff]
      %v395 = vld [vmem:[#allocation2 + $0x28] sm:$0xff]
      %v396 = vld [vmem:[#allocation2 + $0x30] sm:$0xff]
      %v397 = vld [vmem:[#allocation2 + $0x38] sm:$0xff]
      %v398 = vld [vmem:[#allocation2 + $0x40] sm:$0xff]
      %v399 = vld [vmem:[#allocation2 + $0x48] sm:$0xff]
      %v400 = vpack.c.bf16 %v390, %v390
      %v401 = vpack.c.bf16 %v391, %v391
      %v402 = vpack.c.bf16 %v392, %v392
      %v403 = vpack.c.bf16 %v393, %v393
      %v404 = vpack.c.bf16 %v394, %v394
      %v405 = vpack.c.bf16 %v395, %v395
      %v406 = vpack.c.bf16 %v396, %v396
      %v407 = vpack.c.bf16 %v397, %v397
      %v408 = vpack.c.bf16 %v398, %v398
      %v409 = vpack.c.bf16 %v399, %v399
      %410 = vst [vmem:[%s235] sm:$0xf] %v400
      %411 = vst [vmem:[%s235 + $0x4] sm:$0xf] %v401
      %412 = vst [vmem:[%s235 + $0x8] sm:$0xf] %v402
      %413 = vst [vmem:[%s235 + $0xc] sm:$0xf] %v403
      %414 = vst [vmem:[%s235 + $0x10] sm:$0xf] %v404
      %415 = vst [vmem:[%s235 + $0x14] sm:$0xf] %v405
      %416 = vst [vmem:[%s235 + $0x18] sm:$0xf] %v406
      %417 = vst [vmem:[%s235 + $0x1c] sm:$0xf] %v407
      %418 = vst [vmem:[%s235 + $0x20] sm:$0xf] %v408
      %419 = vst [vmem:[%s235 + $0x24] sm:$0xf] %v409
      %v420 = vld [vmem:[%s2] sm:$0xff]
      %v421 = vld [vmem:[%s2 + $0x8] sm:$0xff]
      %v422 = vld [vmem:[%s2 + $0x10] sm:$0xff]
      %v423 = vld [vmem:[%s2 + $0x18] sm:$0xff]
      %v424 = vld [vmem:[%s2 + $0x20] sm:$0xff]
      %v425 = vld [vmem:[%s2 + $0x28] sm:$0xff]
      %v426 = vld [vmem:[%s2 + $0x30] sm:$0xff]
      %v427 = vld [vmem:[%s2 + $0x38] sm:$0xff]
      %v428 = vld [vmem:[%s2 + $0x40] sm:$0xff]
      %v429 = vld [vmem:[%s2 + $0x48] sm:$0xff]
      %431 = vset.pattern.permute.xlu0 0
      %432 = vperm.xlu0 %431, %v420
      %v433 = vpop.permute.xlu0 %432
      %436 = vset.pattern.permute.xlu0 0
      %437 = vperm.xlu0 %436, %v421
      %v438 = vpop.permute.xlu0 %437
      %441 = vset.pattern.permute.xlu0 0
      %442 = vperm.xlu0 %441, %v422
      %v443 = vpop.permute.xlu0 %442
      %446 = vset.pattern.permute.xlu0 0
      %447 = vperm.xlu0 %446, %v423
      %v448 = vpop.permute.xlu0 %447
      %451 = vset.pattern.permute.xlu0 0
      %452 = vperm.xlu0 %451, %v424
      %v453 = vpop.permute.xlu0 %452
      %456 = vset.pattern.permute.xlu0 0
      %457 = vperm.xlu0 %456, %v425
      %v458 = vpop.permute.xlu0 %457
      %461 = vset.pattern.permute.xlu0 0
      %462 = vperm.xlu0 %461, %v426
      %v463 = vpop.permute.xlu0 %462
      %466 = vset.pattern.permute.xlu0 0
      %467 = vperm.xlu0 %466, %v427
      %v468 = vpop.permute.xlu0 %467
      %471 = vset.pattern.permute.xlu0 0
      %472 = vperm.xlu0 %471, %v428
      %v473 = vpop.permute.xlu0 %472
      %476 = vset.pattern.permute.xlu0 0
      %477 = vperm.xlu0 %476, %v429
      %v478 = vpop.permute.xlu0 %477
      %v480 = vmul.f32 %v390, %v433
      %v481 = vmul.f32 %v391, %v438
      %v482 = vmul.f32 %v392, %v443
      %v483 = vmul.f32 %v393, %v448
      %v484 = vmul.f32 %v394, %v453
      %v485 = vmul.f32 %v395, %v458
      %v486 = vmul.f32 %v396, %v463
      %v487 = vmul.f32 %v397, %v468
      %v488 = vmul.f32 %v398, %v473
      %v489 = vmul.f32 %v399, %v478
      %v490 = vadd.f32 %v480, %v481
      %v491 = vadd.f32 %v490, %v482
      %v492 = vadd.f32 %v491, %v483
      %v493 = vadd.f32 %v492, %v484
      %v494 = vadd.f32 %v493, %v485
      %v495 = vadd.f32 %v494, %v486
      %v496 = vadd.f32 %v495, %v487
      %v497 = vadd.f32 %v496, %v488
      %v498 = vadd.f32 %v497, %v489
      %v499 = vrot.slane %v498, 4
      %v500 = vadd.f32 %v498, %v499
      %v501 = vrot.slane %v500, 2
      %v502 = vadd.f32 %v500, %v501
      %v503 = vrot.slane %v502, 1
      %v504 = vadd.f32 %v502, %v503
      %505 = vst [vmem:[%s238] sm:$0x1] %v504
      %v506 = vmul.f32 %v390, %v390
      %v507 = vmul.f32 %v391, %v391
      %v508 = vmul.f32 %v392, %v392
      %v509 = vmul.f32 %v393, %v393
      %v510 = vmul.f32 %v394, %v394
      %v511 = vmul.f32 %v395, %v395
      %v512 = vmul.f32 %v396, %v396
      %v513 = vmul.f32 %v397, %v397
      %v514 = vmul.f32 %v398, %v398
      %v515 = vmul.f32 %v399, %v399
      %v516 = vmul.f32 %v506, %v433
      %v517 = vmul.f32 %v507, %v438
      %v518 = vmul.f32 %v508, %v443
      %v519 = vmul.f32 %v509, %v448
      %v520 = vmul.f32 %v510, %v453
      %v521 = vmul.f32 %v511, %v458
      %v522 = vmul.f32 %v512, %v463
      %v523 = vmul.f32 %v513, %v468
      %v524 = vmul.f32 %v514, %v473
      %v525 = vmul.f32 %v515, %v478
      %v526 = vadd.f32 %v516, %v517
      %v527 = vadd.f32 %v526, %v518
      %v528 = vadd.f32 %v527, %v519
      %v529 = vadd.f32 %v528, %v520
      %v530 = vadd.f32 %v529, %v521
      %v531 = vadd.f32 %v530, %v522
      %v532 = vadd.f32 %v531, %v523
      %v533 = vadd.f32 %v532, %v524
      %v534 = vadd.f32 %v533, %v525
      %v535 = vrot.slane %v534, 4
      %v536 = vadd.f32 %v534, %v535
      %v537 = vrot.slane %v536, 2
      %v538 = vadd.f32 %v536, %v537
      %v539 = vrot.slane %v538, 1
      %v540 = vadd.f32 %v538, %v539
      %541 = vst [vmem:[%s241] sm:$0x1] %v540
      %p542 = scmp.lt.s32.totalorder %s17, 1
      %s543 = scalar_select %p542, %s17, 1
      %s544 = smul.addr %s543, 10
      %s545 = smul.addr %s544, 4
      %s546 = scalar_lea.vmem %s3, %s545
      %p547 = scmp.lt.s32.totalorder %s17, 1
      %s548 = scalar_select %p547, %s17, 1
      %s549 = scalar_lea.vmem %s4, %s548
      %p550 = scmp.lt.s32.totalorder %s17, 1
      %s551 = scalar_select %p550, %s17, 1
      %s552 = scalar_lea.vmem %s5, %s551
      // Predicated region
      $region33: #{_lambda_.6} parent=31 // pred_check
        %p553 = pneg %p103
      $region34: #{_lambda_.6} parent=31 // pred_check_branch
        %555 = sbr.rel (%p553) target = $region36
      $region35: #{_lambda_.6} parent=31 // pred_region
        _
      $region36: #{_lambda_.6} parent=31 // pred_fallthru
        _
      // Predicated region
      $region37: #{_lambda_.6} parent=31 // pred_check
        %p556 = pneg %p129
      $region38: #{_lambda_.6} parent=31 // pred_check_branch
        %558 = sbr.rel (%p556) target = $region40
      $region39: #{_lambda_.6} parent=31 // pred_region
        _
      $region40: #{_lambda_.6} parent=31 // pred_fallthru
        _
      // Predicated region
      $region41: #{_lambda_.6} parent=31 // pred_check
        %p559 = pneg %p155
      $region42: #{_lambda_.6} parent=31 // pred_check_branch
        %561 = sbr.rel (%p559) target = $region44
      $region43: #{_lambda_.6} parent=31 // pred_region
        _
      $region44: #{_lambda_.6} parent=31 // pred_fallthru
        _
    $region32: #{_lambda_.6} parent=5 // pred_fallthru
      _
    %p562 = scmp.le.s32.totalorder 2, %s12
    // Predicated region
    $region45: #{_lambda_.6} parent=5 // pred_check
      %p563 = pneg %p562
    $region46: #{_lambda_.6} parent=5 // pred_check_branch
      %565 = sbr.rel (%p563) target = $region48
    $region47: #{_lambda_.6} parent=5 // pred_region
      %s566 = ssub.s32 %s12, 2
      // Predicated region
      $region49: #{_lambda_.6} parent=47 // pred_check
        %p567 = pneg %p109
      $region50: #{_lambda_.6} parent=47 // pred_check_branch
        %569 = sbr.rel (%p567) target = $region52
      $region51: #{_lambda_.6} parent=47 // pred_region
        %p570 = scmp.lt.s32.totalorder %s18, 1
        %s571 = scalar_select %p570, %s18, 1
        %s572 = smul.addr %s571, 10
        %s573 = smul.addr %s572, 4
        %s574 = scalar_lea.vmem %s3, %s573
      $region52: #{_lambda_.6} parent=47 // pred_fallthru
        _
      // Predicated region
      $region53: #{_lambda_.6} parent=47 // pred_check
        %p575 = pneg %p135
      $region54: #{_lambda_.6} parent=47 // pred_check_branch
        %577 = sbr.rel (%p575) target = $region56
      $region55: #{_lambda_.6} parent=47 // pred_region
        %p578 = scmp.lt.s32.totalorder %s18, 1
        %s579 = scalar_select %p578, %s18, 1
        %s580 = scalar_lea.vmem %s4, %s579
      $region56: #{_lambda_.6} parent=47 // pred_fallthru
        _
      // Predicated region
      $region57: #{_lambda_.6} parent=47 // pred_check
        %p581 = pneg %p161
      $region58: #{_lambda_.6} parent=47 // pred_check_branch
        %583 = sbr.rel (%p581) target = $region60
      $region59: #{_lambda_.6} parent=47 // pred_region
        %p584 = scmp.lt.s32.totalorder %s18, 1
        %s585 = scalar_select %p584, %s18, 1
        %s586 = scalar_lea.vmem %s5, %s585
      $region60: #{_lambda_.6} parent=47 // pred_fallthru
        _
    $region48: #{_lambda_.6} parent=5 // pred_fallthru
      _
  $region6: #{_lambda_.6} parent=0 // loop_footer
    %s16 = sadd.s32 1, %s12
  $region7: #{_lambda_.6} parent=0 // loop_footer_branch
    %11 = sbr.rel target = $region3
  $region8: #{_lambda_.6} parent=0 // loop_exit
    _

// kernel: _lambda_.4
$region0: #{_lambda_.4}
  #allocation0 [shape = 'u32[]', space=smem, size = 0x4, offset = 0x4, fixed_abs, tag = 'smem constant byte address 0x4 - core index']
  #allocation1 [shape = 'u32[72,128]{1,0:T(1,128)}', space=vmem, size = 0x9000, scoped, tag = 'internal scratch']
  #allocation2 [shape = 'f32[72,128]{1,0:T(8,128)}', space=vmem, size = 0x9000, scoped, tag = 'scratch operand']
  %s0 = inlined_call_operand.vmem [shape: bf16[2,328,128], index: 0, kind: input, shape index: {}]
  %s1 = inlined_call_operand.vmem [shape: bf16[9,128,128], index: 1, kind: input, shape index: {}]
  %s2 = inlined_call_operand.vmem [shape: f32[72,1], index: 2, kind: input, shape index: {}]
  %s3 = inlined_call_operand.vmem [shape: bf16[2,72,128], index: 3, kind: output, shape index: {0}]
  %s4 = inlined_call_operand.vmem [shape: f32[2,1,128], index: 4, kind: output, shape index: {1}]
  %s5 = inlined_call_operand.vmem [shape: f32[2,1,128], index: 5, kind: output, shape index: {2}]
  %6 = xla_tuple %s3, %s4, %s5
  %s7 = sld [smem:[#allocation0]]
  $region61: #{_lambda_.4} parent=0
    _
  %s9 = ssub.s32 1, %s7
  %s10 = scalar_select 0, %s9, %s7
  loop: start=0, step=1, limit=4
  $region2: #{_lambda_.4} parent=0 // loop_pre_header
    _
  $region3: #{_lambda_.4} parent=0 // loop_header
    %s12 = sphi 0, %s16
    %p13 = scmp.ge.s32.totalorder %s12, 4
    %s22 = sphi 0, %s24
    %s25 = sphi 0, %s22
    %s26 = sphi 0, %s25
    %s42 = sphi 0, %s26
    %s46 = sphi 0, %s46
    %s48 = sphi 0, %s46
    %s49 = sphi 0, %s48
    %s63 = sphi 0, %s49
    %s67 = sphi 0, %s67
    %s69 = sphi 0, %s67
    %s70 = sphi 0, %s69
    %s84 = sphi 0, %s70
    %s90 = sphi 0, %s92
    %s93 = sphi 0, %s90
    %s94 = sphi 0, %s93
    %s110 = sphi 0, %s94
    %s116 = sphi 0, %s118
    %s119 = sphi 0, %s116
    %s120 = sphi 0, %s119
    %s136 = sphi 0, %s120
    %s142 = sphi 0, %s144
    %s145 = sphi 0, %s142
    %s146 = sphi 0, %s145
    %s162 = sphi 0, %s146
  $region4: #{_lambda_.4} parent=0 // loop_header_branch
    %15 = sbr.rel (%p13) target = $region8
  $region5: #{_lambda_.4} parent=0 // loop_body
    %s17 = ssub.s32 %s12, 1
    %s18 = ssub.s32 %s12, 2
    %s19 = sadd.s32 %s12, 1
    %s20 = ssub.s32 %s12, %s19
    %p21 = scmp.eq.s32.totalorder %s20, 0
    %s23 = sadd.s32 %s22, 1
    %s24 = scalar_select %p21, %s22, %s23
    %p27 = pneg %p21
    %p28 = scmp.eq.s32.totalorder %s12, 1
    %p29 = por %p27, %p28
    %p30 = scmp.ne.s32.totalorder %s22, %s25
    %p31 = scmp.eq.s32.totalorder %s12, 0
    %p32 = por %p30, %p31
    %p33 = scmp.ne.s32.totalorder %s22, %s25
    %p34 = scmp.eq.s32.totalorder %s17, 1
    %p35 = por %p33, %p34
    %p36 = scmp.ne.s32.totalorder %s25, %s26
    %p37 = scmp.eq.s32.totalorder %s17, 0
    %p38 = por %p36, %p37
    %p39 = scmp.ne.s32.totalorder %s25, %s26
    %p40 = scmp.eq.s32.totalorder %s18, 1
    %p41 = por %p39, %p40
    %p43 = scmp.ne.s32.totalorder %s26, %s42
    %p44 = scmp.eq.s32.totalorder %s18, 0
    %p45 = por %p43, %p44
    %s47 = sadd.s32 %s46, 1
    %p50 = scmp.eq.s32.totalorder %s12, 1
    %p51 = scmp.ne.s32.totalorder %s46, %s48
    %p52 = scmp.eq.s32.totalorder %s12, 0
    %p53 = por %p51, %p52
    %p54 = scmp.ne.s32.totalorder %s46, %s48
    %p55 = scmp.eq.s32.totalorder %s17, 1
    %p56 = por %p54, %p55
    %p57 = scmp.ne.s32.totalorder %s48, %s49
    %p58 = scmp.eq.s32.totalorder %s17, 0
    %p59 = por %p57, %p58
    %p60 = scmp.ne.s32.totalorder %s48, %s49
    %p61 = scmp.eq.s32.totalorder %s18, 1
    %p62 = por %p60, %p61
    %p64 = scmp.ne.s32.totalorder %s49, %s63
    %p65 = scmp.eq.s32.totalorder %s18, 0
    %p66 = por %p64, %p65
    %s68 = sadd.s32 %s67, 1
    %p71 = scmp.eq.s32.totalorder %s12, 1
    %p72 = scmp.ne.s32.totalorder %s67, %s69
    %p73 = scmp.eq.s32.totalorder %s12, 0
    %p74 = por %p72, %p73
    %p75 = scmp.ne.s32.totalorder %s67, %s69
    %p76 = scmp.eq.s32.totalorder %s17, 1
    %p77 = por %p75, %p76
    %p78 = scmp.ne.s32.totalorder %s69, %s70
    %p79 = scmp.eq.s32.totalorder %s17, 0
    %p80 = por %p78, %p79
    %p81 = scmp.ne.s32.totalorder %s69, %s70
    %p82 = scmp.eq.s32.totalorder %s18, 1
    %p83 = por %p81, %p82
    %p85 = scmp.ne.s32.totalorder %s70, %s84
    %p86 = scmp.eq.s32.totalorder %s18, 0
    %p87 = por %p85, %p86
    %s88 = ssub.s32 %s12, %s19
    %p89 = scmp.eq.s32.totalorder %s88, 0
    %s91 = sadd.s32 %s90, 1
    %s92 = scalar_select %p89, %s90, %s91
    %p95 = pneg %p89
    %p96 = scmp.eq.s32.totalorder %s12, 1
    %p97 = por %p95, %p96
    %p98 = scmp.ne.s32.totalorder %s90, %s93
    %p99 = scmp.eq.s32.totalorder %s12, 0
    %p100 = por %p98, %p99
    %p101 = scmp.ne.s32.totalorder %s90, %s93
    %p102 = scmp.eq.s32.totalorder %s17, 1
    %p103 = por %p101, %p102
    %p104 = scmp.ne.s32.totalorder %s93, %s94
    %p105 = scmp.eq.s32.totalorder %s17, 0
    %p106 = por %p104, %p105
    %p107 = scmp.ne.s32.totalorder %s93, %s94
    %p108 = scmp.eq.s32.totalorder %s18, 1
    %p109 = por %p107, %p108
    %p111 = scmp.ne.s32.totalorder %s94, %s110
    %p112 = scmp.eq.s32.totalorder %s18, 0
    %p113 = por %p111, %p112
    %s114 = ssub.s32 %s12, %s19
    %p115 = scmp.eq.s32.totalorder %s114, 0
    %s117 = sadd.s32 %s116, 1
    %s118 = scalar_select %p115, %s116, %s117
    %p121 = pneg %p115
    %p122 = scmp.eq.s32.totalorder %s12, 1
    %p123 = por %p121, %p122
    %p124 = scmp.ne.s32.totalorder %s116, %s119
    %p125 = scmp.eq.s32.totalorder %s12, 0
    %p126 = por %p124, %p125
    %p127 = scmp.ne.s32.totalorder %s116, %s119
    %p128 = scmp.eq.s32.totalorder %s17, 1
    %p129 = por %p127, %p128
    %p130 = scmp.ne.s32.totalorder %s119, %s120
    %p131 = scmp.eq.s32.totalorder %s17, 0
    %p132 = por %p130, %p131
    %p133 = scmp.ne.s32.totalorder %s119, %s120
    %p134 = scmp.eq.s32.totalorder %s18, 1
    %p135 = por %p133, %p134
    %p137 = scmp.ne.s32.totalorder %s120, %s136
    %p138 = scmp.eq.s32.totalorder %s18, 0
    %p139 = por %p137, %p138
    %s140 = ssub.s32 %s12, %s19
    %p141 = scmp.eq.s32.totalorder %s140, 0
    %s143 = sadd.s32 %s142, 1
    %s144 = scalar_select %p141, %s142, %s143
    %p147 = pneg %p141
    %p148 = scmp.eq.s32.totalorder %s12, 1
    %p149 = por %p147, %p148
    %p150 = scmp.ne.s32.totalorder %s142, %s145
    %p151 = scmp.eq.s32.totalorder %s12, 0
    %p152 = por %p150, %p151
    %p153 = scmp.ne.s32.totalorder %s142, %s145
    %p154 = scmp.eq.s32.totalorder %s17, 1
    %p155 = por %p153, %p154
    %p156 = scmp.ne.s32.totalorder %s145, %s146
    %p157 = scmp.eq.s32.totalorder %s17, 0
    %p158 = por %p156, %p157
    %p159 = scmp.ne.s32.totalorder %s145, %s146
    %p160 = scmp.eq.s32.totalorder %s18, 1
    %p161 = por %p159, %p160
    %p163 = scmp.ne.s32.totalorder %s146, %s162
    %p164 = scmp.eq.s32.totalorder %s18, 0
    %p165 = por %p163, %p164
    %p166 = scmp.le.s32.totalorder 1, %s12
    %p167 = scmp.lt.s32.totalorder %s12, 3
    %p168 = pnand %p166, %p167
    %p169 = pneg %p168
    // Predicated region
    $region9: #{_lambda_.4} parent=5 // pred_check
      _
    $region10: #{_lambda_.4} parent=5 // pred_check_branch
      %171 = sbr.rel (%p168) target = $region12
    $region11: #{_lambda_.4} parent=5 // pred_region
      %s172 = ssub.s32 %s12, 1
      // Predicated region
      $region13: #{_lambda_.4} parent=11 // pred_check
        %p173 = pneg %p59
      $region14: #{_lambda_.4} parent=11 // pred_check_branch
        %175 = sbr.rel (%p173) target = $region16
      $region15: #{_lambda_.4} parent=11 // pred_region
        _
      $region16: #{_lambda_.4} parent=11 // pred_fallthru
        _
      // Predicated region
      $region17: #{_lambda_.4} parent=11 // pred_check
        %p176 = pneg %p80
      $region18: #{_lambda_.4} parent=11 // pred_check_branch
        %178 = sbr.rel (%p176) target = $region20
      $region19: #{_lambda_.4} parent=11 // pred_region
        _
      $region20: #{_lambda_.4} parent=11 // pred_fallthru
        _
    $region12: #{_lambda_.4} parent=5 // pred_fallthru
      _
    %p179 = scmp.lt.s32.totalorder %s12, 2
    // Predicated region
    $region21: #{_lambda_.4} parent=5 // pred_check
      %p180 = pneg %p179
    $region22: #{_lambda_.4} parent=5 // pred_check_branch
      %182 = sbr.rel (%p180) target = $region24
    $region23: #{_lambda_.4} parent=5 // pred_region
      // Predicated region
      $region25: #{_lambda_.4} parent=23 // pred_check
        %p183 = pneg %p32
      $region26: #{_lambda_.4} parent=23 // pred_check_branch
        %185 = sbr.rel (%p183) target = $region28
      $region27: #{_lambda_.4} parent=23 // pred_region
        %p186 = scmp.lt.s32.totalorder %s12, 1
        %s187 = scalar_select %p186, %s12, 1
        %s188 = smul.addr %s187, 41
        %s189 = smul.addr %s188, 4
        %s190 = scalar_lea.vmem %s0, %s189
      $region28: #{_lambda_.4} parent=23 // pred_fallthru
        _
    $region24: #{_lambda_.4} parent=5 // pred_fallthru
      _
    %p191 = scmp.le.s32.totalorder 1, %s12
    %p192 = scmp.lt.s32.totalorder %s12, 3
    %p193 = pnand %p191, %p192
    %p194 = pneg %p193
    // Predicated region
    $region29: #{_lambda_.4} parent=5 // pred_check
      _
    $region30: #{_lambda_.4} parent=5 // pred_check_branch
      %196 = sbr.rel (%p193) target = $region32
    $region31: #{_lambda_.4} parent=5 // pred_region
      %s197 = ssub.s32 %s12, 1
      %p198 = scmp.lt.s32.totalorder %s17, 1
      %s199 = scalar_select %p198, %s17, 1
      %s200 = smul.addr %s199, 41
      %s201 = smul.addr %s200, 4
      %s202 = scalar_lea.vmem %s0, %s201
      %p203 = pneg %p38
      %p204 = pneg %p35
      %p205 = pneg %p59
      %p206 = pneg %p56
      %p207 = pneg %p80
      %p208 = pneg %p77
      %p209 = pneg %p106
      %p210 = pneg %p103
      %p211 = scmp.lt.s32.totalorder %s17, 1
      %s212 = scalar_select %p211, %s17, 1
      %s213 = smul.addr %s212, 9
      %s214 = smul.addr %s213, 4
      %s215 = scalar_lea.vmem %s3, %s214
      %p216 = pneg %p132
      %p217 = pneg %p129
      %p218 = scmp.lt.s32.totalorder %s17, 1
      %s219 = scalar_select %p218, %s17, 1
      %s220 = scalar_lea.vmem %s4, %s219
      %p221 = pneg %p158
      %p222 = pneg %p155
      %p223 = scmp.lt.s32.totalorder %s17, 1
      %s224 = scalar_select %p223, %s17, 1
      %s225 = scalar_lea.vmem %s5, %s224
      %p226 = scmp.lt.s32.totalorder %s17, 1
      %s227 = scalar_select %p226, %s17, 1
      %s228 = smul.addr %s227, 41
      %s229 = smul.addr %s228, 4
      %s230 = scalar_lea.vmem %s0, %s229
      %p231 = scmp.lt.s32.totalorder %s17, 1
      %s232 = scalar_select %p231, %s17, 1
      %s233 = smul.addr %s232, 9
      %s234 = smul.addr %s233, 4
      %s235 = scalar_lea.vmem %s3, %s234
      %p236 = scmp.lt.s32.totalorder %s17, 1
      %s237 = scalar_select %p236, %s17, 1
      %s238 = scalar_lea.vmem %s4, %s237
      %p239 = scmp.lt.s32.totalorder %s17, 1
      %s240 = scalar_select %p239, %s17, 1
      %s241 = scalar_lea.vmem %s5, %s240
      %v242 = vld [vmem:[%s230] sm:$0xf]
      %v243 = vld [vmem:[%s230 + $0x4] sm:$0xf]
      %v244 = vld [vmem:[%s230 + $0x8] sm:$0xf]
      %v245 = vld [vmem:[%s230 + $0xc] sm:$0xf]
      %v246 = vld [vmem:[%s230 + $0x10] sm:$0xf]
      %v247 = vld [vmem:[%s230 + $0x14] sm:$0xf]
      %v248 = vld [vmem:[%s230 + $0x18] sm:$0xf]
      %v249 = vld [vmem:[%s230 + $0x1c] sm:$0xf]
      %v250 = vld [vmem:[%s230 + $0x20] sm:$0xf]
      %v251 = vld [vmem:[%s1] sm:$0xf]
      %v252 = vld [vmem:[%s1 + $0x4] sm:$0xf]
      %v253 = vld [vmem:[%s1 + $0x8] sm:$0xf]
      %v254 = vld [vmem:[%s1 + $0xc] sm:$0xf]
      %v255 = vld [vmem:[%s1 + $0x10] sm:$0xf]
      %v256 = vld [vmem:[%s1 + $0x14] sm:$0xf]
      %v257 = vld [vmem:[%s1 + $0x18] sm:$0xf]
      %v258 = vld [vmem:[%s1 + $0x1c] sm:$0xf]
      %v259 = vld [vmem:[%s1 + $0x20] sm:$0xf]
      %v260 = vld [vmem:[%s1 + $0x24] sm:$0xf]
      %v261 = vld [vmem:[%s1 + $0x28] sm:$0xf]
      %v262 = vld [vmem:[%s1 + $0x2c] sm:$0xf]
      %v263 = vld [vmem:[%s1 + $0x30] sm:$0xf]
      %v264 = vld [vmem:[%s1 + $0x34] sm:$0xf]
      %v265 = vld [vmem:[%s1 + $0x38] sm:$0xf]
      %v266 = vld [vmem:[%s1 + $0x3c] sm:$0xf]
      %v276 = vunpack.c.l.b16 %v242
      %v277 = vunpack.c.l.b16 %v243
      %v278 = vunpack.c.l.b16 %v244
      %v279 = vunpack.c.l.b16 %v245
      %v280 = vunpack.c.l.b16 %v246
      %v281 = vunpack.c.l.b16 %v247
      %v282 = vunpack.c.l.b16 %v248
      %v283 = vunpack.c.l.b16 %v249
      %v284 = vunpack.c.l.b16 %v250
      %v285 = vpack.c.b16 %v277, %v276
      %v286 = vpack.c.b16 %v279, %v278
      %v287 = vpack.c.b16 %v281, %v280
      %v288 = vpack.c.b16 %v283, %v282
      %v289 = vpack.c.b16 %v284, %v284
      %v311 = vunpack.c.l.b16 %v251
      %v312 = vunpack.c.l.b16 %v252
      %v313 = vunpack.c.l.b16 %v253
      %v314 = vunpack.c.l.b16 %v254
      %v315 = vunpack.c.l.b16 %v255
      %v316 = vunpack.c.l.b16 %v256
      %v317 = vunpack.c.l.b16 %v257
      %v318 = vunpack.c.l.b16 %v258
      %v319 = vunpack.c.l.b16 %v259
      %v320 = vunpack.c.l.b16 %v260
      %v321 = vunpack.c.l.b16 %v261
      %v322 = vunpack.c.l.b16 %v262
      %v323 = vunpack.c.l.b16 %v263
      %v324 = vunpack.c.l.b16 %v264
      %v325 = vunpack.c.l.b16 %v265
      %v326 = vunpack.c.l.b16 %v266
      %v327 = vpack.c.b16 %v312, %v311
      %v328 = vpack.c.b16 %v314, %v313
      %v329 = vpack.c.b16 %v316, %v315
      %v330 = vpack.c.b16 %v318, %v317
      %v331 = vpack.c.b16 %v320, %v319
      %v332 = vpack.c.b16 %v322, %v321
      %v333 = vpack.c.b16 %v324, %v323
      %v334 = vpack.c.b16 %v326, %v325
      %343 = vmatpush.bf16.msra.mxu0 %v334
      %344 = vmatpush.bf16.msra.mxu0 %v333
      %345 = vmatpush.bf16.msra.mxu0 %v332
      %346 = vmatpush.bf16.msra.mxu0 %v331
      %347 = vmatpush.bf16.msra.mxu0 %v330
      %348 = vmatpush.bf16.msra.mxu0 %v329
      %349 = vmatpush.bf16.msra.mxu0 %v328
      %350 = vmatpush.bf16.msra.mxu0 %v327
      %351 = vmatmul.bf16.gmra.mxu0 %v285
      %v352 = vpop.f32.mrf.mxu0
      %v353 = vadd.f32 0.0, %v352
      %v354 = vpop.f32.mrf.mxu0
      %v355 = vadd.f32 0.0, %v354
      %356 = vmatmul.bf16.gmra.mxu0 %v286
      %v357 = vpop.f32.mrf.mxu0
      %v358 = vadd.f32 0.0, %v357
      %v359 = vpop.f32.mrf.mxu0
      %v360 = vadd.f32 0.0, %v359
      %361 = vmatmul.bf16.gmra.mxu0 %v287
      %v362 = vpop.f32.mrf.mxu0
      %v363 = vadd.f32 0.0, %v362
      %v364 = vpop.f32.mrf.mxu0
      %v365 = vadd.f32 0.0, %v364
      %366 = vmatmul.bf16.gmra.mxu0 %v288
      %v367 = vpop.f32.mrf.mxu0
      %v368 = vadd.f32 0.0, %v367
      %v369 = vpop.f32.mrf.mxu0
      %v370 = vadd.f32 0.0, %v369
      %371 = vmatmul.bf16.gmra.mxu0 %v289
      %v372 = vpop.f32.mrf.mxu0
      %v373 = vadd.f32 0.0, %v372
      %v374 = vpop.f32.mrf.mxu0
      %375 = vdwg.mxu0
      %376 = vst [vmem:[#allocation2] sm:$0xff] %v353
      %377 = vst [vmem:[#allocation2 + $0x8] sm:$0xff] %v355
      %378 = vst [vmem:[#allocation2 + $0x10] sm:$0xff] %v358
      %379 = vst [vmem:[#allocation2 + $0x18] sm:$0xff] %v360
      %380 = vst [vmem:[#allocation2 + $0x20] sm:$0xff] %v363
      %381 = vst [vmem:[#allocation2 + $0x28] sm:$0xff] %v365
      %382 = vst [vmem:[#allocation2 + $0x30] sm:$0xff] %v368
      %383 = vst [vmem:[#allocation2 + $0x38] sm:$0xff] %v370
      %384 = vst [vmem:[#allocation2 + $0x40] sm:$0xff] %v373
      %v385 = vld [vmem:[%s230 + $0x28] sm:$0xe]
      %v386 = vld [vmem:[%s230 + $0x2c] sm:$0xf]
      %v387 = vld [vmem:[%s230 + $0x30] sm:$0xf]
      %v388 = vld [vmem:[%s230 + $0x34] sm:$0xf]
      %v389 = vld [vmem:[%s230 + $0x38] sm:$0xf]
      %v390 = vld [vmem:[%s230 + $0x3c] sm:$0xf]
      %v391 = vld [vmem:[%s230 + $0x40] sm:$0xf]
      %v392 = vld [vmem:[%s230 + $0x44] sm:$0xf]
      %v393 = vld [vmem:[%s230 + $0x48] sm:$0xf]
      %v394 = vld [vmem:[%s230 + $0x4c] sm:$0x1]
      %s395 = scalar_lea.vmem %s1, 64
      %v396 = vld [vmem:[%s395] sm:$0xf]
      %v397 = vld [vmem:[%s395 + $0x4] sm:$0xf]
      %v398 = vld [vmem:[%s395 + $0x8] sm:$0xf]
      %v399 = vld [vmem:[%s395 + $0xc] sm:$0xf]
      %v400 = vld [vmem:[%s395 + $0x10] sm:$0xf]
      %v401 = vld [vmem:[%s395 + $0x14] sm:$0xf]
      %v402 = vld [vmem:[%s395 + $0x18] sm:$0xf]
      %v403 = vld [vmem:[%s395 + $0x1c] sm:$0xf]
      %v404 = vld [vmem:[%s395 + $0x20] sm:$0xf]
      %v405 = vld [vmem:[%s395 + $0x24] sm:$0xf]
      %v406 = vld [vmem:[%s395 + $0x28] sm:$0xf]
      %v407 = vld [vmem:[%s395 + $0x2c] sm:$0xf]
      %v408 = vld [vmem:[%s395 + $0x30] sm:$0xf]
      %v409 = vld [vmem:[%s395 + $0x34] sm:$0xf]
      %v410 = vld [vmem:[%s395 + $0x38] sm:$0xf]
      %v411 = vld [vmem:[%s395 + $0x3c] sm:$0xf]
      %v422 = vunpack.c.l.b16 %v385
      %v423 = vunpack.c.l.b16 %v386
      %v424 = vunpack.c.l.b16 %v387
      %v425 = vunpack.c.l.b16 %v388
      %v426 = vunpack.c.l.b16 %v389
      %v427 = vunpack.c.l.b16 %v390
      %v428 = vunpack.c.l.b16 %v391
      %v429 = vunpack.c.l.b16 %v392
      %v430 = vunpack.c.l.b16 %v393
      %v431 = vunpack.c.l.b16 %v394
      %v432 = vpack.c.b16 %v423, %v422
      %v433 = vpack.c.b16 %v425, %v424
      %v434 = vpack.c.b16 %v427, %v426
      %v435 = vpack.c.b16 %v429, %v428
      %v436 = vpack.c.b16 %v431, %v430
      %vm437 = vcmask 1046528
      %v438 = vrot.slane %v432, 1
      %v439 = vrot.slane %v433, 1
      %v440 = vsel %vm437, %v438, %v439
      %v441 = vrot.slane %v434, 1
      %v442 = vsel %vm437, %v439, %v441
      %v443 = vrot.slane %v435, 1
      %v444 = vsel %vm437, %v441, %v443
      %v445 = vrot.slane %v436, 1
      %v446 = vsel %vm437, %v443, %v445
      %v468 = vunpack.c.l.b16 %v396
      %v469 = vunpack.c.l.b16 %v397
      %v470 = vunpack.c.l.b16 %v398
      %v471 = vunpack.c.l.b16 %v399
      %v472 = vunpack.c.l.b16 %v400
      %v473 = vunpack.c.l.b16 %v401
      %v474 = vunpack.c.l.b16 %v402
      %v475 = vunpack.c.l.b16 %v403
      %v476 = vunpack.c.l.b16 %v404
      %v477 = vunpack.c.l.b16 %v405
      %v478 = vunpack.c.l.b16 %v406
      %v479 = vunpack.c.l.b16 %v407
      %v480 = vunpack.c.l.b16 %v408
      %v481 = vunpack.c.l.b16 %v409
      %v482 = vunpack.c.l.b16 %v410
      %v483 = vunpack.c.l.b16 %v411
      %v484 = vpack.c.b16 %v469, %v468
      %v485 = vpack.c.b16 %v471, %v470
      %v486 = vpack.c.b16 %v473, %v472
      %v487 = vpack.c.b16 %v475, %v474
      %v488 = vpack.c.b16 %v477, %v476
      %v489 = vpack.c.b16 %v479, %v478
      %v490 = vpack.c.b16 %v481, %v480
      %v491 = vpack.c.b16 %v483, %v482
      %500 = vmatpush.bf16.msra.mxu0 %v491
      %501 = vmatpush.bf16.msra.mxu0 %v490
      %502 = vmatpush.bf16.msra.mxu0 %v489
      %503 = vmatpush.bf16.msra.mxu0 %v488
      %504 = vmatpush.bf16.msra.mxu0 %v487
      %505 = vmatpush.bf16.msra.mxu0 %v486
      %506 = vmatpush.bf16.msra.mxu0 %v485
      %507 = vmatpush.bf16.msra.mxu0 %v484
      %508 = vmatmul.bf16.gmra.mxu0 %v440
      %v509 = vpop.f32.mrf.mxu0
      %v510 = vadd.f32 0.0, %v509
      %v511 = vpop.f32.mrf.mxu0
      %v512 = vadd.f32 0.0, %v511
      %513 = vmatmul.bf16.gmra.mxu0 %v442
      %v514 = vpop.f32.mrf.mxu0
      %v515 = vadd.f32 0.0, %v514
      %v516 = vpop.f32.mrf.mxu0
      %v517 = vadd.f32 0.0, %v516
      %518 = vmatmul.bf16.gmra.mxu0 %v444
      %v519 = vpop.f32.mrf.mxu0
      %v520 = vadd.f32 0.0, %v519
      %v521 = vpop.f32.mrf.mxu0
      %v522 = vadd.f32 0.0, %v521
      %523 = vmatmul.bf16.gmra.mxu0 %v446
      %v524 = vpop.f32.mrf.mxu0
      %v525 = vadd.f32 0.0, %v524
      %v526 = vpop.f32.mrf.mxu0
      %v527 = vadd.f32 0.0, %v526
      %528 = vmatmul.bf16.gmra.mxu0 %v445
      %v529 = vpop.f32.mrf.mxu0
      %v530 = vadd.f32 0.0, %v529
      %v531 = vpop.f32.mrf.mxu0
      %532 = vdwg.mxu0
      %v533 = vld [vmem:[#allocation2] sm:$0xff]
      %v534 = vld [vmem:[#allocation2 + $0x8] sm:$0xff]
      %v535 = vld [vmem:[#allocation2 + $0x10] sm:$0xff]
      %v536 = vld [vmem:[#allocation2 + $0x18] sm:$0xff]
      %v537 = vld [vmem:[#allocation2 + $0x20] sm:$0xff]
      %v538 = vld [vmem:[#allocation2 + $0x28] sm:$0xff]
      %v539 = vld [vmem:[#allocation2 + $0x30] sm:$0xff]
      %v540 = vld [vmem:[#allocation2 + $0x38] sm:$0xff]
      %v541 = vld [vmem:[#allocation2 + $0x40] sm:$0xff]
      %v542 = vadd.f32 %v533, %v510
      %v543 = vadd.f32 %v534, %v512
      %v544 = vadd.f32 %v535, %v515
      %v545 = vadd.f32 %v536, %v517
      %v546 = vadd.f32 %v537, %v520
      %v547 = vadd.f32 %v538, %v522
      %v548 = vadd.f32 %v539, %v525
      %v549 = vadd.f32 %v540, %v527
      %v550 = vadd.f32 %v541, %v530
      %551 = vst [vmem:[#allocation2] sm:$0xff] %v542
      %552 = vst [vmem:[#allocation2 + $0x8] sm:$0xff] %v543
      %553 = vst [vmem:[#allocation2 + $0x10] sm:$0xff] %v544
      %554 = vst [vmem:[#allocation2 + $0x18] sm:$0xff] %v545
      %555 = vst [vmem:[#allocation2 + $0x20] sm:$0xff] %v546
      %556 = vst [vmem:[#allocation2 + $0x28] sm:$0xff] %v547
      %557 = vst [vmem:[#allocation2 + $0x30] sm:$0xff] %v548
      %558 = vst [vmem:[#allocation2 + $0x38] sm:$0xff] %v549
      %559 = vst [vmem:[#allocation2 + $0x40] sm:$0xff] %v550
      %v560 = vld [vmem:[%s230] sm:$0xf]
      %v561 = vld [vmem:[%s230 + $0x4] sm:$0xf]
      %v562 = vld [vmem:[%s230 + $0x8] sm:$0xf]
      %v563 = vld [vmem:[%s230 + $0xc] sm:$0xf]
      %v564 = vld [vmem:[%s230 + $0x10] sm:$0xf]
      %v565 = vld [vmem:[%s230 + $0x14] sm:$0xf]
      %v566 = vld [vmem:[%s230 + $0x18] sm:$0xf]
      %v567 = vld [vmem:[%s230 + $0x1c] sm:$0xf]
      %v568 = vld [vmem:[%s230 + $0x20] sm:$0xf]
      %v569 = vld [vmem:[%s230 + $0x24] sm:$0x1]
      %s570 = scalar_lea.vmem %s1, 128
      %v571 = vld [vmem:[%s570] sm:$0xf]
      %v572 = vld [vmem:[%s570 + $0x4] sm:$0xf]
      %v573 = vld [vmem:[%s570 + $0x8] sm:$0xf]
      %v574 = vld [vmem:[%s570 + $0xc] sm:$0xf]
      %v575 = vld [vmem:[%s570 + $0x10] sm:$0xf]
      %v576 = vld [vmem:[%s570 + $0x14] sm:$0xf]
      %v577 = vld [vmem:[%s570 + $0x18] sm:$0xf]
      %v578 = vld [vmem:[%s570 + $0x1c] sm:$0xf]
      %v579 = vld [vmem:[%s570 + $0x20] sm:$0xf]
      %v580 = vld [vmem:[%s570 + $0x24] sm:$0xf]
      %v581 = vld [vmem:[%s570 + $0x28] sm:$0xf]
      %v582 = vld [vmem:[%s570 + $0x2c] sm:$0xf]
      %v583 = vld [vmem:[%s570 + $0x30] sm:$0xf]
      %v584 = vld [vmem:[%s570 + $0x34] sm:$0xf]
      %v585 = vld [vmem:[%s570 + $0x38] sm:$0xf]
      %v586 = vld [vmem:[%s570 + $0x3c] sm:$0xf]
      %v597 = vunpack.c.l.b16 %v560
      %v598 = vunpack.c.l.b16 %v561
      %v599 = vunpack.c.l.b16 %v562
      %v600 = vunpack.c.l.b16 %v563
      %v601 = vunpack.c.l.b16 %v564
      %v602 = vunpack.c.l.b16 %v565
      %v603 = vunpack.c.l.b16 %v566
      %v604 = vunpack.c.l.b16 %v567
      %v605 = vunpack.c.l.b16 %v568
      %v606 = vunpack.c.l.b16 %v569
      %v607 = vpack.c.b16 %v598, %v597
      %v608 = vpack.c.b16 %v600, %v599
      %v609 = vpack.c.b16 %v602, %v601
      %v610 = vpack.c.b16 %v604, %v603
      %v611 = vpack.c.b16 %v606, %v605
      %vm612 = vsmask.f32 7424
      %v614 = vshrl.u32 %v607, 16
      %v616 = vshll.u32 %v607, 16
      %v618 = vrot.slane %v616, 1
      %v619 = vor.u32 %v614, %v618
      %v621 = vshll.u32 %v608, 16
      %v623 = vrot.slane %v621, 1
      %v624 = vsel %vm612, %v619, %v623
      %v625 = vshrl.u32 %v608, 16
      %v627 = vor.u32 %v625, %v623
      %v629 = vshll.u32 %v609, 16
      %v631 = vrot.slane %v629, 1
      %v632 = vsel %vm612, %v627, %v631
      %v633 = vshrl.u32 %v609, 16
      %v635 = vor.u32 %v633, %v631
      %v637 = vshll.u32 %v610, 16
      %v639 = vrot.slane %v637, 1
      %v640 = vsel %vm612, %v635, %v639
      %v641 = vshrl.u32 %v610, 16
      %v643 = vor.u32 %v641, %v639
      %v645 = vshll.u32 %v611, 16
      %v647 = vrot.slane %v645, 1
      %v648 = vsel %vm612, %v643, %v647
      %v649 = vshrl.u32 %v611, 16
      %v651 = vor.u32 %v649, %v647
      %v673 = vunpack.c.l.b16 %v571
      %v674 = vunpack.c.l.b16 %v572
      %v675 = vunpack.c.l.b16 %v573
      %v676 = vunpack.c.l.b16 %v574
      %v677 = vunpack.c.l.b16 %v575
      %v678 = vunpack.c.l.b16 %v576
      %v679 = vunpack.c.l.b16 %v577
      %v680 = vunpack.c.l.b16 %v578
      %v681 = vunpack.c.l.b16 %v579
      %v682 = vunpack.c.l.b16 %v580
      %v683 = vunpack.c.l.b16 %v581
      %v684 = vunpack.c.l.b16 %v582
      %v685 = vunpack.c.l.b16 %v583
      %v686 = vunpack.c.l.b16 %v584
      %v687 = vunpack.c.l.b16 %v585
      %v688 = vunpack.c.l.b16 %v586
      %v689 = vpack.c.b16 %v674, %v673
      %v690 = vpack.c.b16 %v676, %v675
      %v691 = vpack.c.b16 %v678, %v677
      %v692 = vpack.c.b16 %v680, %v679
      %v693 = vpack.c.b16 %v682, %v681
      %v694 = vpack.c.b16 %v684, %v683
      %v695 = vpack.c.b16 %v686, %v685
      %v696 = vpack.c.b16 %v688, %v687
      %705 = vmatpush.bf16.msra.mxu0 %v696
      %706 = vmatpush.bf16.msra.mxu0 %v695
      %707 = vmatpush.bf16.msra.mxu0 %v694
      %708 = vmatpush.bf16.msra.mxu0 %v693
      %709 = vmatpush.bf16.msra.mxu0 %v692
      %710 = vmatpush.bf16.msra.mxu0 %v691
      %711 = vmatpush.bf16.msra.mxu0 %v690
      %712 = vmatpush.bf16.msra.mxu0 %v689
      %713 = vmatmul.bf16.gmra.mxu0 %v624
      %v714 = vpop.f32.mrf.mxu0
      %v715 = vadd.f32 0.0, %v714
      %v716 = vpop.f32.mrf.mxu0
      %v717 = vadd.f32 0.0, %v716
      %718 = vmatmul.bf16.gmra.mxu0 %v632
      %v719 = vpop.f32.mrf.mxu0
      %v720 = vadd.f32 0.0, %v719
      %v721 = vpop.f32.mrf.mxu0
      %v722 = vadd.f32 0.0, %v721
      %723 = vmatmul.bf16.gmra.mxu0 %v640
      %v724 = vpop.f32.mrf.mxu0
      %v725 = vadd.f32 0.0, %v724
      %v726 = vpop.f32.mrf.mxu0
      %v727 = vadd.f32 0.0, %v726
      %728 = vmatmul.bf16.gmra.mxu0 %v648
      %v729 = vpop.f32.mrf.mxu0
      %v730 = vadd.f32 0.0, %v729
      %v731 = vpop.f32.mrf.mxu0
      %v732 = vadd.f32 0.0, %v731
      %733 = vmatmul.bf16.gmra.mxu0 %v651
      %v734 = vpop.f32.mrf.mxu0
      %v735 = vadd.f32 0.0, %v734
      %v736 = vpop.f32.mrf.mxu0
      %737 = vdwg.mxu0
      %v738 = vld [vmem:[#allocation2] sm:$0xff]
      %v739 = vld [vmem:[#allocation2 + $0x8] sm:$0xff]
      %v740 = vld [vmem:[#allocation2 + $0x10] sm:$0xff]
      %v741 = vld [vmem:[#allocation2 + $0x18] sm:$0xff]
      %v742 = vld [vmem:[#allocation2 + $0x20] sm:$0xff]
      %v743 = vld [vmem:[#allocation2 + $0x28] sm:$0xff]
      %v744 = vld [vmem:[#allocation2 + $0x30] sm:$0xff]
      %v745 = vld [vmem:[#allocation2 + $0x38] sm:$0xff]
      %v746 = vld [vmem:[#allocation2 + $0x40] sm:$0xff]
      %v747 = vadd.f32 %v738, %v715
      %v748 = vadd.f32 %v739, %v717
      %v749 = vadd.f32 %v740, %v720
      %v750 = vadd.f32 %v741, %v722
      %v751 = vadd.f32 %v742, %v725
      %v752 = vadd.f32 %v743, %v727
      %v753 = vadd.f32 %v744, %v730
      %v754 = vadd.f32 %v745, %v732
      %v755 = vadd.f32 %v746, %v735
      %756 = vst [vmem:[#allocation2] sm:$0xff] %v747
      %757 = vst [vmem:[#allocation2 + $0x8] sm:$0xff] %v748
      %758 = vst [vmem:[#allocation2 + $0x10] sm:$0xff] %v749
      %759 = vst [vmem:[#allocation2 + $0x18] sm:$0xff] %v750
      %760 = vst [vmem:[#allocation2 + $0x20] sm:$0xff] %v751
      %761 = vst [vmem:[#allocation2 + $0x28] sm:$0xff] %v752
      %762 = vst [vmem:[#allocation2 + $0x30] sm:$0xff] %v753
      %763 = vst [vmem:[#allocation2 + $0x38] sm:$0xff] %v754
      %764 = vst [vmem:[#allocation2 + $0x40] sm:$0xff] %v755
      %v765 = vld [vmem:[%s230 + $0x50] sm:$0xc]
      %v766 = vld [vmem:[%s230 + $0x54] sm:$0xf]
      %v767 = vld [vmem:[%s230 + $0x58] sm:$0xf]
      %v768 = vld [vmem:[%s230 + $0x5c] sm:$0xf]
      %v769 = vld [vmem:[%s230 + $0x60] sm:$0xf]
      %v770 = vld [vmem:[%s230 + $0x64] sm:$0xf]
      %v771 = vld [vmem:[%s230 + $0x68] sm:$0xf]
      %v772 = vld [vmem:[%s230 + $0x6c] sm:$0xf]
      %v773 = vld [vmem:[%s230 + $0x70] sm:$0xf]
      %v774 = vld [vmem:[%s230 + $0x74] sm:$0x3]
      %s775 = scalar_lea.vmem %s1, 192
      %v776 = vld [vmem:[%s775] sm:$0xf]
      %v777 = vld [vmem:[%s775 + $0x4] sm:$0xf]
      %v778 = vld [vmem:[%s775 + $0x8] sm:$0xf]
      %v779 = vld [vmem:[%s775 + $0xc] sm:$0xf]
      %v780 = vld [vmem:[%s775 + $0x10] sm:$0xf]
      %v781 = vld [vmem:[%s775 + $0x14] sm:$0xf]
      %v782 = vld [vmem:[%s775 + $0x18] sm:$0xf]
      %v783 = vld [vmem:[%s775 + $0x1c] sm:$0xf]
      %v784 = vld [vmem:[%s775 + $0x20] sm:$0xf]
      %v785 = vld [vmem:[%s775 + $0x24] sm:$0xf]
      %v786 = vld [vmem:[%s775 + $0x28] sm:$0xf]
      %v787 = vld [vmem:[%s775 + $0x2c] sm:$0xf]
      %v788 = vld [vmem:[%s775 + $0x30] sm:$0xf]
      %v789 = vld [vmem:[%s775 + $0x34] sm:$0xf]
      %v790 = vld [vmem:[%s775 + $0x38] sm:$0xf]
      %v791 = vld [vmem:[%s775 + $0x3c] sm:$0xf]
      %v802 = vunpack.c.l.b16 %v765
      %v803 = vunpack.c.l.b16 %v766
      %v804 = vunpack.c.l.b16 %v767
      %v805 = vunpack.c.l.b16 %v768
      %v806 = vunpack.c.l.b16 %v769
      %v807 = vunpack.c.l.b16 %v770
      %v808 = vunpack.c.l.b16 %v771
      %v809 = vunpack.c.l.b16 %v772
      %v810 = vunpack.c.l.b16 %v773
      %v811 = vunpack.c.l.b16 %v774
      %v812 = vpack.c.b16 %v803, %v802
      %v813 = vpack.c.b16 %v805, %v804
      %v814 = vpack.c.b16 %v807, %v806
      %v815 = vpack.c.b16 %v809, %v808
      %v816 = vpack.c.b16 %v811, %v810
      %vm817 = vcmask 1045504
      %v818 = vrot.slane %v812, 2
      %v819 = vrot.slane %v813, 2
      %v820 = vsel %vm817, %v818, %v819
      %v821 = vrot.slane %v814, 2
      %v822 = vsel %vm817, %v819, %v821
      %v823 = vrot.slane %v815, 2
      %v824 = vsel %vm817, %v821, %v823
      %v825 = vrot.slane %v816, 2
      %v826 = vsel %vm817, %v823, %v825
      %v848 = vunpack.c.l.b16 %v776
      %v849 = vunpack.c.l.b16 %v777
      %v850 = vunpack.c.l.b16 %v778
      %v851 = vunpack.c.l.b16 %v779
      %v852 = vunpack.c.l.b16 %v780
      %v853 = vunpack.c.l.b16 %v781
      %v854 = vunpack.c.l.b16 %v782
      %v855 = vunpack.c.l.b16 %v783
      %v856 = vunpack.c.l.b16 %v784
      %v857 = vunpack.c.l.b16 %v785
      %v858 = vunpack.c.l.b16 %v786
      %v859 = vunpack.c.l.b16 %v787
      %v860 = vunpack.c.l.b16 %v788
      %v861 = vunpack.c.l.b16 %v789
      %v862 = vunpack.c.l.b16 %v790
      %v863 = vunpack.c.l.b16 %v791
      %v864 = vpack.c.b16 %v849, %v848
      %v865 = vpack.c.b16 %v851, %v850
      %v866 = vpack.c.b16 %v853, %v852
      %v867 = vpack.c.b16 %v855, %v854
      %v868 = vpack.c.b16 %v857, %v856
      %v869 = vpack.c.b16 %v859, %v858
      %v870 = vpack.c.b16 %v861, %v860
      %v871 = vpack.c.b16 %v863, %v862
      %880 = vmatpush.bf16.msra.mxu0 %v871
      %881 = vmatpush.bf16.msra.mxu0 %v870
      %882 = vmatpush.bf16.msra.mxu0 %v869
      %883 = vmatpush.bf16.msra.mxu0 %v868
      %884 = vmatpush.bf16.msra.mxu0 %v867
      %885 = vmatpush.bf16.msra.mxu0 %v866
      %886 = vmatpush.bf16.msra.mxu0 %v865
      %887 = vmatpush.bf16.msra.mxu0 %v864
      %888 = vmatmul.bf16.gmra.mxu0 %v820
      %v889 = vpop.f32.mrf.mxu0
      %v890 = vadd.f32 0.0, %v889
      %v891 = vpop.f32.mrf.mxu0
      %v892 = vadd.f32 0.0, %v891
      %893 = vmatmul.bf16.gmra.mxu0 %v822
      %v894 = vpop.f32.mrf.mxu0
      %v895 = vadd.f32 0.0, %v894
      %v896 = vpop.f32.mrf.mxu0
      %v897 = vadd.f32 0.0, %v896
      %898 = vmatmul.bf16.gmra.mxu0 %v824
      %v899 = vpop.f32.mrf.mxu0
      %v900 = vadd.f32 0.0, %v899
      %v901 = vpop.f32.mrf.mxu0
      %v902 = vadd.f32 0.0, %v901
      %903 = vmatmul.bf16.gmra.mxu0 %v826
      %v904 = vpop.f32.mrf.mxu0
      %v905 = vadd.f32 0.0, %v904
      %v906 = vpop.f32.mrf.mxu0
      %v907 = vadd.f32 0.0, %v906
      %908 = vmatmul.bf16.gmra.mxu0 %v825
      %v909 = vpop.f32.mrf.mxu0
      %v910 = vadd.f32 0.0, %v909
      %v911 = vpop.f32.mrf.mxu0
      %912 = vdwg.mxu0
      %v913 = vld [vmem:[#allocation2] sm:$0xff]
      %v914 = vld [vmem:[#allocation2 + $0x8] sm:$0xff]
      %v915 = vld [vmem:[#allocation2 + $0x10] sm:$0xff]
      %v916 = vld [vmem:[#allocation2 + $0x18] sm:$0xff]
      %v917 = vld [vmem:[#allocation2 + $0x20] sm:$0xff]
      %v918 = vld [vmem:[#allocation2 + $0x28] sm:$0xff]
      %v919 = vld [vmem:[#allocation2 + $0x30] sm:$0xff]
      %v920 = vld [vmem:[#allocation2 + $0x38] sm:$0xff]
      %v921 = vld [vmem:[#allocation2 + $0x40] sm:$0xff]
      %v922 = vadd.f32 %v913, %v890
      %v923 = vadd.f32 %v914, %v892
      %v924 = vadd.f32 %v915, %v895
      %v925 = vadd.f32 %v916, %v897
      %v926 = vadd.f32 %v917, %v900
      %v927 = vadd.f32 %v918, %v902
      %v928 = vadd.f32 %v919, %v905
      %v929 = vadd.f32 %v920, %v907
      %v930 = vadd.f32 %v921, %v910
      %931 = vst [vmem:[#allocation2] sm:$0xff] %v922
      %932 = vst [vmem:[#allocation2 + $0x8] sm:$0xff] %v923
      %933 = vst [vmem:[#allocation2 + $0x10] sm:$0xff] %v924
      %934 = vst [vmem:[#allocation2 + $0x18] sm:$0xff] %v925
      %935 = vst [vmem:[#allocation2 + $0x20] sm:$0xff] %v926
      %936 = vst [vmem:[#allocation2 + $0x28] sm:$0xff] %v927
      %937 = vst [vmem:[#allocation2 + $0x30] sm:$0xff] %v928
      %938 = vst [vmem:[#allocation2 + $0x38] sm:$0xff] %v929
      %939 = vst [vmem:[#allocation2 + $0x40] sm:$0xff] %v930
      %v940 = vld [vmem:[%s230 + $0x78] sm:$0x8]
      %v941 = vld [vmem:[%s230 + $0x7c] sm:$0xf]
      %v942 = vld [vmem:[%s230 + $0x80] sm:$0xf]
      %v943 = vld [vmem:[%s230 + $0x84] sm:$0xf]
      %v944 = vld [vmem:[%s230 + $0x88] sm:$0xf]
      %v945 = vld [vmem:[%s230 + $0x8c] sm:$0xf]
      %v946 = vld [vmem:[%s230 + $0x90] sm:$0xf]
      %v947 = vld [vmem:[%s230 + $0x94] sm:$0xf]
      %v948 = vld [vmem:[%s230 + $0x98] sm:$0xf]
      %v949 = vld [vmem:[%s230 + $0x9c] sm:$0x7]
      %s950 = scalar_lea.vmem %s1, 256
      %v951 = vld [vmem:[%s950] sm:$0xf]
      %v952 = vld [vmem:[%s950 + $0x4] sm:$0xf]
      %v953 = vld [vmem:[%s950 + $0x8] sm:$0xf]
      %v954 = vld [vmem:[%s950 + $0xc] sm:$0xf]
      %v955 = vld [vmem:[%s950 + $0x10] sm:$0xf]
      %v956 = vld [vmem:[%s950 + $0x14] sm:$0xf]
      %v957 = vld [vmem:[%s950 + $0x18] sm:$0xf]
      %v958 = vld [vmem:[%s950 + $0x1c] sm:$0xf]
      %v959 = vld [vmem:[%s950 + $0x20] sm:$0xf]
      %v960 = vld [vmem:[%s950 + $0x24] sm:$0xf]
      %v961 = vld [vmem:[%s950 + $0x28] sm:$0xf]
      %v962 = vld [vmem:[%s950 + $0x2c] sm:$0xf]
      %v963 = vld [vmem:[%s950 + $0x30] sm:$0xf]
      %v964 = vld [vmem:[%s950 + $0x34] sm:$0xf]
      %v965 = vld [vmem:[%s950 + $0x38] sm:$0xf]
      %v966 = vld [vmem:[%s950 + $0x3c] sm:$0xf]
      %v977 = vunpack.c.l.b16 %v940
      %v978 = vunpack.c.l.b16 %v941
      %v979 = vunpack.c.l.b16 %v942
      %v980 = vunpack.c.l.b16 %v943
      %v981 = vunpack.c.l.b16 %v944
      %v982 = vunpack.c.l.b16 %v945
      %v983 = vunpack.c.l.b16 %v946
      %v984 = vunpack.c.l.b16 %v947
      %v985 = vunpack.c.l.b16 %v948
      %v986 = vunpack.c.l.b16 %v949
      %v987 = vpack.c.b16 %v978, %v977
      %v988 = vpack.c.b16 %v980, %v979
      %v989 = vpack.c.b16 %v982, %v981
      %v990 = vpack.c.b16 %v984, %v983
      %v991 = vpack.c.b16 %v986, %v985
      %vm992 = vcmask 1044480
      %v993 = vrot.slane %v987, 3
      %v994 = vrot.slane %v988, 3
      %v995 = vsel %vm992, %v993, %v994
      %v996 = vrot.slane %v989, 3
      %v997 = vsel %vm992, %v994, %v996
      %v998 = vrot.slane %v990, 3
      %v999 = vsel %vm992, %v996, %v998
      %v1000 = vrot.slane %v991, 3
      %v1001 = vsel %vm992, %v998, %v1000
      %v1023 = vunpack.c.l.b16 %v951
      %v1024 = vunpack.c.l.b16 %v952
      %v1025 = vunpack.c.l.b16 %v953
      %v1026 = vunpack.c.l.b16 %v954
      %v1027 = vunpack.c.l.b16 %v955
      %v1028 = vunpack.c.l.b16 %v956
      %v1029 = vunpack.c.l.b16 %v957
      %v1030 = vunpack.c.l.b16 %v958
      %v1031 = vunpack.c.l.b16 %v959
      %v1032 = vunpack.c.l.b16 %v960
      %v1033 = vunpack.c.l.b16 %v961
      %v1034 = vunpack.c.l.b16 %v962
      %v1035 = vunpack.c.l.b16 %v963
      %v1036 = vunpack.c.l.b16 %v964
      %v1037 = vunpack.c.l.b16 %v965
      %v1038 = vunpack.c.l.b16 %v966
      %v1039 = vpack.c.b16 %v1024, %v1023
      %v1040 = vpack.c.b16 %v1026, %v1025
      %v1041 = vpack.c.b16 %v1028, %v1027
      %v1042 = vpack.c.b16 %v1030, %v1029
      %v1043 = vpack.c.b16 %v1032, %v1031
      %v1044 = vpack.c.b16 %v1034, %v1033
      %v1045 = vpack.c.b16 %v1036, %v1035
      %v1046 = vpack.c.b16 %v1038, %v1037
      %1055 = vmatpush.bf16.msra.mxu0 %v1046
      %1056 = vmatpush.bf16.msra.mxu0 %v1045
      %1057 = vmatpush.bf16.msra.mxu0 %v1044
      %1058 = vmatpush.bf16.msra.mxu0 %v1043
      %1059 = vmatpush.bf16.msra.mxu0 %v1042
      %1060 = vmatpush.bf16.msra.mxu0 %v1041
      %1061 = vmatpush.bf16.msra.mxu0 %v1040
      %1062 = vmatpush.bf16.msra.mxu0 %v1039
      %1063 = vmatmul.bf16.gmra.mxu0 %v995
      %v1064 = vpop.f32.mrf.mxu0
      %v1065 = vadd.f32 0.0, %v1064
      %v1066 = vpop.f32.mrf.mxu0
      %v1067 = vadd.f32 0.0, %v1066
      %1068 = vmatmul.bf16.gmra.mxu0 %v997
      %v1069 = vpop.f32.mrf.mxu0
      %v1070 = vadd.f32 0.0, %v1069
      %v1071 = vpop.f32.mrf.mxu0
      %v1072 = vadd.f32 0.0, %v1071
      %1073 = vmatmul.bf16.gmra.mxu0 %v999
      %v1074 = vpop.f32.mrf.mxu0
      %v1075 = vadd.f32 0.0, %v1074
      %v1076 = vpop.f32.mrf.mxu0
      %v1077 = vadd.f32 0.0, %v1076
      %1078 = vmatmul.bf16.gmra.mxu0 %v1001
      %v1079 = vpop.f32.mrf.mxu0
      %v1080 = vadd.f32 0.0, %v1079
      %v1081 = vpop.f32.mrf.mxu0
      %v1082 = vadd.f32 0.0, %v1081
      %1083 = vmatmul.bf16.gmra.mxu0 %v1000
      %v1084 = vpop.f32.mrf.mxu0
      %v1085 = vadd.f32 0.0, %v1084
      %v1086 = vpop.f32.mrf.mxu0
      %1087 = vdwg.mxu0
      %v1088 = vld [vmem:[#allocation2] sm:$0xff]
      %v1089 = vld [vmem:[#allocation2 + $0x8] sm:$0xff]
      %v1090 = vld [vmem:[#allocation2 + $0x10] sm:$0xff]
      %v1091 = vld [vmem:[#allocation2 + $0x18] sm:$0xff]
      %v1092 = vld [vmem:[#allocation2 + $0x20] sm:$0xff]
      %v1093 = vld [vmem:[#allocation2 + $0x28] sm:$0xff]
      %v1094 = vld [vmem:[#allocation2 + $0x30] sm:$0xff]
      %v1095 = vld [vmem:[#allocation2 + $0x38] sm:$0xff]
      %v1096 = vld [vmem:[#allocation2 + $0x40] sm:$0xff]
      %v1097 = vadd.f32 %v1088, %v1065
      %v1098 = vadd.f32 %v1089, %v1067
      %v1099 = vadd.f32 %v1090, %v1070
      %v1100 = vadd.f32 %v1091, %v1072
      %v1101 = vadd.f32 %v1092, %v1075
      %v1102 = vadd.f32 %v1093, %v1077
      %v1103 = vadd.f32 %v1094, %v1080
      %v1104 = vadd.f32 %v1095, %v1082
      %v1105 = vadd.f32 %v1096, %v1085
      %1106 = vst [vmem:[#allocation2] sm:$0xff] %v1097
      %1107 = vst [vmem:[#allocation2 + $0x8] sm:$0xff] %v1098
      %1108 = vst [vmem:[#allocation2 + $0x10] sm:$0xff] %v1099
      %1109 = vst [vmem:[#allocation2 + $0x18] sm:$0xff] %v1100
      %1110 = vst [vmem:[#allocation2 + $0x20] sm:$0xff] %v1101
      %1111 = vst [vmem:[#allocation2 + $0x28] sm:$0xff] %v1102
      %1112 = vst [vmem:[#allocation2 + $0x30] sm:$0xff] %v1103
      %1113 = vst [vmem:[#allocation2 + $0x38] sm:$0xff] %v1104
      %1114 = vst [vmem:[#allocation2 + $0x40] sm:$0xff] %v1105
      %v1115 = vld [vmem:[%s230 + $0x50] sm:$0xc]
      %v1116 = vld [vmem:[%s230 + $0x54] sm:$0xf]
      %v1117 = vld [vmem:[%s230 + $0x58] sm:$0xf]
      %v1118 = vld [vmem:[%s230 + $0x5c] sm:$0xf]
      %v1119 = vld [vmem:[%s230 + $0x60] sm:$0xf]
      %v1120 = vld [vmem:[%s230 + $0x64] sm:$0xf]
      %v1121 = vld [vmem:[%s230 + $0x68] sm:$0xf]
      %v1122 = vld [vmem:[%s230 + $0x6c] sm:$0xf]
      %v1123 = vld [vmem:[%s230 + $0x70] sm:$0xf]
      %v1124 = vld [vmem:[%s230 + $0x74] sm:$0x7]
      %s1125 = scalar_lea.vmem %s1, 320
      %v1126 = vld [vmem:[%s1125] sm:$0xf]
      %v1127 = vld [vmem:[%s1125 + $0x4] sm:$0xf]
      %v1128 = vld [vmem:[%s1125 + $0x8] sm:$0xf]
      %v1129 = vld [vmem:[%s1125 + $0xc] sm:$0xf]
      %v1130 = vld [vmem:[%s1125 + $0x10] sm:$0xf]
      %v1131 = vld [vmem:[%s1125 + $0x14] sm:$0xf]
      %v1132 = vld [vmem:[%s1125 + $0x18] sm:$0xf]
      %v1133 = vld [vmem:[%s1125 + $0x1c] sm:$0xf]
      %v1134 = vld [vmem:[%s1125 + $0x20] sm:$0xf]
      %v1135 = vld [vmem:[%s1125 + $0x24] sm:$0xf]
      %v1136 = vld [vmem:[%s1125 + $0x28] sm:$0xf]
      %v1137 = vld [vmem:[%s1125 + $0x2c] sm:$0xf]
      %v1138 = vld [vmem:[%s1125 + $0x30] sm:$0xf]
      %v1139 = vld [vmem:[%s1125 + $0x34] sm:$0xf]
      %v1140 = vld [vmem:[%s1125 + $0x38] sm:$0xf]
      %v1141 = vld [vmem:[%s1125 + $0x3c] sm:$0xf]
      %v1152 = vunpack.c.l.b16 %v1115
      %v1153 = vunpack.c.l.b16 %v1116
      %v1154 = vunpack.c.l.b16 %v1117
      %v1155 = vunpack.c.l.b16 %v1118
      %v1156 = vunpack.c.l.b16 %v1119
      %v1157 = vunpack.c.l.b16 %v1120
      %v1158 = vunpack.c.l.b16 %v1121
      %v1159 = vunpack.c.l.b16 %v1122
      %v1160 = vunpack.c.l.b16 %v1123
      %v1161 = vunpack.c.l.b16 %v1124
      %v1162 = vpack.c.b16 %v1153, %v1152
      %v1163 = vpack.c.b16 %v1155, %v1154
      %v1164 = vpack.c.b16 %v1157, %v1156
      %v1165 = vpack.c.b16 %v1159, %v1158
      %v1166 = vpack.c.b16 %v1161, %v1160
      %vm1167 = vsmask.f32 5376
      %v1169 = vshrl.u32 %v1162, 16
      %v1171 = vrot.slane %v1169, 2
      %v1172 = vshll.u32 %v1162, 16
      %v1174 = vrot.slane %v1172, 3
      %v1175 = vor.u32 %v1171, %v1174
      %v1177 = vshrl.u32 %v1163, 16
      %v1179 = vrot.slane %v1177, 2
      %v1180 = vshll.u32 %v1163, 16
      %v1182 = vrot.slane %v1180, 3
      %v1183 = vor.u32 %v1179, %v1182
      %v1184 = vsel %vm1167, %v1175, %v1183
      %v1186 = vshrl.u32 %v1164, 16
      %v1188 = vrot.slane %v1186, 2
      %v1189 = vshll.u32 %v1164, 16
      %v1191 = vrot.slane %v1189, 3
      %v1192 = vor.u32 %v1188, %v1191
      %v1193 = vsel %vm1167, %v1183, %v1192
      %v1195 = vshrl.u32 %v1165, 16
      %v1197 = vrot.slane %v1195, 2
      %v1198 = vshll.u32 %v1165, 16
      %v1200 = vrot.slane %v1198, 3
      %v1201 = vor.u32 %v1197, %v1200
      %v1202 = vsel %vm1167, %v1192, %v1201
      %v1204 = vshrl.u32 %v1166, 16
      %v1206 = vrot.slane %v1204, 2
      %v1207 = vshll.u32 %v1166, 16
      %v1209 = vrot.slane %v1207, 3
      %v1210 = vor.u32 %v1206, %v1209
      %v1211 = vsel %vm1167, %v1201, %v1210
      %v1233 = vunpack.c.l.b16 %v1126
      %v1234 = vunpack.c.l.b16 %v1127
      %v1235 = vunpack.c.l.b16 %v1128
      %v1236 = vunpack.c.l.b16 %v1129
      %v1237 = vunpack.c.l.b16 %v1130
      %v1238 = vunpack.c.l.b16 %v1131
      %v1239 = vunpack.c.l.b16 %v1132
      %v1240 = vunpack.c.l.b16 %v1133
      %v1241 = vunpack.c.l.b16 %v1134
      %v1242 = vunpack.c.l.b16 %v1135
      %v1243 = vunpack.c.l.b16 %v1136
      %v1244 = vunpack.c.l.b16 %v1137
      %v1245 = vunpack.c.l.b16 %v1138
      %v1246 = vunpack.c.l.b16 %v1139
      %v1247 = vunpack.c.l.b16 %v1140
      %v1248 = vunpack.c.l.b16 %v1141
      %v1249 = vpack.c.b16 %v1234, %v1233
      %v1250 = vpack.c.b16 %v1236, %v1235
      %v1251 = vpack.c.b16 %v1238, %v1237
      %v1252 = vpack.c.b16 %v1240, %v1239
      %v1253 = vpack.c.b16 %v1242, %v1241
      %v1254 = vpack.c.b16 %v1244, %v1243
      %v1255 = vpack.c.b16 %v1246, %v1245
      %v1256 = vpack.c.b16 %v1248, %v1247
      %1265 = vmatpush.bf16.msra.mxu0 %v1256
      %1266 = vmatpush.bf16.msra.mxu0 %v1255
      %1267 = vmatpush.bf16.msra.mxu0 %v1254
      %1268 = vmatpush.bf16.msra.mxu0 %v1253
      %1269 = vmatpush.bf16.msra.mxu0 %v1252
      %1270 = vmatpush.bf16.msra.mxu0 %v1251
      %1271 = vmatpush.bf16.msra.mxu0 %v1250
      %1272 = vmatpush.bf16.msra.mxu0 %v1249
      %1273 = vmatmul.bf16.gmra.mxu0 %v1184
      %v1274 = vpop.f32.mrf.mxu0
      %v1275 = vadd.f32 0.0, %v1274
      %v1276 = vpop.f32.mrf.mxu0
      %v1277 = vadd.f32 0.0, %v1276
      %1278 = vmatmul.bf16.gmra.mxu0 %v1193
      %v1279 = vpop.f32.mrf.mxu0
      %v1280 = vadd.f32 0.0, %v1279
      %v1281 = vpop.f32.mrf.mxu0
      %v1282 = vadd.f32 0.0, %v1281
      %1283 = vmatmul.bf16.gmra.mxu0 %v1202
      %v1284 = vpop.f32.mrf.mxu0
      %v1285 = vadd.f32 0.0, %v1284
      %v1286 = vpop.f32.mrf.mxu0
      %v1287 = vadd.f32 0.0, %v1286
      %1288 = vmatmul.bf16.gmra.mxu0 %v1211
      %v1289 = vpop.f32.mrf.mxu0
      %v1290 = vadd.f32 0.0, %v1289
      %v1291 = vpop.f32.mrf.mxu0
      %v1292 = vadd.f32 0.0, %v1291
      %1293 = vmatmul.bf16.gmra.mxu0 %v1210
      %v1294 = vpop.f32.mrf.mxu0
      %v1295 = vadd.f32 0.0, %v1294
      %v1296 = vpop.f32.mrf.mxu0
      %1297 = vdwg.mxu0
      %v1298 = vld [vmem:[#allocation2] sm:$0xff]
      %v1299 = vld [vmem:[#allocation2 + $0x8] sm:$0xff]
      %v1300 = vld [vmem:[#allocation2 + $0x10] sm:$0xff]
      %v1301 = vld [vmem:[#allocation2 + $0x18] sm:$0xff]
      %v1302 = vld [vmem:[#allocation2 + $0x20] sm:$0xff]
      %v1303 = vld [vmem:[#allocation2 + $0x28] sm:$0xff]
      %v1304 = vld [vmem:[#allocation2 + $0x30] sm:$0xff]
      %v1305 = vld [vmem:[#allocation2 + $0x38] sm:$0xff]
      %v1306 = vld [vmem:[#allocation2 + $0x40] sm:$0xff]
      %v1307 = vadd.f32 %v1298, %v1275
      %v1308 = vadd.f32 %v1299, %v1277
      %v1309 = vadd.f32 %v1300, %v1280
      %v1310 = vadd.f32 %v1301, %v1282
      %v1311 = vadd.f32 %v1302, %v1285
      %v1312 = vadd.f32 %v1303, %v1287
      %v1313 = vadd.f32 %v1304, %v1290
      %v1314 = vadd.f32 %v1305, %v1292
      %v1315 = vadd.f32 %v1306, %v1295
      %1316 = vst [vmem:[#allocation2] sm:$0xff] %v1307
      %1317 = vst [vmem:[#allocation2 + $0x8] sm:$0xff] %v1308
      %1318 = vst [vmem:[#allocation2 + $0x10] sm:$0xff] %v1309
      %1319 = vst [vmem:[#allocation2 + $0x18] sm:$0xff] %v1310
      %1320 = vst [vmem:[#allocation2 + $0x20] sm:$0xff] %v1311
      %1321 = vst [vmem:[#allocation2 + $0x28] sm:$0xff] %v1312
      %1322 = vst [vmem:[#allocation2 + $0x30] sm:$0xff] %v1313
      %1323 = vst [vmem:[#allocation2 + $0x38] sm:$0xff] %v1314
      %1324 = vst [vmem:[#allocation2 + $0x40] sm:$0xff] %v1315
      %v1325 = vld [vmem:[%s230 + $0x4] sm:$0xf]
      %v1326 = vld [vmem:[%s230 + $0x8] sm:$0xf]
      %v1327 = vld [vmem:[%s230 + $0xc] sm:$0xf]
      %v1328 = vld [vmem:[%s230 + $0x10] sm:$0xf]
      %v1329 = vld [vmem:[%s230 + $0x14] sm:$0xf]
      %v1330 = vld [vmem:[%s230 + $0x18] sm:$0xf]
      %v1331 = vld [vmem:[%s230 + $0x1c] sm:$0xf]
      %v1332 = vld [vmem:[%s230 + $0x20] sm:$0xf]
      %v1333 = vld [vmem:[%s230 + $0x24] sm:$0xf]
      %v1334 = vld [vmem:[%s230 + $0x28] sm:$0x1]
      %s1335 = scalar_lea.vmem %s1, 384
      %v1336 = vld [vmem:[%s1335] sm:$0xf]
      %v1337 = vld [vmem:[%s1335 + $0x4] sm:$0xf]
      %v1338 = vld [vmem:[%s1335 + $0x8] sm:$0xf]
      %v1339 = vld [vmem:[%s1335 + $0xc] sm:$0xf]
      %v1340 = vld [vmem:[%s1335 + $0x10] sm:$0xf]
      %v1341 = vld [vmem:[%s1335 + $0x14] sm:$0xf]
      %v1342 = vld [vmem:[%s1335 + $0x18] sm:$0xf]
      %v1343 = vld [vmem:[%s1335 + $0x1c] sm:$0xf]
      %v1344 = vld [vmem:[%s1335 + $0x20] sm:$0xf]
      %v1345 = vld [vmem:[%s1335 + $0x24] sm:$0xf]
      %v1346 = vld [vmem:[%s1335 + $0x28] sm:$0xf]
      %v1347 = vld [vmem:[%s1335 + $0x2c] sm:$0xf]
      %v1348 = vld [vmem:[%s1335 + $0x30] sm:$0xf]
      %v1349 = vld [vmem:[%s1335 + $0x34] sm:$0xf]
      %v1350 = vld [vmem:[%s1335 + $0x38] sm:$0xf]
      %v1351 = vld [vmem:[%s1335 + $0x3c] sm:$0xf]
      %v1362 = vunpack.c.l.b16 %v1325
      %v1363 = vunpack.c.l.b16 %v1326
      %v1364 = vunpack.c.l.b16 %v1327
      %v1365 = vunpack.c.l.b16 %v1328
      %v1366 = vunpack.c.l.b16 %v1329
      %v1367 = vunpack.c.l.b16 %v1330
      %v1368 = vunpack.c.l.b16 %v1331
      %v1369 = vunpack.c.l.b16 %v1332
      %v1370 = vunpack.c.l.b16 %v1333
      %v1371 = vunpack.c.l.b16 %v1334
      %v1372 = vpack.c.b16 %v1363, %v1362
      %v1373 = vpack.c.b16 %v1365, %v1364
      %v1374 = vpack.c.b16 %v1367, %v1366
      %v1375 = vpack.c.b16 %v1369, %v1368
      %v1376 = vpack.c.b16 %v1371, %v1370
      %v1378 = vshrl.u32 %v1372, 16
      %v1380 = vshll.u32 %v1372, 16
      %v1382 = vrot.slane %v1380, 1
      %v1383 = vor.u32 %v1378, %v1382
      %v1385 = vshll.u32 %v1373, 16
      %v1387 = vrot.slane %v1385, 1
      %v1388 = vsel %vm612, %v1383, %v1387
      %v1389 = vshrl.u32 %v1373, 16
      %v1391 = vor.u32 %v1389, %v1387
      %v1393 = vshll.u32 %v1374, 16
      %v1395 = vrot.slane %v1393, 1
      %v1396 = vsel %vm612, %v1391, %v1395
      %v1397 = vshrl.u32 %v1374, 16
      %v1399 = vor.u32 %v1397, %v1395
      %v1401 = vshll.u32 %v1375, 16
      %v1403 = vrot.slane %v1401, 1
      %v1404 = vsel %vm612, %v1399, %v1403
      %v1405 = vshrl.u32 %v1375, 16
      %v1407 = vor.u32 %v1405, %v1403
      %v1409 = vshll.u32 %v1376, 16
      %v1411 = vrot.slane %v1409, 1
      %v1412 = vsel %vm612, %v1407, %v1411
      %v1413 = vshrl.u32 %v1376, 16
      %v1415 = vor.u32 %v1413, %v1411
      %v1437 = vunpack.c.l.b16 %v1336
      %v1438 = vunpack.c.l.b16 %v1337
      %v1439 = vunpack.c.l.b16 %v1338
      %v1440 = vunpack.c.l.b16 %v1339
      %v1441 = vunpack.c.l.b16 %v1340
      %v1442 = vunpack.c.l.b16 %v1341
      %v1443 = vunpack.c.l.b16 %v1342
      %v1444 = vunpack.c.l.b16 %v1343
      %v1445 = vunpack.c.l.b16 %v1344
      %v1446 = vunpack.c.l.b16 %v1345
      %v1447 = vunpack.c.l.b16 %v1346
      %v1448 = vunpack.c.l.b16 %v1347
      %v1449 = vunpack.c.l.b16 %v1348
      %v1450 = vunpack.c.l.b16 %v1349
      %v1451 = vunpack.c.l.b16 %v1350
      %v1452 = vunpack.c.l.b16 %v1351
      %v1453 = vpack.c.b16 %v1438, %v1437
      %v1454 = vpack.c.b16 %v1440, %v1439
      %v1455 = vpack.c.b16 %v1442, %v1441
      %v1456 = vpack.c.b16 %v1444, %v1443
      %v1457 = vpack.c.b16 %v1446, %v1445
      %v1458 = vpack.c.b16 %v1448, %v1447
      %v1459 = vpack.c.b16 %v1450, %v1449
      %v1460 = vpack.c.b16 %v1452, %v1451
      %1469 = vmatpush.bf16.msra.mxu0 %v1460
      %1470 = vmatpush.bf16.msra.mxu0 %v1459
      %1471 = vmatpush.bf16.msra.mxu0 %v1458
      %1472 = vmatpush.bf16.msra.mxu0 %v1457
      %1473 = vmatpush.bf16.msra.mxu0 %v1456
      %1474 = vmatpush.bf16.msra.mxu0 %v1455
      %1475 = vmatpush.bf16.msra.mxu0 %v1454
      %1476 = vmatpush.bf16.msra.mxu0 %v1453
      %1477 = vmatmul.bf16.gmra.mxu0 %v1388
      %v1478 = vpop.f32.mrf.mxu0
      %v1479 = vadd.f32 0.0, %v1478
      %v1480 = vpop.f32.mrf.mxu0
      %v1481 = vadd.f32 0.0, %v1480
      %1482 = vmatmul.bf16.gmra.mxu0 %v1396
      %v1483 = vpop.f32.mrf.mxu0
      %v1484 = vadd.f32 0.0, %v1483
      %v1485 = vpop.f32.mrf.mxu0
      %v1486 = vadd.f32 0.0, %v1485
      %1487 = vmatmul.bf16.gmra.mxu0 %v1404
      %v1488 = vpop.f32.mrf.mxu0
      %v1489 = vadd.f32 0.0, %v1488
      %v1490 = vpop.f32.mrf.mxu0
      %v1491 = vadd.f32 0.0, %v1490
      %1492 = vmatmul.bf16.gmra.mxu0 %v1412
      %v1493 = vpop.f32.mrf.mxu0
      %v1494 = vadd.f32 0.0, %v1493
      %v1495 = vpop.f32.mrf.mxu0
      %v1496 = vadd.f32 0.0, %v1495
      %1497 = vmatmul.bf16.gmra.mxu0 %v1415
      %v1498 = vpop.f32.mrf.mxu0
      %v1499 = vadd.f32 0.0, %v1498
      %v1500 = vpop.f32.mrf.mxu0
      %1501 = vdwg.mxu0
      %v1502 = vld [vmem:[#allocation2] sm:$0xff]
      %v1503 = vld [vmem:[#allocation2 + $0x8] sm:$0xff]
      %v1504 = vld [vmem:[#allocation2 + $0x10] sm:$0xff]
      %v1505 = vld [vmem:[#allocation2 + $0x18] sm:$0xff]
      %v1506 = vld [vmem:[#allocation2 + $0x20] sm:$0xff]
      %v1507 = vld [vmem:[#allocation2 + $0x28] sm:$0xff]
      %v1508 = vld [vmem:[#allocation2 + $0x30] sm:$0xff]
      %v1509 = vld [vmem:[#allocation2 + $0x38] sm:$0xff]
      %v1510 = vld [vmem:[#allocation2 + $0x40] sm:$0xff]
      %v1511 = vadd.f32 %v1502, %v1479
      %v1512 = vadd.f32 %v1503, %v1481
      %v1513 = vadd.f32 %v1504, %v1484
      %v1514 = vadd.f32 %v1505, %v1486
      %v1515 = vadd.f32 %v1506, %v1489
      %v1516 = vadd.f32 %v1507, %v1491
      %v1517 = vadd.f32 %v1508, %v1494
      %v1518 = vadd.f32 %v1509, %v1496
      %v1519 = vadd.f32 %v1510, %v1499
      %1520 = vst [vmem:[#allocation2] sm:$0xff] %v1511
      %1521 = vst [vmem:[#allocation2 + $0x8] sm:$0xff] %v1512
      %1522 = vst [vmem:[#allocation2 + $0x10] sm:$0xff] %v1513
      %1523 = vst [vmem:[#allocation2 + $0x18] sm:$0xff] %v1514
      %1524 = vst [vmem:[#allocation2 + $0x20] sm:$0xff] %v1515
      %1525 = vst [vmem:[#allocation2 + $0x28] sm:$0xff] %v1516
      %1526 = vst [vmem:[#allocation2 + $0x30] sm:$0xff] %v1517
      %1527 = vst [vmem:[#allocation2 + $0x38] sm:$0xff] %v1518
      %1528 = vst [vmem:[#allocation2 + $0x40] sm:$0xff] %v1519
      %v1529 = vld [vmem:[%s230 + $0x2c] sm:$0xe]
      %v1530 = vld [vmem:[%s230 + $0x30] sm:$0xf]
      %v1531 = vld [vmem:[%s230 + $0x34] sm:$0xf]
      %v1532 = vld [vmem:[%s230 + $0x38] sm:$0xf]
      %v1533 = vld [vmem:[%s230 + $0x3c] sm:$0xf]
      %v1534 = vld [vmem:[%s230 + $0x40] sm:$0xf]
      %v1535 = vld [vmem:[%s230 + $0x44] sm:$0xf]
      %v1536 = vld [vmem:[%s230 + $0x48] sm:$0xf]
      %v1537 = vld [vmem:[%s230 + $0x4c] sm:$0xf]
      %v1538 = vld [vmem:[%s230 + $0x50] sm:$0x3]
      %s1539 = scalar_lea.vmem %s1, 448
      %v1540 = vld [vmem:[%s1539] sm:$0xf]
      %v1541 = vld [vmem:[%s1539 + $0x4] sm:$0xf]
      %v1542 = vld [vmem:[%s1539 + $0x8] sm:$0xf]
      %v1543 = vld [vmem:[%s1539 + $0xc] sm:$0xf]
      %v1544 = vld [vmem:[%s1539 + $0x10] sm:$0xf]
      %v1545 = vld [vmem:[%s1539 + $0x14] sm:$0xf]
      %v1546 = vld [vmem:[%s1539 + $0x18] sm:$0xf]
      %v1547 = vld [vmem:[%s1539 + $0x1c] sm:$0xf]
      %v1548 = vld [vmem:[%s1539 + $0x20] sm:$0xf]
      %v1549 = vld [vmem:[%s1539 + $0x24] sm:$0xf]
      %v1550 = vld [vmem:[%s1539 + $0x28] sm:$0xf]
      %v1551 = vld [vmem:[%s1539 + $0x2c] sm:$0xf]
      %v1552 = vld [vmem:[%s1539 + $0x30] sm:$0xf]
      %v1553 = vld [vmem:[%s1539 + $0x34] sm:$0xf]
      %v1554 = vld [vmem:[%s1539 + $0x38] sm:$0xf]
      %v1555 = vld [vmem:[%s1539 + $0x3c] sm:$0xf]
      %v1566 = vunpack.c.l.b16 %v1529
      %v1567 = vunpack.c.l.b16 %v1530
      %v1568 = vunpack.c.l.b16 %v1531
      %v1569 = vunpack.c.l.b16 %v1532
      %v1570 = vunpack.c.l.b16 %v1533
      %v1571 = vunpack.c.l.b16 %v1534
      %v1572 = vunpack.c.l.b16 %v1535
      %v1573 = vunpack.c.l.b16 %v1536
      %v1574 = vunpack.c.l.b16 %v1537
      %v1575 = vunpack.c.l.b16 %v1538
      %v1576 = vpack.c.b16 %v1567, %v1566
      %v1577 = vpack.c.b16 %v1569, %v1568
      %v1578 = vpack.c.b16 %v1571, %v1570
      %v1579 = vpack.c.b16 %v1573, %v1572
      %v1580 = vpack.c.b16 %v1575, %v1574
      %vm1581 = vsmask.f32 6400
      %v1583 = vshrl.u32 %v1576, 16
      %v1585 = vrot.slane %v1583, 1
      %v1586 = vshll.u32 %v1576, 16
      %v1588 = vrot.slane %v1586, 2
      %v1589 = vor.u32 %v1585, %v1588
      %v1591 = vshrl.u32 %v1577, 16
      %v1593 = vrot.slane %v1591, 1
      %v1594 = vshll.u32 %v1577, 16
      %v1596 = vrot.slane %v1594, 2
      %v1597 = vor.u32 %v1593, %v1596
      %v1598 = vsel %vm1581, %v1589, %v1597
      %v1600 = vshrl.u32 %v1578, 16
      %v1602 = vrot.slane %v1600, 1
      %v1603 = vshll.u32 %v1578, 16
      %v1605 = vrot.slane %v1603, 2
      %v1606 = vor.u32 %v1602, %v1605
      %v1607 = vsel %vm1581, %v1597, %v1606
      %v1609 = vshrl.u32 %v1579, 16
      %v1611 = vrot.slane %v1609, 1
      %v1612 = vshll.u32 %v1579, 16
      %v1614 = vrot.slane %v1612, 2
      %v1615 = vor.u32 %v1611, %v1614
      %v1616 = vsel %vm1581, %v1606, %v1615
      %v1618 = vshrl.u32 %v1580, 16
      %v1620 = vrot.slane %v1618, 1
      %v1621 = vshll.u32 %v1580, 16
      %v1623 = vrot.slane %v1621, 2
      %v1624 = vor.u32 %v1620, %v1623
      %v1625 = vsel %vm1581, %v1615, %v1624
      %v1647 = vunpack.c.l.b16 %v1540
      %v1648 = vunpack.c.l.b16 %v1541
      %v1649 = vunpack.c.l.b16 %v1542
      %v1650 = vunpack.c.l.b16 %v1543
      %v1651 = vunpack.c.l.b16 %v1544
      %v1652 = vunpack.c.l.b16 %v1545
      %v1653 = vunpack.c.l.b16 %v1546
      %v1654 = vunpack.c.l.b16 %v1547
      %v1655 = vunpack.c.l.b16 %v1548
      %v1656 = vunpack.c.l.b16 %v1549
      %v1657 = vunpack.c.l.b16 %v1550
      %v1658 = vunpack.c.l.b16 %v1551
      %v1659 = vunpack.c.l.b16 %v1552
      %v1660 = vunpack.c.l.b16 %v1553
      %v1661 = vunpack.c.l.b16 %v1554
      %v1662 = vunpack.c.l.b16 %v1555
      %v1663 = vpack.c.b16 %v1648, %v1647
      %v1664 = vpack.c.b16 %v1650, %v1649
      %v1665 = vpack.c.b16 %v1652, %v1651
      %v1666 = vpack.c.b16 %v1654, %v1653
      %v1667 = vpack.c.b16 %v1656, %v1655
      %v1668 = vpack.c.b16 %v1658, %v1657
      %v1669 = vpack.c.b16 %v1660, %v1659
      %v1670 = vpack.c.b16 %v1662, %v1661
      %1679 = vmatpush.bf16.msra.mxu0 %v1670
      %1680 = vmatpush.bf16.msra.mxu0 %v1669
      %1681 = vmatpush.bf16.msra.mxu0 %v1668
      %1682 = vmatpush.bf16.msra.mxu0 %v1667
      %1683 = vmatpush.bf16.msra.mxu0 %v1666
      %1684 = vmatpush.bf16.msra.mxu0 %v1665
      %1685 = vmatpush.bf16.msra.mxu0 %v1664
      %1686 = vmatpush.bf16.msra.mxu0 %v1663
      %1687 = vmatmul.bf16.gmra.mxu0 %v1598
      %v1688 = vpop.f32.mrf.mxu0
      %v1689 = vadd.f32 0.0, %v1688
      %v1690 = vpop.f32.mrf.mxu0
      %v1691 = vadd.f32 0.0, %v1690
      %1692 = vmatmul.bf16.gmra.mxu0 %v1607
      %v1693 = vpop.f32.mrf.mxu0
      %v1694 = vadd.f32 0.0, %v1693
      %v1695 = vpop.f32.mrf.mxu0
      %v1696 = vadd.f32 0.0, %v1695
      %1697 = vmatmul.bf16.gmra.mxu0 %v1616
      %v1698 = vpop.f32.mrf.mxu0
      %v1699 = vadd.f32 0.0, %v1698
      %v1700 = vpop.f32.mrf.mxu0
      %v1701 = vadd.f32 0.0, %v1700
      %1702 = vmatmul.bf16.gmra.mxu0 %v1625
      %v1703 = vpop.f32.mrf.mxu0
      %v1704 = vadd.f32 0.0, %v1703
      %v1705 = vpop.f32.mrf.mxu0
      %v1706 = vadd.f32 0.0, %v1705
      %1707 = vmatmul.bf16.gmra.mxu0 %v1624
      %v1708 = vpop.f32.mrf.mxu0
      %v1709 = vadd.f32 0.0, %v1708
      %v1710 = vpop.f32.mrf.mxu0
      %1711 = vdwg.mxu0
      %v1712 = vld [vmem:[#allocation2] sm:$0xff]
      %v1713 = vld [vmem:[#allocation2 + $0x8] sm:$0xff]
      %v1714 = vld [vmem:[#allocation2 + $0x10] sm:$0xff]
      %v1715 = vld [vmem:[#allocation2 + $0x18] sm:$0xff]
      %v1716 = vld [vmem:[#allocation2 + $0x20] sm:$0xff]
      %v1717 = vld [vmem:[#allocation2 + $0x28] sm:$0xff]
      %v1718 = vld [vmem:[#allocation2 + $0x30] sm:$0xff]
      %v1719 = vld [vmem:[#allocation2 + $0x38] sm:$0xff]
      %v1720 = vld [vmem:[#allocation2 + $0x40] sm:$0xff]
      %v1721 = vadd.f32 %v1712, %v1689
      %v1722 = vadd.f32 %v1713, %v1691
      %v1723 = vadd.f32 %v1714, %v1694
      %v1724 = vadd.f32 %v1715, %v1696
      %v1725 = vadd.f32 %v1716, %v1699
      %v1726 = vadd.f32 %v1717, %v1701
      %v1727 = vadd.f32 %v1718, %v1704
      %v1728 = vadd.f32 %v1719, %v1706
      %v1729 = vadd.f32 %v1720, %v1709
      %1730 = vst [vmem:[#allocation2] sm:$0xff] %v1721
      %1731 = vst [vmem:[#allocation2 + $0x8] sm:$0xff] %v1722
      %1732 = vst [vmem:[#allocation2 + $0x10] sm:$0xff] %v1723
      %1733 = vst [vmem:[#allocation2 + $0x18] sm:$0xff] %v1724
      %1734 = vst [vmem:[#allocation2 + $0x20] sm:$0xff] %v1725
      %1735 = vst [vmem:[#allocation2 + $0x28] sm:$0xff] %v1726
      %1736 = vst [vmem:[#allocation2 + $0x30] sm:$0xff] %v1727
      %1737 = vst [vmem:[#allocation2 + $0x38] sm:$0xff] %v1728
      %1738 = vst [vmem:[#allocation2 + $0x40] sm:$0xff] %v1729
      %v1739 = vld [vmem:[%s230 + $0x4] sm:$0xe]
      %v1740 = vld [vmem:[%s230 + $0x8] sm:$0xf]
      %v1741 = vld [vmem:[%s230 + $0xc] sm:$0xf]
      %v1742 = vld [vmem:[%s230 + $0x10] sm:$0xf]
      %v1743 = vld [vmem:[%s230 + $0x14] sm:$0xf]
      %v1744 = vld [vmem:[%s230 + $0x18] sm:$0xf]
      %v1745 = vld [vmem:[%s230 + $0x1c] sm:$0xf]
      %v1746 = vld [vmem:[%s230 + $0x20] sm:$0xf]
      %v1747 = vld [vmem:[%s230 + $0x24] sm:$0xf]
      %v1748 = vld [vmem:[%s230 + $0x28] sm:$0x1]
      %s1749 = scalar_lea.vmem %s1, 512
      %v1750 = vld [vmem:[%s1749] sm:$0xf]
      %v1751 = vld [vmem:[%s1749 + $0x4] sm:$0xf]
      %v1752 = vld [vmem:[%s1749 + $0x8] sm:$0xf]
      %v1753 = vld [vmem:[%s1749 + $0xc] sm:$0xf]
      %v1754 = vld [vmem:[%s1749 + $0x10] sm:$0xf]
      %v1755 = vld [vmem:[%s1749 + $0x14] sm:$0xf]
      %v1756 = vld [vmem:[%s1749 + $0x18] sm:$0xf]
      %v1757 = vld [vmem:[%s1749 + $0x1c] sm:$0xf]
      %v1758 = vld [vmem:[%s1749 + $0x20] sm:$0xf]
      %v1759 = vld [vmem:[%s1749 + $0x24] sm:$0xf]
      %v1760 = vld [vmem:[%s1749 + $0x28] sm:$0xf]
      %v1761 = vld [vmem:[%s1749 + $0x2c] sm:$0xf]
      %v1762 = vld [vmem:[%s1749 + $0x30] sm:$0xf]
      %v1763 = vld [vmem:[%s1749 + $0x34] sm:$0xf]
      %v1764 = vld [vmem:[%s1749 + $0x38] sm:$0xf]
      %v1765 = vld [vmem:[%s1749 + $0x3c] sm:$0xf]
      %v1776 = vunpack.c.l.b16 %v1739
      %v1777 = vunpack.c.l.b16 %v1740
      %v1778 = vunpack.c.l.b16 %v1741
      %v1779 = vunpack.c.l.b16 %v1742
      %v1780 = vunpack.c.l.b16 %v1743
      %v1781 = vunpack.c.l.b16 %v1744
      %v1782 = vunpack.c.l.b16 %v1745
      %v1783 = vunpack.c.l.b16 %v1746
      %v1784 = vunpack.c.l.b16 %v1747
      %v1785 = vunpack.c.l.b16 %v1748
      %v1786 = vpack.c.b16 %v1777, %v1776
      %v1787 = vpack.c.b16 %v1779, %v1778
      %v1788 = vpack.c.b16 %v1781, %v1780
      %v1789 = vpack.c.b16 %v1783, %v1782
      %v1790 = vpack.c.b16 %v1785, %v1784
      %v1791 = vrot.slane %v1786, 1
      %v1792 = vrot.slane %v1787, 1
      %v1793 = vsel %vm437, %v1791, %v1792
      %v1794 = vrot.slane %v1788, 1
      %v1795 = vsel %vm437, %v1792, %v1794
      %v1796 = vrot.slane %v1789, 1
      %v1797 = vsel %vm437, %v1794, %v1796
      %v1798 = vrot.slane %v1790, 1
      %v1799 = vsel %vm437, %v1796, %v1798
      %v1821 = vunpack.c.l.b16 %v1750
      %v1822 = vunpack.c.l.b16 %v1751
      %v1823 = vunpack.c.l.b16 %v1752
      %v1824 = vunpack.c.l.b16 %v1753
      %v1825 = vunpack.c.l.b16 %v1754
      %v1826 = vunpack.c.l.b16 %v1755
      %v1827 = vunpack.c.l.b16 %v1756
      %v1828 = vunpack.c.l.b16 %v1757
      %v1829 = vunpack.c.l.b16 %v1758
      %v1830 = vunpack.c.l.b16 %v1759
      %v1831 = vunpack.c.l.b16 %v1760
      %v1832 = vunpack.c.l.b16 %v1761
      %v1833 = vunpack.c.l.b16 %v1762
      %v1834 = vunpack.c.l.b16 %v1763
      %v1835 = vunpack.c.l.b16 %v1764
      %v1836 = vunpack.c.l.b16 %v1765
      %v1837 = vpack.c.b16 %v1822, %v1821
      %v1838 = vpack.c.b16 %v1824, %v1823
      %v1839 = vpack.c.b16 %v1826, %v1825
      %v1840 = vpack.c.b16 %v1828, %v1827
      %v1841 = vpack.c.b16 %v1830, %v1829
      %v1842 = vpack.c.b16 %v1832, %v1831
      %v1843 = vpack.c.b16 %v1834, %v1833
      %v1844 = vpack.c.b16 %v1836, %v1835
      %1853 = vmatpush.bf16.msra.mxu0 %v1844
      %1854 = vmatpush.bf16.msra.mxu0 %v1843
      %1855 = vmatpush.bf16.msra.mxu0 %v1842
      %1856 = vmatpush.bf16.msra.mxu0 %v1841
      %1857 = vmatpush.bf16.msra.mxu0 %v1840
      %1858 = vmatpush.bf16.msra.mxu0 %v1839
      %1859 = vmatpush.bf16.msra.mxu0 %v1838
      %1860 = vmatpush.bf16.msra.mxu0 %v1837
      %1861 = vmatmul.bf16.gmra.mxu0 %v1793
      %v1862 = vpop.f32.mrf.mxu0
      %v1863 = vadd.f32 0.0, %v1862
      %v1864 = vpop.f32.mrf.mxu0
      %v1865 = vadd.f32 0.0, %v1864
      %1866 = vmatmul.bf16.gmra.mxu0 %v1795
      %v1867 = vpop.f32.mrf.mxu0
      %v1868 = vadd.f32 0.0, %v1867
      %v1869 = vpop.f32.mrf.mxu0
      %v1870 = vadd.f32 0.0, %v1869
      %1871 = vmatmul.bf16.gmra.mxu0 %v1797
      %v1872 = vpop.f32.mrf.mxu0
      %v1873 = vadd.f32 0.0, %v1872
      %v1874 = vpop.f32.mrf.mxu0
      %v1875 = vadd.f32 0.0, %v1874
      %1876 = vmatmul.bf16.gmra.mxu0 %v1799
      %v1877 = vpop.f32.mrf.mxu0
      %v1878 = vadd.f32 0.0, %v1877
      %v1879 = vpop.f32.mrf.mxu0
      %v1880 = vadd.f32 0.0, %v1879
      %1881 = vmatmul.bf16.gmra.mxu0 %v1798
      %v1882 = vpop.f32.mrf.mxu0
      %v1883 = vadd.f32 0.0, %v1882
      %v1884 = vpop.f32.mrf.mxu0
      %1885 = vdwg.mxu0
      %v1886 = vld [vmem:[#allocation2] sm:$0xff]
      %v1887 = vld [vmem:[#allocation2 + $0x8] sm:$0xff]
      %v1888 = vld [vmem:[#allocation2 + $0x10] sm:$0xff]
      %v1889 = vld [vmem:[#allocation2 + $0x18] sm:$0xff]
      %v1890 = vld [vmem:[#allocation2 + $0x20] sm:$0xff]
      %v1891 = vld [vmem:[#allocation2 + $0x28] sm:$0xff]
      %v1892 = vld [vmem:[#allocation2 + $0x30] sm:$0xff]
      %v1893 = vld [vmem:[#allocation2 + $0x38] sm:$0xff]
      %v1894 = vld [vmem:[#allocation2 + $0x40] sm:$0xff]
      %v1895 = vadd.f32 %v1886, %v1863
      %v1896 = vadd.f32 %v1887, %v1865
      %v1897 = vadd.f32 %v1888, %v1868
      %v1898 = vadd.f32 %v1889, %v1870
      %v1899 = vadd.f32 %v1890, %v1873
      %v1900 = vadd.f32 %v1891, %v1875
      %v1901 = vadd.f32 %v1892, %v1878
      %v1902 = vadd.f32 %v1893, %v1880
      %v1903 = vadd.f32 %v1894, %v1883
      %1904 = vst [vmem:[#allocation2] sm:$0xff] %v1895
      %1905 = vst [vmem:[#allocation2 + $0x8] sm:$0xff] %v1896
      %1906 = vst [vmem:[#allocation2 + $0x10] sm:$0xff] %v1897
      %1907 = vst [vmem:[#allocation2 + $0x18] sm:$0xff] %v1898
      %1908 = vst [vmem:[#allocation2 + $0x20] sm:$0xff] %v1899
      %1909 = vst [vmem:[#allocation2 + $0x28] sm:$0xff] %v1900
      %1910 = vst [vmem:[#allocation2 + $0x30] sm:$0xff] %v1901
      %1911 = vst [vmem:[#allocation2 + $0x38] sm:$0xff] %v1902
      %1912 = vst [vmem:[#allocation2 + $0x40] sm:$0xff] %v1903
      %v1913 = vld [vmem:[#allocation2] sm:$0xff]
      %v1914 = vld [vmem:[#allocation2 + $0x8] sm:$0xff]
      %v1915 = vld [vmem:[#allocation2 + $0x10] sm:$0xff]
      %v1916 = vld [vmem:[#allocation2 + $0x18] sm:$0xff]
      %v1917 = vld [vmem:[#allocation2 + $0x20] sm:$0xff]
      %v1918 = vld [vmem:[#allocation2 + $0x28] sm:$0xff]
      %v1919 = vld [vmem:[#allocation2 + $0x30] sm:$0xff]
      %v1920 = vld [vmem:[#allocation2 + $0x38] sm:$0xff]
      %v1921 = vld [vmem:[#allocation2 + $0x40] sm:$0xff]
      %v1922 = vpack.c.bf16 %v1913, %v1913
      %v1923 = vpack.c.bf16 %v1914, %v1914
      %v1924 = vpack.c.bf16 %v1915, %v1915
      %v1925 = vpack.c.bf16 %v1916, %v1916
      %v1926 = vpack.c.bf16 %v1917, %v1917
      %v1927 = vpack.c.bf16 %v1918, %v1918
      %v1928 = vpack.c.bf16 %v1919, %v1919
      %v1929 = vpack.c.bf16 %v1920, %v1920
      %v1930 = vpack.c.bf16 %v1921, %v1921
      %1931 = vst [vmem:[%s235] sm:$0xf] %v1922
      %1932 = vst [vmem:[%s235 + $0x4] sm:$0xf] %v1923
      %1933 = vst [vmem:[%s235 + $0x8] sm:$0xf] %v1924
      %1934 = vst [vmem:[%s235 + $0xc] sm:$0xf] %v1925
      %1935 = vst [vmem:[%s235 + $0x10] sm:$0xf] %v1926
      %1936 = vst [vmem:[%s235 + $0x14] sm:$0xf] %v1927
      %1937 = vst [vmem:[%s235 + $0x18] sm:$0xf] %v1928
      %1938 = vst [vmem:[%s235 + $0x1c] sm:$0xf] %v1929
      %1939 = vst [vmem:[%s235 + $0x20] sm:$0xf] %v1930
      %v1940 = vld [vmem:[%s2] sm:$0xff]
      %v1941 = vld [vmem:[%s2 + $0x8] sm:$0xff]
      %v1942 = vld [vmem:[%s2 + $0x10] sm:$0xff]
      %v1943 = vld [vmem:[%s2 + $0x18] sm:$0xff]
      %v1944 = vld [vmem:[%s2 + $0x20] sm:$0xff]
      %v1945 = vld [vmem:[%s2 + $0x28] sm:$0xff]
      %v1946 = vld [vmem:[%s2 + $0x30] sm:$0xff]
      %v1947 = vld [vmem:[%s2 + $0x38] sm:$0xff]
      %v1948 = vld [vmem:[%s2 + $0x40] sm:$0xff]
      %1950 = vset.pattern.permute.xlu0 0
      %1951 = vperm.xlu0 %1950, %v1940
      %v1952 = vpop.permute.xlu0 %1951
      %1955 = vset.pattern.permute.xlu0 0
      %1956 = vperm.xlu0 %1955, %v1941
      %v1957 = vpop.permute.xlu0 %1956
      %1960 = vset.pattern.permute.xlu0 0
      %1961 = vperm.xlu0 %1960, %v1942
      %v1962 = vpop.permute.xlu0 %1961
      %1965 = vset.pattern.permute.xlu0 0
      %1966 = vperm.xlu0 %1965, %v1943
      %v1967 = vpop.permute.xlu0 %1966
      %1970 = vset.pattern.permute.xlu0 0
      %1971 = vperm.xlu0 %1970, %v1944
      %v1972 = vpop.permute.xlu0 %1971
      %1975 = vset.pattern.permute.xlu0 0
      %1976 = vperm.xlu0 %1975, %v1945
      %v1977 = vpop.permute.xlu0 %1976
      %1980 = vset.pattern.permute.xlu0 0
      %1981 = vperm.xlu0 %1980, %v1946
      %v1982 = vpop.permute.xlu0 %1981
      %1985 = vset.pattern.permute.xlu0 0
      %1986 = vperm.xlu0 %1985, %v1947
      %v1987 = vpop.permute.xlu0 %1986
      %1990 = vset.pattern.permute.xlu0 0
      %1991 = vperm.xlu0 %1990, %v1948
      %v1992 = vpop.permute.xlu0 %1991
      %v1994 = vmul.f32 %v1913, %v1952
      %v1995 = vmul.f32 %v1914, %v1957
      %v1996 = vmul.f32 %v1915, %v1962
      %v1997 = vmul.f32 %v1916, %v1967
      %v1998 = vmul.f32 %v1917, %v1972
      %v1999 = vmul.f32 %v1918, %v1977
      %v2000 = vmul.f32 %v1919, %v1982
      %v2001 = vmul.f32 %v1920, %v1987
      %v2002 = vmul.f32 %v1921, %v1992
      %v2003 = vadd.f32 %v1994, %v1995
      %v2004 = vadd.f32 %v2003, %v1996
      %v2005 = vadd.f32 %v2004, %v1997
      %v2006 = vadd.f32 %v2005, %v1998
      %v2007 = vadd.f32 %v2006, %v1999
      %v2008 = vadd.f32 %v2007, %v2000
      %v2009 = vadd.f32 %v2008, %v2001
      %v2010 = vadd.f32 %v2009, %v2002
      %v2011 = vrot.slane %v2010, 4
      %v2012 = vadd.f32 %v2010, %v2011
      %v2013 = vrot.slane %v2012, 2
      %v2014 = vadd.f32 %v2012, %v2013
      %v2015 = vrot.slane %v2014, 1
      %v2016 = vadd.f32 %v2014, %v2015
      %2017 = vst [vmem:[%s238] sm:$0x1] %v2016
      %v2018 = vmul.f32 %v1913, %v1913
      %v2019 = vmul.f32 %v1914, %v1914
      %v2020 = vmul.f32 %v1915, %v1915
      %v2021 = vmul.f32 %v1916, %v1916
      %v2022 = vmul.f32 %v1917, %v1917
      %v2023 = vmul.f32 %v1918, %v1918
      %v2024 = vmul.f32 %v1919, %v1919
      %v2025 = vmul.f32 %v1920, %v1920
      %v2026 = vmul.f32 %v1921, %v1921
      %v2027 = vmul.f32 %v2018, %v1952
      %v2028 = vmul.f32 %v2019, %v1957
      %v2029 = vmul.f32 %v2020, %v1962
      %v2030 = vmul.f32 %v2021, %v1967
      %v2031 = vmul.f32 %v2022, %v1972
      %v2032 = vmul.f32 %v2023, %v1977
      %v2033 = vmul.f32 %v2024, %v1982
      %v2034 = vmul.f32 %v2025, %v1987
      %v2035 = vmul.f32 %v2026, %v1992
      %v2036 = vadd.f32 %v2027, %v2028
      %v2037 = vadd.f32 %v2036, %v2029
      %v2038 = vadd.f32 %v2037, %v2030
      %v2039 = vadd.f32 %v2038, %v2031
      %v2040 = vadd.f32 %v2039, %v2032
      %v2041 = vadd.f32 %v2040, %v2033
      %v2042 = vadd.f32 %v2041, %v2034
      %v2043 = vadd.f32 %v2042, %v2035
      %v2044 = vrot.slane %v2043, 4
      %v2045 = vadd.f32 %v2043, %v2044
      %v2046 = vrot.slane %v2045, 2
      %v2047 = vadd.f32 %v2045, %v2046
      %v2048 = vrot.slane %v2047, 1
      %v2049 = vadd.f32 %v2047, %v2048
      %2050 = vst [vmem:[%s241] sm:$0x1] %v2049
      %p2051 = scmp.lt.s32.totalorder %s17, 1
      %s2052 = scalar_select %p2051, %s17, 1
      %s2053 = smul.addr %s2052, 9
      %s2054 = smul.addr %s2053, 4
      %s2055 = scalar_lea.vmem %s3, %s2054
      %p2056 = scmp.lt.s32.totalorder %s17, 1
      %s2057 = scalar_select %p2056, %s17, 1
      %s2058 = scalar_lea.vmem %s4, %s2057
      %p2059 = scmp.lt.s32.totalorder %s17, 1
      %s2060 = scalar_select %p2059, %s17, 1
      %s2061 = scalar_lea.vmem %s5, %s2060
      // Predicated region
      $region33: #{_lambda_.4} parent=31 // pred_check
        %p2062 = pneg %p103
      $region34: #{_lambda_.4} parent=31 // pred_check_branch
        %2064 = sbr.rel (%p2062) target = $region36
      $region35: #{_lambda_.4} parent=31 // pred_region
        _
      $region36: #{_lambda_.4} parent=31 // pred_fallthru
        _
      // Predicated region
      $region37: #{_lambda_.4} parent=31 // pred_check
        %p2065 = pneg %p129
      $region38: #{_lambda_.4} parent=31 // pred_check_branch
        %2067 = sbr.rel (%p2065) target = $region40
      $region39: #{_lambda_.4} parent=31 // pred_region
        _
      $region40: #{_lambda_.4} parent=31 // pred_fallthru
        _
      // Predicated region
      $region41: #{_lambda_.4} parent=31 // pred_check
        %p2068 = pneg %p155
      $region42: #{_lambda_.4} parent=31 // pred_check_branch
        %2070 = sbr.rel (%p2068) target = $region44
      $region43: #{_lambda_.4} parent=31 // pred_region
        _
      $region44: #{_lambda_.4} parent=31 // pred_fallthru
        _
    $region32: #{_lambda_.4} parent=5 // pred_fallthru
      _
    %p2071 = scmp.le.s32.totalorder 2, %s12
    // Predicated region
    $region45: #{_lambda_.4} parent=5 // pred_check
      %p2072 = pneg %p2071
    $region46: #{_lambda_.4} parent=5 // pred_check_branch
      %2074 = sbr.rel (%p2072) target = $region48
    $region47: #{_lambda_.4} parent=5 // pred_region
      %s2075 = ssub.s32 %s12, 2
      // Predicated region
      $region49: #{_lambda_.4} parent=47 // pred_check
        %p2076 = pneg %p109
      $region50: #{_lambda_.4} parent=47 // pred_check_branch
        %2078 = sbr.rel (%p2076) target = $region52
      $region51: #{_lambda_.4} parent=47 // pred_region
        %p2079 = scmp.lt.s32.totalorder %s18, 1
        %s2080 = scalar_select %p2079, %s18, 1
        %s2081 = smul.addr %s2080, 9
        %s2082 = smul.addr %s2081, 4
        %s2083 = scalar_lea.vmem %s3, %s2082
      $region52: #{_lambda_.4} parent=47 // pred_fallthru
        _
      // Predicated region
      $region53: #{_lambda_.4} parent=47 // pred_check
        %p2084 = pneg %p135
      $region54: #{_lambda_.4} parent=47 // pred_check_branch
        %2086 = sbr.rel (%p2084) target = $region56
      $region55: #{_lambda_.4} parent=47 // pred_region
        %p2087 = scmp.lt.s32.totalorder %s18, 1
        %s2088 = scalar_select %p2087, %s18, 1
        %s2089 = scalar_lea.vmem %s4, %s2088
      $region56: #{_lambda_.4} parent=47 // pred_fallthru
        _
      // Predicated region
      $region57: #{_lambda_.4} parent=47 // pred_check
        %p2090 = pneg %p161
      $region58: #{_lambda_.4} parent=47 // pred_check_branch
        %2092 = sbr.rel (%p2090) target = $region60
      $region59: #{_lambda_.4} parent=47 // pred_region
        %p2093 = scmp.lt.s32.totalorder %s18, 1
        %s2094 = scalar_select %p2093, %s18, 1
        %s2095 = scalar_lea.vmem %s5, %s2094
      $region60: #{_lambda_.4} parent=47 // pred_fallthru
        _
    $region48: #{_lambda_.4} parent=5 // pred_fallthru
      _
  $region6: #{_lambda_.4} parent=0 // loop_footer
    %s16 = sadd.s32 1, %s12
  $region7: #{_lambda_.4} parent=0 // loop_footer_branch
    %11 = sbr.rel target = $region3
  $region8: #{_lambda_.4} parent=0 // loop_exit
    _

// kernel: _lambda_.7
$region0: #{_lambda_.7}
  #allocation0 [shape = 'u32[]', space=smem, size = 0x4, offset = 0x4, fixed_abs, tag = 'smem constant byte address 0x4 - core index']
  #allocation1 [shape = 'u32[72,128]{1,0:T(1,128)}', space=vmem, size = 0x9000, scoped, tag = 'internal scratch']
  %s0 = inlined_call_operand.vmem [shape: bf16[2,80,128], index: 0, kind: input, shape index: {}]
  %s1 = inlined_call_operand.vmem [shape: bf16[2,80,128], index: 1, kind: input, shape index: {}]
  %s2 = inlined_call_operand.vmem [shape: f32[1,128], index: 2, kind: input, shape index: {}]
  %s3 = inlined_call_operand.vmem [shape: f32[1,128], index: 3, kind: input, shape index: {}]
  %s4 = inlined_call_operand.vmem [shape: f32[1,128], index: 4, kind: input, shape index: {}]
  %s5 = inlined_call_operand.vmem [shape: f32[1,128], index: 5, kind: input, shape index: {}]
  %s6 = inlined_call_operand.vmem [shape: bf16[2,80,128], index: 6, kind: output, shape index: {}]
  %s7 = sld [smem:[#allocation0]]
  $region57: #{_lambda_.7} parent=0
    _
  %s9 = ssub.s32 1, %s7
  %s10 = scalar_select 0, %s9, %s7
  loop: start=0, step=1, limit=4
  $region2: #{_lambda_.7} parent=0 // loop_pre_header
    _
  $region3: #{_lambda_.7} parent=0 // loop_header
    %s12 = sphi 0, %s16
    %p13 = scmp.ge.s32.totalorder %s12, 4
    %s22 = sphi 0, %s24
    %s25 = sphi 0, %s22
    %s26 = sphi 0, %s25
    %s42 = sphi 0, %s26
    %s48 = sphi 0, %s50
    %s51 = sphi 0, %s48
    %s52 = sphi 0, %s51
    %s68 = sphi 0, %s52
    %s72 = sphi 0, %s72
    %s74 = sphi 0, %s72
    %s75 = sphi 0, %s74
    %s89 = sphi 0, %s75
    %s93 = sphi 0, %s93
    %s95 = sphi 0, %s93
    %s96 = sphi 0, %s95
    %s110 = sphi 0, %s96
    %s114 = sphi 0, %s114
    %s116 = sphi 0, %s114
    %s117 = sphi 0, %s116
    %s131 = sphi 0, %s117
    %s135 = sphi 0, %s135
    %s137 = sphi 0, %s135
    %s138 = sphi 0, %s137
    %s152 = sphi 0, %s138
    %s158 = sphi 0, %s160
    %s161 = sphi 0, %s158
    %s162 = sphi 0, %s161
    %s178 = sphi 0, %s162
  $region4: #{_lambda_.7} parent=0 // loop_header_branch
    %15 = sbr.rel (%p13) target = $region8
  $region5: #{_lambda_.7} parent=0 // loop_body
    %s17 = ssub.s32 %s12, 1
    %s18 = ssub.s32 %s12, 2
    %s19 = sadd.s32 %s12, 1
    %s20 = ssub.s32 %s12, %s19
    %p21 = scmp.eq.s32.totalorder %s20, 0
    %s23 = sadd.s32 %s22, 1
    %s24 = scalar_select %p21, %s22, %s23
    %p27 = pneg %p21
    %p28 = scmp.eq.s32.totalorder %s12, 1
    %p29 = por %p27, %p28
    %p30 = scmp.ne.s32.totalorder %s22, %s25
    %p31 = scmp.eq.s32.totalorder %s12, 0
    %p32 = por %p30, %p31
    %p33 = scmp.ne.s32.totalorder %s22, %s25
    %p34 = scmp.eq.s32.totalorder %s17, 1
    %p35 = por %p33, %p34
    %p36 = scmp.ne.s32.totalorder %s25, %s26
    %p37 = scmp.eq.s32.totalorder %s17, 0
    %p38 = por %p36, %p37
    %p39 = scmp.ne.s32.totalorder %s25, %s26
    %p40 = scmp.eq.s32.totalorder %s18, 1
    %p41 = por %p39, %p40
    %p43 = scmp.ne.s32.totalorder %s26, %s42
    %p44 = scmp.eq.s32.totalorder %s18, 0
    %p45 = por %p43, %p44
    %s46 = ssub.s32 %s12, %s19
    %p47 = scmp.eq.s32.totalorder %s46, 0
    %s49 = sadd.s32 %s48, 1
    %s50 = scalar_select %p47, %s48, %s49
    %p53 = pneg %p47
    %p54 = scmp.eq.s32.totalorder %s12, 1
    %p55 = por %p53, %p54
    %p56 = scmp.ne.s32.totalorder %s48, %s51
    %p57 = scmp.eq.s32.totalorder %s12, 0
    %p58 = por %p56, %p57
    %p59 = scmp.ne.s32.totalorder %s48, %s51
    %p60 = scmp.eq.s32.totalorder %s17, 1
    %p61 = por %p59, %p60
    %p62 = scmp.ne.s32.totalorder %s51, %s52
    %p63 = scmp.eq.s32.totalorder %s17, 0
    %p64 = por %p62, %p63
    %p65 = scmp.ne.s32.totalorder %s51, %s52
    %p66 = scmp.eq.s32.totalorder %s18, 1
    %p67 = por %p65, %p66
    %p69 = scmp.ne.s32.totalorder %s52, %s68
    %p70 = scmp.eq.s32.totalorder %s18, 0
    %p71 = por %p69, %p70
    %s73 = sadd.s32 %s72, 1
    %p76 = scmp.eq.s32.totalorder %s12, 1
    %p77 = scmp.ne.s32.totalorder %s72, %s74
    %p78 = scmp.eq.s32.totalorder %s12, 0
    %p79 = por %p77, %p78
    %p80 = scmp.ne.s32.totalorder %s72, %s74
    %p81 = scmp.eq.s32.totalorder %s17, 1
    %p82 = por %p80, %p81
    %p83 = scmp.ne.s32.totalorder %s74, %s75
    %p84 = scmp.eq.s32.totalorder %s17, 0
    %p85 = por %p83, %p84
    %p86 = scmp.ne.s32.totalorder %s74, %s75
    %p87 = scmp.eq.s32.totalorder %s18, 1
    %p88 = por %p86, %p87
    %p90 = scmp.ne.s32.totalorder %s75, %s89
    %p91 = scmp.eq.s32.totalorder %s18, 0
    %p92 = por %p90, %p91
    %s94 = sadd.s32 %s93, 1
    %p97 = scmp.eq.s32.totalorder %s12, 1
    %p98 = scmp.ne.s32.totalorder %s93, %s95
    %p99 = scmp.eq.s32.totalorder %s12, 0
    %p100 = por %p98, %p99
    %p101 = scmp.ne.s32.totalorder %s93, %s95
    %p102 = scmp.eq.s32.totalorder %s17, 1
    %p103 = por %p101, %p102
    %p104 = scmp.ne.s32.totalorder %s95, %s96
    %p105 = scmp.eq.s32.totalorder %s17, 0
    %p106 = por %p104, %p105
    %p107 = scmp.ne.s32.totalorder %s95, %s96
    %p108 = scmp.eq.s32.totalorder %s18, 1
    %p109 = por %p107, %p108
    %p111 = scmp.ne.s32.totalorder %s96, %s110
    %p112 = scmp.eq.s32.totalorder %s18, 0
    %p113 = por %p111, %p112
    %s115 = sadd.s32 %s114, 1
    %p118 = scmp.eq.s32.totalorder %s12, 1
    %p119 = scmp.ne.s32.totalorder %s114, %s116
    %p120 = scmp.eq.s32.totalorder %s12, 0
    %p121 = por %p119, %p120
    %p122 = scmp.ne.s32.totalorder %s114, %s116
    %p123 = scmp.eq.s32.totalorder %s17, 1
    %p124 = por %p122, %p123
    %p125 = scmp.ne.s32.totalorder %s116, %s117
    %p126 = scmp.eq.s32.totalorder %s17, 0
    %p127 = por %p125, %p126
    %p128 = scmp.ne.s32.totalorder %s116, %s117
    %p129 = scmp.eq.s32.totalorder %s18, 1
    %p130 = por %p128, %p129
    %p132 = scmp.ne.s32.totalorder %s117, %s131
    %p133 = scmp.eq.s32.totalorder %s18, 0
    %p134 = por %p132, %p133
    %s136 = sadd.s32 %s135, 1
    %p139 = scmp.eq.s32.totalorder %s12, 1
    %p140 = scmp.ne.s32.totalorder %s135, %s137
    %p141 = scmp.eq.s32.totalorder %s12, 0
    %p142 = por %p140, %p141
    %p143 = scmp.ne.s32.totalorder %s135, %s137
    %p144 = scmp.eq.s32.totalorder %s17, 1
    %p145 = por %p143, %p144
    %p146 = scmp.ne.s32.totalorder %s137, %s138
    %p147 = scmp.eq.s32.totalorder %s17, 0
    %p148 = por %p146, %p147
    %p149 = scmp.ne.s32.totalorder %s137, %s138
    %p150 = scmp.eq.s32.totalorder %s18, 1
    %p151 = por %p149, %p150
    %p153 = scmp.ne.s32.totalorder %s138, %s152
    %p154 = scmp.eq.s32.totalorder %s18, 0
    %p155 = por %p153, %p154
    %s156 = ssub.s32 %s12, %s19
    %p157 = scmp.eq.s32.totalorder %s156, 0
    %s159 = sadd.s32 %s158, 1
    %s160 = scalar_select %p157, %s158, %s159
    %p163 = pneg %p157
    %p164 = scmp.eq.s32.totalorder %s12, 1
    %p165 = por %p163, %p164
    %p166 = scmp.ne.s32.totalorder %s158, %s161
    %p167 = scmp.eq.s32.totalorder %s12, 0
    %p168 = por %p166, %p167
    %p169 = scmp.ne.s32.totalorder %s158, %s161
    %p170 = scmp.eq.s32.totalorder %s17, 1
    %p171 = por %p169, %p170
    %p172 = scmp.ne.s32.totalorder %s161, %s162
    %p173 = scmp.eq.s32.totalorder %s17, 0
    %p174 = por %p172, %p173
    %p175 = scmp.ne.s32.totalorder %s161, %s162
    %p176 = scmp.eq.s32.totalorder %s18, 1
    %p177 = por %p175, %p176
    %p179 = scmp.ne.s32.totalorder %s162, %s178
    %p180 = scmp.eq.s32.totalorder %s18, 0
    %p181 = por %p179, %p180
    %p182 = scmp.le.s32.totalorder 1, %s12
    %p183 = scmp.lt.s32.totalorder %s12, 3
    %p184 = pnand %p182, %p183
    %p185 = pneg %p184
    // Predicated region
    $region9: #{_lambda_.7} parent=5 // pred_check
      _
    $region10: #{_lambda_.7} parent=5 // pred_check_branch
      %187 = sbr.rel (%p184) target = $region12
    $region11: #{_lambda_.7} parent=5 // pred_region
      %s188 = ssub.s32 %s12, 1
      // Predicated region
      $region13: #{_lambda_.7} parent=11 // pred_check
        %p189 = pneg %p85
      $region14: #{_lambda_.7} parent=11 // pred_check_branch
        %191 = sbr.rel (%p189) target = $region16
      $region15: #{_lambda_.7} parent=11 // pred_region
        _
      $region16: #{_lambda_.7} parent=11 // pred_fallthru
        _
      // Predicated region
      $region17: #{_lambda_.7} parent=11 // pred_check
        %p192 = pneg %p106
      $region18: #{_lambda_.7} parent=11 // pred_check_branch
        %194 = sbr.rel (%p192) target = $region20
      $region19: #{_lambda_.7} parent=11 // pred_region
        _
      $region20: #{_lambda_.7} parent=11 // pred_fallthru
        _
      // Predicated region
      $region21: #{_lambda_.7} parent=11 // pred_check
        %p195 = pneg %p127
      $region22: #{_lambda_.7} parent=11 // pred_check_branch
        %197 = sbr.rel (%p195) target = $region24
      $region23: #{_lambda_.7} parent=11 // pred_region
        _
      $region24: #{_lambda_.7} parent=11 // pred_fallthru
        _
      // Predicated region
      $region25: #{_lambda_.7} parent=11 // pred_check
        %p198 = pneg %p148
      $region26: #{_lambda_.7} parent=11 // pred_check_branch
        %200 = sbr.rel (%p198) target = $region28
      $region27: #{_lambda_.7} parent=11 // pred_region
        _
      $region28: #{_lambda_.7} parent=11 // pred_fallthru
        _
    $region12: #{_lambda_.7} parent=5 // pred_fallthru
      _
    %p201 = scmp.lt.s32.totalorder %s12, 2
    // Predicated region
    $region29: #{_lambda_.7} parent=5 // pred_check
      %p202 = pneg %p201
    $region30: #{_lambda_.7} parent=5 // pred_check_branch
      %204 = sbr.rel (%p202) target = $region32
    $region31: #{_lambda_.7} parent=5 // pred_region
      // Predicated region
      $region33: #{_lambda_.7} parent=31 // pred_check
        %p205 = pneg %p32
      $region34: #{_lambda_.7} parent=31 // pred_check_branch
        %207 = sbr.rel (%p205) target = $region36
      $region35: #{_lambda_.7} parent=31 // pred_region
        %p208 = scmp.lt.s32.totalorder %s12, 1
        %s209 = scalar_select %p208, %s12, 1
        %s210 = smul.addr %s209, 10
        %s211 = smul.addr %s210, 4
        %s212 = scalar_lea.vmem %s0, %s211
      $region36: #{_lambda_.7} parent=31 // pred_fallthru
        _
      // Predicated region
      $region37: #{_lambda_.7} parent=31 // pred_check
        %p213 = pneg %p58
      $region38: #{_lambda_.7} parent=31 // pred_check_branch
        %215 = sbr.rel (%p213) target = $region40
      $region39: #{_lambda_.7} parent=31 // pred_region
        %p216 = scmp.lt.s32.totalorder %s12, 1
        %s217 = scalar_select %p216, %s12, 1
        %s218 = smul.addr %s217, 10
        %s219 = smul.addr %s218, 4
        %s220 = scalar_lea.vmem %s1, %s219
      $region40: #{_lambda_.7} parent=31 // pred_fallthru
        _
    $region32: #{_lambda_.7} parent=5 // pred_fallthru
      _
    %p221 = scmp.le.s32.totalorder 1, %s12
    %p222 = scmp.lt.s32.totalorder %s12, 3
    %p223 = pnand %p221, %p222
    %p224 = pneg %p223
    // Predicated region
    $region41: #{_lambda_.7} parent=5 // pred_check
      _
    $region42: #{_lambda_.7} parent=5 // pred_check_branch
      %226 = sbr.rel (%p223) target = $region44
    $region43: #{_lambda_.7} parent=5 // pred_region
      %s227 = ssub.s32 %s12, 1
      %p228 = scmp.lt.s32.totalorder %s17, 1
      %s229 = scalar_select %p228, %s17, 1
      %s230 = smul.addr %s229, 10
      %s231 = smul.addr %s230, 4
      %s232 = scalar_lea.vmem %s0, %s231
      %p233 = pneg %p38
      %p234 = pneg %p35
      %p235 = scmp.lt.s32.totalorder %s17, 1
      %s236 = scalar_select %p235, %s17, 1
      %s237 = smul.addr %s236, 10
      %s238 = smul.addr %s237, 4
      %s239 = scalar_lea.vmem %s1, %s238
      %p240 = pneg %p64
      %p241 = pneg %p61
      %p242 = pneg %p85
      %p243 = pneg %p82
      %p244 = pneg %p106
      %p245 = pneg %p103
      %p246 = pneg %p127
      %p247 = pneg %p124
      %p248 = pneg %p148
      %p249 = pneg %p145
      %p250 = pneg %p174
      %p251 = pneg %p171
      %p252 = scmp.lt.s32.totalorder %s17, 1
      %s253 = scalar_select %p252, %s17, 1
      %s254 = smul.addr %s253, 10
      %s255 = smul.addr %s254, 4
      %s256 = scalar_lea.vmem %s6, %s255
      %p257 = scmp.lt.s32.totalorder %s17, 1
      %s258 = scalar_select %p257, %s17, 1
      %s259 = smul.addr %s258, 10
      %s260 = smul.addr %s259, 4
      %s261 = scalar_lea.vmem %s0, %s260
      %p262 = scmp.lt.s32.totalorder %s17, 1
      %s263 = scalar_select %p262, %s17, 1
      %s264 = smul.addr %s263, 10
      %s265 = smul.addr %s264, 4
      %s266 = scalar_lea.vmem %s1, %s265
      %p267 = scmp.lt.s32.totalorder %s17, 1
      %s268 = scalar_select %p267, %s17, 1
      %s269 = smul.addr %s268, 10
      %s270 = smul.addr %s269, 4
      %s271 = scalar_lea.vmem %s6, %s270
      %v272 = vld [vmem:[%s261] sm:$0xf]
      %v273 = vld [vmem:[%s261 + $0x4] sm:$0xf]
      %v274 = vld [vmem:[%s261 + $0x8] sm:$0xf]
      %v275 = vld [vmem:[%s261 + $0xc] sm:$0xf]
      %v276 = vld [vmem:[%s261 + $0x10] sm:$0xf]
      %v277 = vld [vmem:[%s261 + $0x14] sm:$0xf]
      %v278 = vld [vmem:[%s261 + $0x18] sm:$0xf]
      %v279 = vld [vmem:[%s261 + $0x1c] sm:$0xf]
      %v280 = vld [vmem:[%s261 + $0x20] sm:$0xf]
      %v281 = vld [vmem:[%s261 + $0x24] sm:$0xf]
      %v282 = vunpack.c.l.bf16 %v272
      %v283 = vunpack.c.l.bf16 %v273
      %v284 = vunpack.c.l.bf16 %v274
      %v285 = vunpack.c.l.bf16 %v275
      %v286 = vunpack.c.l.bf16 %v276
      %v287 = vunpack.c.l.bf16 %v277
      %v288 = vunpack.c.l.bf16 %v278
      %v289 = vunpack.c.l.bf16 %v279
      %v290 = vunpack.c.l.bf16 %v280
      %v291 = vunpack.c.l.bf16 %v281
      %v292 = vld [vmem:[%s266] sm:$0xf]
      %v293 = vld [vmem:[%s266 + $0x4] sm:$0xf]
      %v294 = vld [vmem:[%s266 + $0x8] sm:$0xf]
      %v295 = vld [vmem:[%s266 + $0xc] sm:$0xf]
      %v296 = vld [vmem:[%s266 + $0x10] sm:$0xf]
      %v297 = vld [vmem:[%s266 + $0x14] sm:$0xf]
      %v298 = vld [vmem:[%s266 + $0x18] sm:$0xf]
      %v299 = vld [vmem:[%s266 + $0x1c] sm:$0xf]
      %v300 = vld [vmem:[%s266 + $0x20] sm:$0xf]
      %v301 = vld [vmem:[%s266 + $0x24] sm:$0xf]
      %v302 = vunpack.c.l.bf16 %v292
      %v303 = vunpack.c.l.bf16 %v293
      %v304 = vunpack.c.l.bf16 %v294
      %v305 = vunpack.c.l.bf16 %v295
      %v306 = vunpack.c.l.bf16 %v296
      %v307 = vunpack.c.l.bf16 %v297
      %v308 = vunpack.c.l.bf16 %v298
      %v309 = vunpack.c.l.bf16 %v299
      %v310 = vunpack.c.l.bf16 %v300
      %v311 = vunpack.c.l.bf16 %v301
      %v312 = vld [vmem:[%s2] sm:$0x1]
      %v314 = vperm.slane %v312, 0
      %v316 = vmul.f32 %v282, %v314
      %v317 = vmul.f32 %v283, %v314
      %v318 = vmul.f32 %v284, %v314
      %v319 = vmul.f32 %v285, %v314
      %v320 = vmul.f32 %v286, %v314
      %v321 = vmul.f32 %v287, %v314
      %v322 = vmul.f32 %v288, %v314
      %v323 = vmul.f32 %v289, %v314
      %v324 = vmul.f32 %v290, %v314
      %v325 = vmul.f32 %v291, %v314
      %v326 = vld [vmem:[%s3] sm:$0x1]
      %v328 = vperm.slane %v326, 0
      %v330 = vadd.f32 %v316, %v328
      %v331 = vadd.f32 %v317, %v328
      %v332 = vadd.f32 %v318, %v328
      %v333 = vadd.f32 %v319, %v328
      %v334 = vadd.f32 %v320, %v328
      %v335 = vadd.f32 %v321, %v328
      %v336 = vadd.f32 %v322, %v328
      %v337 = vadd.f32 %v323, %v328
      %v338 = vadd.f32 %v324, %v328
      %v339 = vadd.f32 %v325, %v328
      %v340 = vld [vmem:[%s4] sm:$0x1]
      %v342 = vperm.slane %v340, 0
      %v344 = vmul.f32 %v302, %v342
      %v345 = vmul.f32 %v303, %v342
      %v346 = vmul.f32 %v304, %v342
      %v347 = vmul.f32 %v305, %v342
      %v348 = vmul.f32 %v306, %v342
      %v349 = vmul.f32 %v307, %v342
      %v350 = vmul.f32 %v308, %v342
      %v351 = vmul.f32 %v309, %v342
      %v352 = vmul.f32 %v310, %v342
      %v353 = vmul.f32 %v311, %v342
      %v354 = vadd.f32 %v330, %v344
      %v355 = vadd.f32 %v331, %v345
      %v356 = vadd.f32 %v332, %v346
      %v357 = vadd.f32 %v333, %v347
      %v358 = vadd.f32 %v334, %v348
      %v359 = vadd.f32 %v335, %v349
      %v360 = vadd.f32 %v336, %v350
      %v361 = vadd.f32 %v337, %v351
      %v362 = vadd.f32 %v338, %v352
      %v363 = vadd.f32 %v339, %v353
      %v364 = vld [vmem:[%s5] sm:$0x1]
      %v366 = vperm.slane %v364, 0
      %v368 = vadd.f32 %v354, %v366
      %v369 = vadd.f32 %v355, %v366
      %v370 = vadd.f32 %v356, %v366
      %v371 = vadd.f32 %v357, %v366
      %v372 = vadd.f32 %v358, %v366
      %v373 = vadd.f32 %v359, %v366
      %v374 = vadd.f32 %v360, %v366
      %v375 = vadd.f32 %v361, %v366
      %v376 = vadd.f32 %v362, %v366
      %v377 = vadd.f32 %v363, %v366
      %v378 = vmax.f32 %v368, 0.0
      %v379 = vmax.f32 %v369, 0.0
      %v380 = vmax.f32 %v370, 0.0
      %v381 = vmax.f32 %v371, 0.0
      %v382 = vmax.f32 %v372, 0.0
      %v383 = vmax.f32 %v373, 0.0
      %v384 = vmax.f32 %v374, 0.0
      %v385 = vmax.f32 %v375, 0.0
      %v386 = vmax.f32 %v376, 0.0
      %v387 = vmax.f32 %v377, 0.0
      %v388 = vpack.c.bf16 %v378, %v378
      %v389 = vpack.c.bf16 %v379, %v379
      %v390 = vpack.c.bf16 %v380, %v380
      %v391 = vpack.c.bf16 %v381, %v381
      %v392 = vpack.c.bf16 %v382, %v382
      %v393 = vpack.c.bf16 %v383, %v383
      %v394 = vpack.c.bf16 %v384, %v384
      %v395 = vpack.c.bf16 %v385, %v385
      %v396 = vpack.c.bf16 %v386, %v386
      %v397 = vpack.c.bf16 %v387, %v387
      %398 = vst [vmem:[%s271] sm:$0xf] %v388
      %399 = vst [vmem:[%s271 + $0x4] sm:$0xf] %v389
      %400 = vst [vmem:[%s271 + $0x8] sm:$0xf] %v390
      %401 = vst [vmem:[%s271 + $0xc] sm:$0xf] %v391
      %402 = vst [vmem:[%s271 + $0x10] sm:$0xf] %v392
      %403 = vst [vmem:[%s271 + $0x14] sm:$0xf] %v393
      %404 = vst [vmem:[%s271 + $0x18] sm:$0xf] %v394
      %405 = vst [vmem:[%s271 + $0x1c] sm:$0xf] %v395
      %406 = vst [vmem:[%s271 + $0x20] sm:$0xf] %v396
      %407 = vst [vmem:[%s271 + $0x24] sm:$0xf] %v397
      %p408 = scmp.lt.s32.totalorder %s17, 1
      %s409 = scalar_select %p408, %s17, 1
      %s410 = smul.addr %s409, 10
      %s411 = smul.addr %s410, 4
      %s412 = scalar_lea.vmem %s6, %s411
      // Predicated region
      $region45: #{_lambda_.7} parent=43 // pred_check
        %p413 = pneg %p171
      $region46: #{_lambda_.7} parent=43 // pred_check_branch
        %415 = sbr.rel (%p413) target = $region48
      $region47: #{_lambda_.7} parent=43 // pred_region
        _
      $region48: #{_lambda_.7} parent=43 // pred_fallthru
        _
    $region44: #{_lambda_.7} parent=5 // pred_fallthru
      _
    %p416 = scmp.le.s32.totalorder 2, %s12
    // Predicated region
    $region49: #{_lambda_.7} parent=5 // pred_check
      %p417 = pneg %p416
    $region50: #{_lambda_.7} parent=5 // pred_check_branch
      %419 = sbr.rel (%p417) target = $region52
    $region51: #{_lambda_.7} parent=5 // pred_region
      %s420 = ssub.s32 %s12, 2
      // Predicated region
      $region53: #{_lambda_.7} parent=51 // pred_check
        %p421 = pneg %p177
      $region54: #{_lambda_.7} parent=51 // pred_check_branch
        %423 = sbr.rel (%p421) target = $region56
      $region55: #{_lambda_.7} parent=51 // pred_region
        %p424 = scmp.lt.s32.totalorder %s18, 1
        %s425 = scalar_select %p424, %s18, 1
        %s426 = smul.addr %s425, 10
        %s427 = smul.addr %s426, 4
        %s428 = scalar_lea.vmem %s6, %s427
      $region56: #{_lambda_.7} parent=51 // pred_fallthru
        _
    $region52: #{_lambda_.7} parent=5 // pred_fallthru
      _
  $region6: #{_lambda_.7} parent=0 // loop_footer
    %s16 = sadd.s32 1, %s12
  $region7: #{_lambda_.7} parent=0 // loop_footer_branch
    %11 = sbr.rel target = $region3
  $region8: #{_lambda_.7} parent=0 // loop_exit
    _

// kernel: _lambda_.5
$region0: #{_lambda_.5}
  #allocation0 [shape = 'u32[]', space=smem, size = 0x4, offset = 0x4, fixed_abs, tag = 'smem constant byte address 0x4 - core index']
  #allocation1 [shape = 'u32[72,128]{1,0:T(1,128)}', space=vmem, size = 0x9000, scoped, tag = 'internal scratch']
  #allocation2 [shape = 'f32[80,128]{1,0:T(8,128)}', space=vmem, size = 0xa000, scoped, tag = 'scratch operand']
  %s0 = inlined_call_operand.vmem [shape: bf16[2,102,128], index: 0, kind: input, shape index: {}]
  %s1 = inlined_call_operand.vmem [shape: bf16[9,128,128], index: 1, kind: input, shape index: {}]
  %s2 = inlined_call_operand.vmem [shape: f32[80,1], index: 2, kind: input, shape index: {}]
  %s3 = inlined_call_operand.vmem [shape: bf16[2,80,128], index: 3, kind: output, shape index: {0}]
  %s4 = inlined_call_operand.vmem [shape: f32[2,1,128], index: 4, kind: output, shape index: {1}]
  %s5 = inlined_call_operand.vmem [shape: f32[2,1,128], index: 5, kind: output, shape index: {2}]
  %6 = xla_tuple %s3, %s4, %s5
  %s7 = sld [smem:[#allocation0]]
  $region61: #{_lambda_.5} parent=0
    _
  %s9 = ssub.s32 1, %s7
  %s10 = scalar_select 0, %s9, %s7
  loop: start=0, step=1, limit=4
  $region2: #{_lambda_.5} parent=0 // loop_pre_header
    _
  $region3: #{_lambda_.5} parent=0 // loop_header
    %s12 = sphi 0, %s16
    %p13 = scmp.ge.s32.totalorder %s12, 4
    %s22 = sphi 0, %s24
    %s25 = sphi 0, %s22
    %s26 = sphi 0, %s25
    %s42 = sphi 0, %s26
    %s46 = sphi 0, %s46
    %s48 = sphi 0, %s46
    %s49 = sphi 0, %s48
    %s63 = sphi 0, %s49
    %s67 = sphi 0, %s67
    %s69 = sphi 0, %s67
    %s70 = sphi 0, %s69
    %s84 = sphi 0, %s70
    %s90 = sphi 0, %s92
    %s93 = sphi 0, %s90
    %s94 = sphi 0, %s93
    %s110 = sphi 0, %s94
    %s116 = sphi 0, %s118
    %s119 = sphi 0, %s116
    %s120 = sphi 0, %s119
    %s136 = sphi 0, %s120
    %s142 = sphi 0, %s144
    %s145 = sphi 0, %s142
    %s146 = sphi 0, %s145
    %s162 = sphi 0, %s146
  $region4: #{_lambda_.5} parent=0 // loop_header_branch
    %15 = sbr.rel (%p13) target = $region8
  $region5: #{_lambda_.5} parent=0 // loop_body
    %s17 = ssub.s32 %s12, 1
    %s18 = ssub.s32 %s12, 2
    %s19 = sadd.s32 %s12, 1
    %s20 = ssub.s32 %s12, %s19
    %p21 = scmp.eq.s32.totalorder %s20, 0
    %s23 = sadd.s32 %s22, 1
    %s24 = scalar_select %p21, %s22, %s23
    %p27 = pneg %p21
    %p28 = scmp.eq.s32.totalorder %s12, 1
    %p29 = por %p27, %p28
    %p30 = scmp.ne.s32.totalorder %s22, %s25
    %p31 = scmp.eq.s32.totalorder %s12, 0
    %p32 = por %p30, %p31
    %p33 = scmp.ne.s32.totalorder %s22, %s25
    %p34 = scmp.eq.s32.totalorder %s17, 1
    %p35 = por %p33, %p34
    %p36 = scmp.ne.s32.totalorder %s25, %s26
    %p37 = scmp.eq.s32.totalorder %s17, 0
    %p38 = por %p36, %p37
    %p39 = scmp.ne.s32.totalorder %s25, %s26
    %p40 = scmp.eq.s32.totalorder %s18, 1
    %p41 = por %p39, %p40
    %p43 = scmp.ne.s32.totalorder %s26, %s42
    %p44 = scmp.eq.s32.totalorder %s18, 0
    %p45 = por %p43, %p44
    %s47 = sadd.s32 %s46, 1
    %p50 = scmp.eq.s32.totalorder %s12, 1
    %p51 = scmp.ne.s32.totalorder %s46, %s48
    %p52 = scmp.eq.s32.totalorder %s12, 0
    %p53 = por %p51, %p52
    %p54 = scmp.ne.s32.totalorder %s46, %s48
    %p55 = scmp.eq.s32.totalorder %s17, 1
    %p56 = por %p54, %p55
    %p57 = scmp.ne.s32.totalorder %s48, %s49
    %p58 = scmp.eq.s32.totalorder %s17, 0
    %p59 = por %p57, %p58
    %p60 = scmp.ne.s32.totalorder %s48, %s49
    %p61 = scmp.eq.s32.totalorder %s18, 1
    %p62 = por %p60, %p61
    %p64 = scmp.ne.s32.totalorder %s49, %s63
    %p65 = scmp.eq.s32.totalorder %s18, 0
    %p66 = por %p64, %p65
    %s68 = sadd.s32 %s67, 1
    %p71 = scmp.eq.s32.totalorder %s12, 1
    %p72 = scmp.ne.s32.totalorder %s67, %s69
    %p73 = scmp.eq.s32.totalorder %s12, 0
    %p74 = por %p72, %p73
    %p75 = scmp.ne.s32.totalorder %s67, %s69
    %p76 = scmp.eq.s32.totalorder %s17, 1
    %p77 = por %p75, %p76
    %p78 = scmp.ne.s32.totalorder %s69, %s70
    %p79 = scmp.eq.s32.totalorder %s17, 0
    %p80 = por %p78, %p79
    %p81 = scmp.ne.s32.totalorder %s69, %s70
    %p82 = scmp.eq.s32.totalorder %s18, 1
    %p83 = por %p81, %p82
    %p85 = scmp.ne.s32.totalorder %s70, %s84
    %p86 = scmp.eq.s32.totalorder %s18, 0
    %p87 = por %p85, %p86
    %s88 = ssub.s32 %s12, %s19
    %p89 = scmp.eq.s32.totalorder %s88, 0
    %s91 = sadd.s32 %s90, 1
    %s92 = scalar_select %p89, %s90, %s91
    %p95 = pneg %p89
    %p96 = scmp.eq.s32.totalorder %s12, 1
    %p97 = por %p95, %p96
    %p98 = scmp.ne.s32.totalorder %s90, %s93
    %p99 = scmp.eq.s32.totalorder %s12, 0
    %p100 = por %p98, %p99
    %p101 = scmp.ne.s32.totalorder %s90, %s93
    %p102 = scmp.eq.s32.totalorder %s17, 1
    %p103 = por %p101, %p102
    %p104 = scmp.ne.s32.totalorder %s93, %s94
    %p105 = scmp.eq.s32.totalorder %s17, 0
    %p106 = por %p104, %p105
    %p107 = scmp.ne.s32.totalorder %s93, %s94
    %p108 = scmp.eq.s32.totalorder %s18, 1
    %p109 = por %p107, %p108
    %p111 = scmp.ne.s32.totalorder %s94, %s110
    %p112 = scmp.eq.s32.totalorder %s18, 0
    %p113 = por %p111, %p112
    %s114 = ssub.s32 %s12, %s19
    %p115 = scmp.eq.s32.totalorder %s114, 0
    %s117 = sadd.s32 %s116, 1
    %s118 = scalar_select %p115, %s116, %s117
    %p121 = pneg %p115
    %p122 = scmp.eq.s32.totalorder %s12, 1
    %p123 = por %p121, %p122
    %p124 = scmp.ne.s32.totalorder %s116, %s119
    %p125 = scmp.eq.s32.totalorder %s12, 0
    %p126 = por %p124, %p125
    %p127 = scmp.ne.s32.totalorder %s116, %s119
    %p128 = scmp.eq.s32.totalorder %s17, 1
    %p129 = por %p127, %p128
    %p130 = scmp.ne.s32.totalorder %s119, %s120
    %p131 = scmp.eq.s32.totalorder %s17, 0
    %p132 = por %p130, %p131
    %p133 = scmp.ne.s32.totalorder %s119, %s120
    %p134 = scmp.eq.s32.totalorder %s18, 1
    %p135 = por %p133, %p134
    %p137 = scmp.ne.s32.totalorder %s120, %s136
    %p138 = scmp.eq.s32.totalorder %s18, 0
    %p139 = por %p137, %p138
    %s140 = ssub.s32 %s12, %s19
    %p141 = scmp.eq.s32.totalorder %s140, 0
    %s143 = sadd.s32 %s142, 1
    %s144 = scalar_select %p141, %s142, %s143
    %p147 = pneg %p141
    %p148 = scmp.eq.s32.totalorder %s12, 1
    %p149 = por %p147, %p148
    %p150 = scmp.ne.s32.totalorder %s142, %s145
    %p151 = scmp.eq.s32.totalorder %s12, 0
    %p152 = por %p150, %p151
    %p153 = scmp.ne.s32.totalorder %s142, %s145
    %p154 = scmp.eq.s32.totalorder %s17, 1
    %p155 = por %p153, %p154
    %p156 = scmp.ne.s32.totalorder %s145, %s146
    %p157 = scmp.eq.s32.totalorder %s17, 0
    %p158 = por %p156, %p157
    %p159 = scmp.ne.s32.totalorder %s145, %s146
    %p160 = scmp.eq.s32.totalorder %s18, 1
    %p161 = por %p159, %p160
    %p163 = scmp.ne.s32.totalorder %s146, %s162
    %p164 = scmp.eq.s32.totalorder %s18, 0
    %p165 = por %p163, %p164
    %p166 = scmp.le.s32.totalorder 1, %s12
    %p167 = scmp.lt.s32.totalorder %s12, 3
    %p168 = pnand %p166, %p167
    %p169 = pneg %p168
    // Predicated region
    $region9: #{_lambda_.5} parent=5 // pred_check
      _
    $region10: #{_lambda_.5} parent=5 // pred_check_branch
      %171 = sbr.rel (%p168) target = $region12
    $region11: #{_lambda_.5} parent=5 // pred_region
      %s172 = ssub.s32 %s12, 1
      // Predicated region
      $region13: #{_lambda_.5} parent=11 // pred_check
        %p173 = pneg %p59
      $region14: #{_lambda_.5} parent=11 // pred_check_branch
        %175 = sbr.rel (%p173) target = $region16
      $region15: #{_lambda_.5} parent=11 // pred_region
        _
      $region16: #{_lambda_.5} parent=11 // pred_fallthru
        _
      // Predicated region
      $region17: #{_lambda_.5} parent=11 // pred_check
        %p176 = pneg %p80
      $region18: #{_lambda_.5} parent=11 // pred_check_branch
        %178 = sbr.rel (%p176) target = $region20
      $region19: #{_lambda_.5} parent=11 // pred_region
        _
      $region20: #{_lambda_.5} parent=11 // pred_fallthru
        _
    $region12: #{_lambda_.5} parent=5 // pred_fallthru
      _
    %p179 = scmp.lt.s32.totalorder %s12, 2
    // Predicated region
    $region21: #{_lambda_.5} parent=5 // pred_check
      %p180 = pneg %p179
    $region22: #{_lambda_.5} parent=5 // pred_check_branch
      %182 = sbr.rel (%p180) target = $region24
    $region23: #{_lambda_.5} parent=5 // pred_region
      // Predicated region
      $region25: #{_lambda_.5} parent=23 // pred_check
        %p183 = pneg %p32
      $region26: #{_lambda_.5} parent=23 // pred_check_branch
        %185 = sbr.rel (%p183) target = $region28
      $region27: #{_lambda_.5} parent=23 // pred_region
        %p186 = scmp.lt.s32.totalorder %s12, 1
        %s187 = scalar_select %p186, %s12, 1
        %s188 = smul.addr %s187, 13
        %s189 = smul.addr %s188, 4
        %s190 = scalar_lea.vmem %s0, %s189
      $region28: #{_lambda_.5} parent=23 // pred_fallthru
        _
    $region24: #{_lambda_.5} parent=5 // pred_fallthru
      _
    %p191 = scmp.le.s32.totalorder 1, %s12
    %p192 = scmp.lt.s32.totalorder %s12, 3
    %p193 = pnand %p191, %p192
    %p194 = pneg %p193
    // Predicated region
    $region29: #{_lambda_.5} parent=5 // pred_check
      _
    $region30: #{_lambda_.5} parent=5 // pred_check_branch
      %196 = sbr.rel (%p193) target = $region32
    $region31: #{_lambda_.5} parent=5 // pred_region
      %s197 = ssub.s32 %s12, 1
      %p198 = scmp.lt.s32.totalorder %s17, 1
      %s199 = scalar_select %p198, %s17, 1
      %s200 = smul.addr %s199, 13
      %s201 = smul.addr %s200, 4
      %s202 = scalar_lea.vmem %s0, %s201
      %p203 = pneg %p38
      %p204 = pneg %p35
      %p205 = pneg %p59
      %p206 = pneg %p56
      %p207 = pneg %p80
      %p208 = pneg %p77
      %p209 = pneg %p106
      %p210 = pneg %p103
      %p211 = scmp.lt.s32.totalorder %s17, 1
      %s212 = scalar_select %p211, %s17, 1
      %s213 = smul.addr %s212, 10
      %s214 = smul.addr %s213, 4
      %s215 = scalar_lea.vmem %s3, %s214
      %p216 = pneg %p132
      %p217 = pneg %p129
      %p218 = scmp.lt.s32.totalorder %s17, 1
      %s219 = scalar_select %p218, %s17, 1
      %s220 = scalar_lea.vmem %s4, %s219
      %p221 = pneg %p158
      %p222 = pneg %p155
      %p223 = scmp.lt.s32.totalorder %s17, 1
      %s224 = scalar_select %p223, %s17, 1
      %s225 = scalar_lea.vmem %s5, %s224
      %p226 = scmp.lt.s32.totalorder %s17, 1
      %s227 = scalar_select %p226, %s17, 1
      %s228 = smul.addr %s227, 13
      %s229 = smul.addr %s228, 4
      %s230 = scalar_lea.vmem %s0, %s229
      %p231 = scmp.lt.s32.totalorder %s17, 1
      %s232 = scalar_select %p231, %s17, 1
      %s233 = smul.addr %s232, 10
      %s234 = smul.addr %s233, 4
      %s235 = scalar_lea.vmem %s3, %s234
      %p236 = scmp.lt.s32.totalorder %s17, 1
      %s237 = scalar_select %p236, %s17, 1
      %s238 = scalar_lea.vmem %s4, %s237
      %p239 = scmp.lt.s32.totalorder %s17, 1
      %s240 = scalar_select %p239, %s17, 1
      %s241 = scalar_lea.vmem %s5, %s240
      %v242 = vld [vmem:[%s230] sm:$0xf]
      %v243 = vld [vmem:[%s230 + $0x4] sm:$0xf]
      %v244 = vld [vmem:[%s230 + $0x8] sm:$0xf]
      %v245 = vld [vmem:[%s230 + $0xc] sm:$0xf]
      %v246 = vld [vmem:[%s230 + $0x10] sm:$0xf]
      %v247 = vld [vmem:[%s230 + $0x14] sm:$0xf]
      %v248 = vld [vmem:[%s230 + $0x18] sm:$0xf]
      %v249 = vld [vmem:[%s230 + $0x1c] sm:$0xf]
      %v250 = vld [vmem:[%s230 + $0x20] sm:$0xf]
      %v251 = vld [vmem:[%s230 + $0x24] sm:$0xf]
      %v252 = vld [vmem:[%s1] sm:$0xf]
      %v253 = vld [vmem:[%s1 + $0x4] sm:$0xf]
      %v254 = vld [vmem:[%s1 + $0x8] sm:$0xf]
      %v255 = vld [vmem:[%s1 + $0xc] sm:$0xf]
      %v256 = vld [vmem:[%s1 + $0x10] sm:$0xf]
      %v257 = vld [vmem:[%s1 + $0x14] sm:$0xf]
      %v258 = vld [vmem:[%s1 + $0x18] sm:$0xf]
      %v259 = vld [vmem:[%s1 + $0x1c] sm:$0xf]
      %v260 = vld [vmem:[%s1 + $0x20] sm:$0xf]
      %v261 = vld [vmem:[%s1 + $0x24] sm:$0xf]
      %v262 = vld [vmem:[%s1 + $0x28] sm:$0xf]
      %v263 = vld [vmem:[%s1 + $0x2c] sm:$0xf]
      %v264 = vld [vmem:[%s1 + $0x30] sm:$0xf]
      %v265 = vld [vmem:[%s1 + $0x34] sm:$0xf]
      %v266 = vld [vmem:[%s1 + $0x38] sm:$0xf]
      %v267 = vld [vmem:[%s1 + $0x3c] sm:$0xf]
      %v278 = vunpack.c.l.b16 %v242
      %v279 = vunpack.c.l.b16 %v243
      %v280 = vunpack.c.l.b16 %v244
      %v281 = vunpack.c.l.b16 %v245
      %v282 = vunpack.c.l.b16 %v246
      %v283 = vunpack.c.l.b16 %v247
      %v284 = vunpack.c.l.b16 %v248
      %v285 = vunpack.c.l.b16 %v249
      %v286 = vunpack.c.l.b16 %v250
      %v287 = vunpack.c.l.b16 %v251
      %v288 = vpack.c.b16 %v279, %v278
      %v289 = vpack.c.b16 %v281, %v280
      %v290 = vpack.c.b16 %v283, %v282
      %v291 = vpack.c.b16 %v285, %v284
      %v292 = vpack.c.b16 %v287, %v286
      %v314 = vunpack.c.l.b16 %v252
      %v315 = vunpack.c.l.b16 %v253
      %v316 = vunpack.c.l.b16 %v254
      %v317 = vunpack.c.l.b16 %v255
      %v318 = vunpack.c.l.b16 %v256
      %v319 = vunpack.c.l.b16 %v257
      %v320 = vunpack.c.l.b16 %v258
      %v321 = vunpack.c.l.b16 %v259
      %v322 = vunpack.c.l.b16 %v260
      %v323 = vunpack.c.l.b16 %v261
      %v324 = vunpack.c.l.b16 %v262
      %v325 = vunpack.c.l.b16 %v263
      %v326 = vunpack.c.l.b16 %v264
      %v327 = vunpack.c.l.b16 %v265
      %v328 = vunpack.c.l.b16 %v266
      %v329 = vunpack.c.l.b16 %v267
      %v330 = vpack.c.b16 %v315, %v314
      %v331 = vpack.c.b16 %v317, %v316
      %v332 = vpack.c.b16 %v319, %v318
      %v333 = vpack.c.b16 %v321, %v320
      %v334 = vpack.c.b16 %v323, %v322
      %v335 = vpack.c.b16 %v325, %v324
      %v336 = vpack.c.b16 %v327, %v326
      %v337 = vpack.c.b16 %v329, %v328
      %346 = vmatpush.bf16.msra.mxu0 %v337
      %347 = vmatpush.bf16.msra.mxu0 %v336
      %348 = vmatpush.bf16.msra.mxu0 %v335
      %349 = vmatpush.bf16.msra.mxu0 %v334
      %350 = vmatpush.bf16.msra.mxu0 %v333
      %351 = vmatpush.bf16.msra.mxu0 %v332
      %352 = vmatpush.bf16.msra.mxu0 %v331
      %353 = vmatpush.bf16.msra.mxu0 %v330
      %354 = vmatmul.bf16.gmra.mxu0 %v288
      %v355 = vpop.f32.mrf.mxu0
      %v356 = vadd.f32 0.0, %v355
      %v357 = vpop.f32.mrf.mxu0
      %v358 = vadd.f32 0.0, %v357
      %359 = vmatmul.bf16.gmra.mxu0 %v289
      %v360 = vpop.f32.mrf.mxu0
      %v361 = vadd.f32 0.0, %v360
      %v362 = vpop.f32.mrf.mxu0
      %v363 = vadd.f32 0.0, %v362
      %364 = vmatmul.bf16.gmra.mxu0 %v290
      %v365 = vpop.f32.mrf.mxu0
      %v366 = vadd.f32 0.0, %v365
      %v367 = vpop.f32.mrf.mxu0
      %v368 = vadd.f32 0.0, %v367
      %369 = vmatmul.bf16.gmra.mxu0 %v291
      %v370 = vpop.f32.mrf.mxu0
      %v371 = vadd.f32 0.0, %v370
      %v372 = vpop.f32.mrf.mxu0
      %v373 = vadd.f32 0.0, %v372
      %374 = vmatmul.bf16.gmra.mxu0 %v292
      %v375 = vpop.f32.mrf.mxu0
      %v376 = vadd.f32 0.0, %v375
      %v377 = vpop.f32.mrf.mxu0
      %v378 = vadd.f32 0.0, %v377
      %379 = vdwg.mxu0
      %380 = vst [vmem:[#allocation2] sm:$0xff] %v356
      %381 = vst [vmem:[#allocation2 + $0x8] sm:$0xff] %v358
      %382 = vst [vmem:[#allocation2 + $0x10] sm:$0xff] %v361
      %383 = vst [vmem:[#allocation2 + $0x18] sm:$0xff] %v363
      %384 = vst [vmem:[#allocation2 + $0x20] sm:$0xff] %v366
      %385 = vst [vmem:[#allocation2 + $0x28] sm:$0xff] %v368
      %386 = vst [vmem:[#allocation2 + $0x30] sm:$0xff] %v371
      %387 = vst [vmem:[#allocation2 + $0x38] sm:$0xff] %v373
      %388 = vst [vmem:[#allocation2 + $0x40] sm:$0xff] %v376
      %389 = vst [vmem:[#allocation2 + $0x48] sm:$0xff] %v378
      %v390 = vld [vmem:[%s230] sm:$0xf]
      %v391 = vld [vmem:[%s230 + $0x4] sm:$0xf]
      %v392 = vld [vmem:[%s230 + $0x8] sm:$0xf]
      %v393 = vld [vmem:[%s230 + $0xc] sm:$0xf]
      %v394 = vld [vmem:[%s230 + $0x10] sm:$0xf]
      %v395 = vld [vmem:[%s230 + $0x14] sm:$0xf]
      %v396 = vld [vmem:[%s230 + $0x18] sm:$0xf]
      %v397 = vld [vmem:[%s230 + $0x1c] sm:$0xf]
      %v398 = vld [vmem:[%s230 + $0x20] sm:$0xf]
      %v399 = vld [vmem:[%s230 + $0x24] sm:$0xf]
      %v400 = vld [vmem:[%s230 + $0x28] sm:$0x1]
      %s401 = scalar_lea.vmem %s1, 64
      %v402 = vld [vmem:[%s401] sm:$0xf]
      %v403 = vld [vmem:[%s401 + $0x4] sm:$0xf]
      %v404 = vld [vmem:[%s401 + $0x8] sm:$0xf]
      %v405 = vld [vmem:[%s401 + $0xc] sm:$0xf]
      %v406 = vld [vmem:[%s401 + $0x10] sm:$0xf]
      %v407 = vld [vmem:[%s401 + $0x14] sm:$0xf]
      %v408 = vld [vmem:[%s401 + $0x18] sm:$0xf]
      %v409 = vld [vmem:[%s401 + $0x1c] sm:$0xf]
      %v410 = vld [vmem:[%s401 + $0x20] sm:$0xf]
      %v411 = vld [vmem:[%s401 + $0x24] sm:$0xf]
      %v412 = vld [vmem:[%s401 + $0x28] sm:$0xf]
      %v413 = vld [vmem:[%s401 + $0x2c] sm:$0xf]
      %v414 = vld [vmem:[%s401 + $0x30] sm:$0xf]
      %v415 = vld [vmem:[%s401 + $0x34] sm:$0xf]
      %v416 = vld [vmem:[%s401 + $0x38] sm:$0xf]
      %v417 = vld [vmem:[%s401 + $0x3c] sm:$0xf]
      %v429 = vunpack.c.l.b16 %v390
      %v430 = vunpack.c.l.b16 %v391
      %v431 = vunpack.c.l.b16 %v392
      %v432 = vunpack.c.l.b16 %v393
      %v433 = vunpack.c.l.b16 %v394
      %v434 = vunpack.c.l.b16 %v395
      %v435 = vunpack.c.l.b16 %v396
      %v436 = vunpack.c.l.b16 %v397
      %v437 = vunpack.c.l.b16 %v398
      %v438 = vunpack.c.l.b16 %v399
      %v439 = vunpack.c.l.b16 %v400
      %v440 = vpack.c.b16 %v430, %v429
      %v441 = vpack.c.b16 %v432, %v431
      %v442 = vpack.c.b16 %v434, %v433
      %v443 = vpack.c.b16 %v436, %v435
      %v444 = vpack.c.b16 %v438, %v437
      %v445 = vpack.c.b16 %v439, %v439
      %vm446 = vsmask.f32 7424
      %v448 = vshrl.u32 %v440, 16
      %v450 = vshll.u32 %v440, 16
      %v452 = vrot.slane %v450, 1
      %v453 = vor.u32 %v448, %v452
      %v455 = vshll.u32 %v441, 16
      %v457 = vrot.slane %v455, 1
      %v458 = vsel %vm446, %v453, %v457
      %v459 = vshrl.u32 %v441, 16
      %v461 = vor.u32 %v459, %v457
      %v463 = vshll.u32 %v442, 16
      %v465 = vrot.slane %v463, 1
      %v466 = vsel %vm446, %v461, %v465
      %v467 = vshrl.u32 %v442, 16
      %v469 = vor.u32 %v467, %v465
      %v471 = vshll.u32 %v443, 16
      %v473 = vrot.slane %v471, 1
      %v474 = vsel %vm446, %v469, %v473
      %v475 = vshrl.u32 %v443, 16
      %v477 = vor.u32 %v475, %v473
      %v479 = vshll.u32 %v444, 16
      %v481 = vrot.slane %v479, 1
      %v482 = vsel %vm446, %v477, %v481
      %v483 = vshrl.u32 %v444, 16
      %v485 = vor.u32 %v483, %v481
      %v487 = vshll.u32 %v445, 16
      %v489 = vrot.slane %v487, 1
      %v490 = vsel %vm446, %v485, %v489
      %v512 = vunpack.c.l.b16 %v402
      %v513 = vunpack.c.l.b16 %v403
      %v514 = vunpack.c.l.b16 %v404
      %v515 = vunpack.c.l.b16 %v405
      %v516 = vunpack.c.l.b16 %v406
      %v517 = vunpack.c.l.b16 %v407
      %v518 = vunpack.c.l.b16 %v408
      %v519 = vunpack.c.l.b16 %v409
      %v520 = vunpack.c.l.b16 %v410
      %v521 = vunpack.c.l.b16 %v411
      %v522 = vunpack.c.l.b16 %v412
      %v523 = vunpack.c.l.b16 %v413
      %v524 = vunpack.c.l.b16 %v414
      %v525 = vunpack.c.l.b16 %v415
      %v526 = vunpack.c.l.b16 %v416
      %v527 = vunpack.c.l.b16 %v417
      %v528 = vpack.c.b16 %v513, %v512
      %v529 = vpack.c.b16 %v515, %v514
      %v530 = vpack.c.b16 %v517, %v516
      %v531 = vpack.c.b16 %v519, %v518
      %v532 = vpack.c.b16 %v521, %v520
      %v533 = vpack.c.b16 %v523, %v522
      %v534 = vpack.c.b16 %v525, %v524
      %v535 = vpack.c.b16 %v527, %v526
      %544 = vmatpush.bf16.msra.mxu0 %v535
      %545 = vmatpush.bf16.msra.mxu0 %v534
      %546 = vmatpush.bf16.msra.mxu0 %v533
      %547 = vmatpush.bf16.msra.mxu0 %v532
      %548 = vmatpush.bf16.msra.mxu0 %v531
      %549 = vmatpush.bf16.msra.mxu0 %v530
      %550 = vmatpush.bf16.msra.mxu0 %v529
      %551 = vmatpush.bf16.msra.mxu0 %v528
      %552 = vmatmul.bf16.gmra.mxu0 %v458
      %v553 = vpop.f32.mrf.mxu0
      %v554 = vadd.f32 0.0, %v553
      %v555 = vpop.f32.mrf.mxu0
      %v556 = vadd.f32 0.0, %v555
      %557 = vmatmul.bf16.gmra.mxu0 %v466
      %v558 = vpop.f32.mrf.mxu0
      %v559 = vadd.f32 0.0, %v558
      %v560 = vpop.f32.mrf.mxu0
      %v561 = vadd.f32 0.0, %v560
      %562 = vmatmul.bf16.gmra.mxu0 %v474
      %v563 = vpop.f32.mrf.mxu0
      %v564 = vadd.f32 0.0, %v563
      %v565 = vpop.f32.mrf.mxu0
      %v566 = vadd.f32 0.0, %v565
      %567 = vmatmul.bf16.gmra.mxu0 %v482
      %v568 = vpop.f32.mrf.mxu0
      %v569 = vadd.f32 0.0, %v568
      %v570 = vpop.f32.mrf.mxu0
      %v571 = vadd.f32 0.0, %v570
      %572 = vmatmul.bf16.gmra.mxu0 %v490
      %v573 = vpop.f32.mrf.mxu0
      %v574 = vadd.f32 0.0, %v573
      %v575 = vpop.f32.mrf.mxu0
      %v576 = vadd.f32 0.0, %v575
      %577 = vdwg.mxu0
      %v578 = vld [vmem:[#allocation2] sm:$0xff]
      %v579 = vld [vmem:[#allocation2 + $0x8] sm:$0xff]
      %v580 = vld [vmem:[#allocation2 + $0x10] sm:$0xff]
      %v581 = vld [vmem:[#allocation2 + $0x18] sm:$0xff]
      %v582 = vld [vmem:[#allocation2 + $0x20] sm:$0xff]
      %v583 = vld [vmem:[#allocation2 + $0x28] sm:$0xff]
      %v584 = vld [vmem:[#allocation2 + $0x30] sm:$0xff]
      %v585 = vld [vmem:[#allocation2 + $0x38] sm:$0xff]
      %v586 = vld [vmem:[#allocation2 + $0x40] sm:$0xff]
      %v587 = vld [vmem:[#allocation2 + $0x48] sm:$0xff]
      %v588 = vadd.f32 %v578, %v554
      %v589 = vadd.f32 %v579, %v556
      %v590 = vadd.f32 %v580, %v559
      %v591 = vadd.f32 %v581, %v561
      %v592 = vadd.f32 %v582, %v564
      %v593 = vadd.f32 %v583, %v566
      %v594 = vadd.f32 %v584, %v569
      %v595 = vadd.f32 %v585, %v571
      %v596 = vadd.f32 %v586, %v574
      %v597 = vadd.f32 %v587, %v576
      %598 = vst [vmem:[#allocation2] sm:$0xff] %v588
      %599 = vst [vmem:[#allocation2 + $0x8] sm:$0xff] %v589
      %600 = vst [vmem:[#allocation2 + $0x10] sm:$0xff] %v590
      %601 = vst [vmem:[#allocation2 + $0x18] sm:$0xff] %v591
      %602 = vst [vmem:[#allocation2 + $0x20] sm:$0xff] %v592
      %603 = vst [vmem:[#allocation2 + $0x28] sm:$0xff] %v593
      %604 = vst [vmem:[#allocation2 + $0x30] sm:$0xff] %v594
      %605 = vst [vmem:[#allocation2 + $0x38] sm:$0xff] %v595
      %606 = vst [vmem:[#allocation2 + $0x40] sm:$0xff] %v596
      %607 = vst [vmem:[#allocation2 + $0x48] sm:$0xff] %v597
      %v608 = vld [vmem:[%s230] sm:$0xe]
      %v609 = vld [vmem:[%s230 + $0x4] sm:$0xf]
      %v610 = vld [vmem:[%s230 + $0x8] sm:$0xf]
      %v611 = vld [vmem:[%s230 + $0xc] sm:$0xf]
      %v612 = vld [vmem:[%s230 + $0x10] sm:$0xf]
      %v613 = vld [vmem:[%s230 + $0x14] sm:$0xf]
      %v614 = vld [vmem:[%s230 + $0x18] sm:$0xf]
      %v615 = vld [vmem:[%s230 + $0x1c] sm:$0xf]
      %v616 = vld [vmem:[%s230 + $0x20] sm:$0xf]
      %v617 = vld [vmem:[%s230 + $0x24] sm:$0xf]
      %v618 = vld [vmem:[%s230 + $0x28] sm:$0x1]
      %s619 = scalar_lea.vmem %s1, 128
      %v620 = vld [vmem:[%s619] sm:$0xf]
      %v621 = vld [vmem:[%s619 + $0x4] sm:$0xf]
      %v622 = vld [vmem:[%s619 + $0x8] sm:$0xf]
      %v623 = vld [vmem:[%s619 + $0xc] sm:$0xf]
      %v624 = vld [vmem:[%s619 + $0x10] sm:$0xf]
      %v625 = vld [vmem:[%s619 + $0x14] sm:$0xf]
      %v626 = vld [vmem:[%s619 + $0x18] sm:$0xf]
      %v627 = vld [vmem:[%s619 + $0x1c] sm:$0xf]
      %v628 = vld [vmem:[%s619 + $0x20] sm:$0xf]
      %v629 = vld [vmem:[%s619 + $0x24] sm:$0xf]
      %v630 = vld [vmem:[%s619 + $0x28] sm:$0xf]
      %v631 = vld [vmem:[%s619 + $0x2c] sm:$0xf]
      %v632 = vld [vmem:[%s619 + $0x30] sm:$0xf]
      %v633 = vld [vmem:[%s619 + $0x34] sm:$0xf]
      %v634 = vld [vmem:[%s619 + $0x38] sm:$0xf]
      %v635 = vld [vmem:[%s619 + $0x3c] sm:$0xf]
      %v647 = vunpack.c.l.b16 %v608
      %v648 = vunpack.c.l.b16 %v609
      %v649 = vunpack.c.l.b16 %v610
      %v650 = vunpack.c.l.b16 %v611
      %v651 = vunpack.c.l.b16 %v612
      %v652 = vunpack.c.l.b16 %v613
      %v653 = vunpack.c.l.b16 %v614
      %v654 = vunpack.c.l.b16 %v615
      %v655 = vunpack.c.l.b16 %v616
      %v656 = vunpack.c.l.b16 %v617
      %v657 = vunpack.c.l.b16 %v618
      %v658 = vpack.c.b16 %v648, %v647
      %v659 = vpack.c.b16 %v650, %v649
      %v660 = vpack.c.b16 %v652, %v651
      %v661 = vpack.c.b16 %v654, %v653
      %v662 = vpack.c.b16 %v656, %v655
      %v663 = vpack.c.b16 %v657, %v657
      %vm664 = vcmask 1046528
      %v665 = vrot.slane %v658, 1
      %v666 = vrot.slane %v659, 1
      %v667 = vsel %vm664, %v665, %v666
      %v668 = vrot.slane %v660, 1
      %v669 = vsel %vm664, %v666, %v668
      %v670 = vrot.slane %v661, 1
      %v671 = vsel %vm664, %v668, %v670
      %v672 = vrot.slane %v662, 1
      %v673 = vsel %vm664, %v670, %v672
      %v674 = vrot.slane %v663, 1
      %v675 = vsel %vm664, %v672, %v674
      %v697 = vunpack.c.l.b16 %v620
      %v698 = vunpack.c.l.b16 %v621
      %v699 = vunpack.c.l.b16 %v622
      %v700 = vunpack.c.l.b16 %v623
      %v701 = vunpack.c.l.b16 %v624
      %v702 = vunpack.c.l.b16 %v625
      %v703 = vunpack.c.l.b16 %v626
      %v704 = vunpack.c.l.b16 %v627
      %v705 = vunpack.c.l.b16 %v628
      %v706 = vunpack.c.l.b16 %v629
      %v707 = vunpack.c.l.b16 %v630
      %v708 = vunpack.c.l.b16 %v631
      %v709 = vunpack.c.l.b16 %v632
      %v710 = vunpack.c.l.b16 %v633
      %v711 = vunpack.c.l.b16 %v634
      %v712 = vunpack.c.l.b16 %v635
      %v713 = vpack.c.b16 %v698, %v697
      %v714 = vpack.c.b16 %v700, %v699
      %v715 = vpack.c.b16 %v702, %v701
      %v716 = vpack.c.b16 %v704, %v703
      %v717 = vpack.c.b16 %v706, %v705
      %v718 = vpack.c.b16 %v708, %v707
      %v719 = vpack.c.b16 %v710, %v709
      %v720 = vpack.c.b16 %v712, %v711
      %729 = vmatpush.bf16.msra.mxu0 %v720
      %730 = vmatpush.bf16.msra.mxu0 %v719
      %731 = vmatpush.bf16.msra.mxu0 %v718
      %732 = vmatpush.bf16.msra.mxu0 %v717
      %733 = vmatpush.bf16.msra.mxu0 %v716
      %734 = vmatpush.bf16.msra.mxu0 %v715
      %735 = vmatpush.bf16.msra.mxu0 %v714
      %736 = vmatpush.bf16.msra.mxu0 %v713
      %737 = vmatmul.bf16.gmra.mxu0 %v667
      %v738 = vpop.f32.mrf.mxu0
      %v739 = vadd.f32 0.0, %v738
      %v740 = vpop.f32.mrf.mxu0
      %v741 = vadd.f32 0.0, %v740
      %742 = vmatmul.bf16.gmra.mxu0 %v669
      %v743 = vpop.f32.mrf.mxu0
      %v744 = vadd.f32 0.0, %v743
      %v745 = vpop.f32.mrf.mxu0
      %v746 = vadd.f32 0.0, %v745
      %747 = vmatmul.bf16.gmra.mxu0 %v671
      %v748 = vpop.f32.mrf.mxu0
      %v749 = vadd.f32 0.0, %v748
      %v750 = vpop.f32.mrf.mxu0
      %v751 = vadd.f32 0.0, %v750
      %752 = vmatmul.bf16.gmra.mxu0 %v673
      %v753 = vpop.f32.mrf.mxu0
      %v754 = vadd.f32 0.0, %v753
      %v755 = vpop.f32.mrf.mxu0
      %v756 = vadd.f32 0.0, %v755
      %757 = vmatmul.bf16.gmra.mxu0 %v675
      %v758 = vpop.f32.mrf.mxu0
      %v759 = vadd.f32 0.0, %v758
      %v760 = vpop.f32.mrf.mxu0
      %v761 = vadd.f32 0.0, %v760
      %762 = vdwg.mxu0
      %v763 = vld [vmem:[#allocation2] sm:$0xff]
      %v764 = vld [vmem:[#allocation2 + $0x8] sm:$0xff]
      %v765 = vld [vmem:[#allocation2 + $0x10] sm:$0xff]
      %v766 = vld [vmem:[#allocation2 + $0x18] sm:$0xff]
      %v767 = vld [vmem:[#allocation2 + $0x20] sm:$0xff]
      %v768 = vld [vmem:[#allocation2 + $0x28] sm:$0xff]
      %v769 = vld [vmem:[#allocation2 + $0x30] sm:$0xff]
      %v770 = vld [vmem:[#allocation2 + $0x38] sm:$0xff]
      %v771 = vld [vmem:[#allocation2 + $0x40] sm:$0xff]
      %v772 = vld [vmem:[#allocation2 + $0x48] sm:$0xff]
      %v773 = vadd.f32 %v763, %v739
      %v774 = vadd.f32 %v764, %v741
      %v775 = vadd.f32 %v765, %v744
      %v776 = vadd.f32 %v766, %v746
      %v777 = vadd.f32 %v767, %v749
      %v778 = vadd.f32 %v768, %v751
      %v779 = vadd.f32 %v769, %v754
      %v780 = vadd.f32 %v770, %v756
      %v781 = vadd.f32 %v771, %v759
      %v782 = vadd.f32 %v772, %v761
      %783 = vst [vmem:[#allocation2] sm:$0xff] %v773
      %784 = vst [vmem:[#allocation2 + $0x8] sm:$0xff] %v774
      %785 = vst [vmem:[#allocation2 + $0x10] sm:$0xff] %v775
      %786 = vst [vmem:[#allocation2 + $0x18] sm:$0xff] %v776
      %787 = vst [vmem:[#allocation2 + $0x20] sm:$0xff] %v777
      %788 = vst [vmem:[#allocation2 + $0x28] sm:$0xff] %v778
      %789 = vst [vmem:[#allocation2 + $0x30] sm:$0xff] %v779
      %790 = vst [vmem:[#allocation2 + $0x38] sm:$0xff] %v780
      %791 = vst [vmem:[#allocation2 + $0x40] sm:$0xff] %v781
      %792 = vst [vmem:[#allocation2 + $0x48] sm:$0xff] %v782
      %v793 = vld [vmem:[%s230 + $0x4] sm:$0xe]
      %v794 = vld [vmem:[%s230 + $0x8] sm:$0xf]
      %v795 = vld [vmem:[%s230 + $0xc] sm:$0xf]
      %v796 = vld [vmem:[%s230 + $0x10] sm:$0xf]
      %v797 = vld [vmem:[%s230 + $0x14] sm:$0xf]
      %v798 = vld [vmem:[%s230 + $0x18] sm:$0xf]
      %v799 = vld [vmem:[%s230 + $0x1c] sm:$0xf]
      %v800 = vld [vmem:[%s230 + $0x20] sm:$0xf]
      %v801 = vld [vmem:[%s230 + $0x24] sm:$0xf]
      %v802 = vld [vmem:[%s230 + $0x28] sm:$0xf]
      %v803 = vld [vmem:[%s230 + $0x2c] sm:$0x1]
      %s804 = scalar_lea.vmem %s1, 192
      %v805 = vld [vmem:[%s804] sm:$0xf]
      %v806 = vld [vmem:[%s804 + $0x4] sm:$0xf]
      %v807 = vld [vmem:[%s804 + $0x8] sm:$0xf]
      %v808 = vld [vmem:[%s804 + $0xc] sm:$0xf]
      %v809 = vld [vmem:[%s804 + $0x10] sm:$0xf]
      %v810 = vld [vmem:[%s804 + $0x14] sm:$0xf]
      %v811 = vld [vmem:[%s804 + $0x18] sm:$0xf]
      %v812 = vld [vmem:[%s804 + $0x1c] sm:$0xf]
      %v813 = vld [vmem:[%s804 + $0x20] sm:$0xf]
      %v814 = vld [vmem:[%s804 + $0x24] sm:$0xf]
      %v815 = vld [vmem:[%s804 + $0x28] sm:$0xf]
      %v816 = vld [vmem:[%s804 + $0x2c] sm:$0xf]
      %v817 = vld [vmem:[%s804 + $0x30] sm:$0xf]
      %v818 = vld [vmem:[%s804 + $0x34] sm:$0xf]
      %v819 = vld [vmem:[%s804 + $0x38] sm:$0xf]
      %v820 = vld [vmem:[%s804 + $0x3c] sm:$0xf]
      %v832 = vunpack.c.l.b16 %v793
      %v833 = vunpack.c.l.b16 %v794
      %v834 = vunpack.c.l.b16 %v795
      %v835 = vunpack.c.l.b16 %v796
      %v836 = vunpack.c.l.b16 %v797
      %v837 = vunpack.c.l.b16 %v798
      %v838 = vunpack.c.l.b16 %v799
      %v839 = vunpack.c.l.b16 %v800
      %v840 = vunpack.c.l.b16 %v801
      %v841 = vunpack.c.l.b16 %v802
      %v842 = vunpack.c.l.b16 %v803
      %v843 = vpack.c.b16 %v833, %v832
      %v844 = vpack.c.b16 %v835, %v834
      %v845 = vpack.c.b16 %v837, %v836
      %v846 = vpack.c.b16 %v839, %v838
      %v847 = vpack.c.b16 %v841, %v840
      %v848 = vpack.c.b16 %v842, %v842
      %v849 = vrot.slane %v843, 1
      %v850 = vrot.slane %v844, 1
      %v851 = vsel %vm664, %v849, %v850
      %v852 = vrot.slane %v845, 1
      %v853 = vsel %vm664, %v850, %v852
      %v854 = vrot.slane %v846, 1
      %v855 = vsel %vm664, %v852, %v854
      %v856 = vrot.slane %v847, 1
      %v857 = vsel %vm664, %v854, %v856
      %v858 = vrot.slane %v848, 1
      %v859 = vsel %vm664, %v856, %v858
      %v881 = vunpack.c.l.b16 %v805
      %v882 = vunpack.c.l.b16 %v806
      %v883 = vunpack.c.l.b16 %v807
      %v884 = vunpack.c.l.b16 %v808
      %v885 = vunpack.c.l.b16 %v809
      %v886 = vunpack.c.l.b16 %v810
      %v887 = vunpack.c.l.b16 %v811
      %v888 = vunpack.c.l.b16 %v812
      %v889 = vunpack.c.l.b16 %v813
      %v890 = vunpack.c.l.b16 %v814
      %v891 = vunpack.c.l.b16 %v815
      %v892 = vunpack.c.l.b16 %v816
      %v893 = vunpack.c.l.b16 %v817
      %v894 = vunpack.c.l.b16 %v818
      %v895 = vunpack.c.l.b16 %v819
      %v896 = vunpack.c.l.b16 %v820
      %v897 = vpack.c.b16 %v882, %v881
      %v898 = vpack.c.b16 %v884, %v883
      %v899 = vpack.c.b16 %v886, %v885
      %v900 = vpack.c.b16 %v888, %v887
      %v901 = vpack.c.b16 %v890, %v889
      %v902 = vpack.c.b16 %v892, %v891
      %v903 = vpack.c.b16 %v894, %v893
      %v904 = vpack.c.b16 %v896, %v895
      %913 = vmatpush.bf16.msra.mxu0 %v904
      %914 = vmatpush.bf16.msra.mxu0 %v903
      %915 = vmatpush.bf16.msra.mxu0 %v902
      %916 = vmatpush.bf16.msra.mxu0 %v901
      %917 = vmatpush.bf16.msra.mxu0 %v900
      %918 = vmatpush.bf16.msra.mxu0 %v899
      %919 = vmatpush.bf16.msra.mxu0 %v898
      %920 = vmatpush.bf16.msra.mxu0 %v897
      %921 = vmatmul.bf16.gmra.mxu0 %v851
      %v922 = vpop.f32.mrf.mxu0
      %v923 = vadd.f32 0.0, %v922
      %v924 = vpop.f32.mrf.mxu0
      %v925 = vadd.f32 0.0, %v924
      %926 = vmatmul.bf16.gmra.mxu0 %v853
      %v927 = vpop.f32.mrf.mxu0
      %v928 = vadd.f32 0.0, %v927
      %v929 = vpop.f32.mrf.mxu0
      %v930 = vadd.f32 0.0, %v929
      %931 = vmatmul.bf16.gmra.mxu0 %v855
      %v932 = vpop.f32.mrf.mxu0
      %v933 = vadd.f32 0.0, %v932
      %v934 = vpop.f32.mrf.mxu0
      %v935 = vadd.f32 0.0, %v934
      %936 = vmatmul.bf16.gmra.mxu0 %v857
      %v937 = vpop.f32.mrf.mxu0
      %v938 = vadd.f32 0.0, %v937
      %v939 = vpop.f32.mrf.mxu0
      %v940 = vadd.f32 0.0, %v939
      %941 = vmatmul.bf16.gmra.mxu0 %v859
      %v942 = vpop.f32.mrf.mxu0
      %v943 = vadd.f32 0.0, %v942
      %v944 = vpop.f32.mrf.mxu0
      %v945 = vadd.f32 0.0, %v944
      %946 = vdwg.mxu0
      %v947 = vld [vmem:[#allocation2] sm:$0xff]
      %v948 = vld [vmem:[#allocation2 + $0x8] sm:$0xff]
      %v949 = vld [vmem:[#allocation2 + $0x10] sm:$0xff]
      %v950 = vld [vmem:[#allocation2 + $0x18] sm:$0xff]
      %v951 = vld [vmem:[#allocation2 + $0x20] sm:$0xff]
      %v952 = vld [vmem:[#allocation2 + $0x28] sm:$0xff]
      %v953 = vld [vmem:[#allocation2 + $0x30] sm:$0xff]
      %v954 = vld [vmem:[#allocation2 + $0x38] sm:$0xff]
      %v955 = vld [vmem:[#allocation2 + $0x40] sm:$0xff]
      %v956 = vld [vmem:[#allocation2 + $0x48] sm:$0xff]
      %v957 = vadd.f32 %v947, %v923
      %v958 = vadd.f32 %v948, %v925
      %v959 = vadd.f32 %v949, %v928
      %v960 = vadd.f32 %v950, %v930
      %v961 = vadd.f32 %v951, %v933
      %v962 = vadd.f32 %v952, %v935
      %v963 = vadd.f32 %v953, %v938
      %v964 = vadd.f32 %v954, %v940
      %v965 = vadd.f32 %v955, %v943
      %v966 = vadd.f32 %v956, %v945
      %967 = vst [vmem:[#allocation2] sm:$0xff] %v957
      %968 = vst [vmem:[#allocation2 + $0x8] sm:$0xff] %v958
      %969 = vst [vmem:[#allocation2 + $0x10] sm:$0xff] %v959
      %970 = vst [vmem:[#allocation2 + $0x18] sm:$0xff] %v960
      %971 = vst [vmem:[#allocation2 + $0x20] sm:$0xff] %v961
      %972 = vst [vmem:[#allocation2 + $0x28] sm:$0xff] %v962
      %973 = vst [vmem:[#allocation2 + $0x30] sm:$0xff] %v963
      %974 = vst [vmem:[#allocation2 + $0x38] sm:$0xff] %v964
      %975 = vst [vmem:[#allocation2 + $0x40] sm:$0xff] %v965
      %976 = vst [vmem:[#allocation2 + $0x48] sm:$0xff] %v966
      %v977 = vld [vmem:[%s230 + $0x4] sm:$0xe]
      %v978 = vld [vmem:[%s230 + $0x8] sm:$0xf]
      %v979 = vld [vmem:[%s230 + $0xc] sm:$0xf]
      %v980 = vld [vmem:[%s230 + $0x10] sm:$0xf]
      %v981 = vld [vmem:[%s230 + $0x14] sm:$0xf]
      %v982 = vld [vmem:[%s230 + $0x18] sm:$0xf]
      %v983 = vld [vmem:[%s230 + $0x1c] sm:$0xf]
      %v984 = vld [vmem:[%s230 + $0x20] sm:$0xf]
      %v985 = vld [vmem:[%s230 + $0x24] sm:$0xf]
      %v986 = vld [vmem:[%s230 + $0x28] sm:$0xf]
      %v987 = vld [vmem:[%s230 + $0x2c] sm:$0x3]
      %s988 = scalar_lea.vmem %s1, 256
      %v989 = vld [vmem:[%s988] sm:$0xf]
      %v990 = vld [vmem:[%s988 + $0x4] sm:$0xf]
      %v991 = vld [vmem:[%s988 + $0x8] sm:$0xf]
      %v992 = vld [vmem:[%s988 + $0xc] sm:$0xf]
      %v993 = vld [vmem:[%s988 + $0x10] sm:$0xf]
      %v994 = vld [vmem:[%s988 + $0x14] sm:$0xf]
      %v995 = vld [vmem:[%s988 + $0x18] sm:$0xf]
      %v996 = vld [vmem:[%s988 + $0x1c] sm:$0xf]
      %v997 = vld [vmem:[%s988 + $0x20] sm:$0xf]
      %v998 = vld [vmem:[%s988 + $0x24] sm:$0xf]
      %v999 = vld [vmem:[%s988 + $0x28] sm:$0xf]
      %v1000 = vld [vmem:[%s988 + $0x2c] sm:$0xf]
      %v1001 = vld [vmem:[%s988 + $0x30] sm:$0xf]
      %v1002 = vld [vmem:[%s988 + $0x34] sm:$0xf]
      %v1003 = vld [vmem:[%s988 + $0x38] sm:$0xf]
      %v1004 = vld [vmem:[%s988 + $0x3c] sm:$0xf]
      %v1016 = vunpack.c.l.b16 %v977
      %v1017 = vunpack.c.l.b16 %v978
      %v1018 = vunpack.c.l.b16 %v979
      %v1019 = vunpack.c.l.b16 %v980
      %v1020 = vunpack.c.l.b16 %v981
      %v1021 = vunpack.c.l.b16 %v982
      %v1022 = vunpack.c.l.b16 %v983
      %v1023 = vunpack.c.l.b16 %v984
      %v1024 = vunpack.c.l.b16 %v985
      %v1025 = vunpack.c.l.b16 %v986
      %v1026 = vunpack.c.l.b16 %v987
      %v1027 = vpack.c.b16 %v1017, %v1016
      %v1028 = vpack.c.b16 %v1019, %v1018
      %v1029 = vpack.c.b16 %v1021, %v1020
      %v1030 = vpack.c.b16 %v1023, %v1022
      %v1031 = vpack.c.b16 %v1025, %v1024
      %v1032 = vpack.c.b16 %v1026, %v1026
      %vm1033 = vsmask.f32 6400
      %v1035 = vshrl.u32 %v1027, 16
      %v1037 = vrot.slane %v1035, 1
      %v1038 = vshll.u32 %v1027, 16
      %v1040 = vrot.slane %v1038, 2
      %v1041 = vor.u32 %v1037, %v1040
      %v1043 = vshrl.u32 %v1028, 16
      %v1045 = vrot.slane %v1043, 1
      %v1046 = vshll.u32 %v1028, 16
      %v1048 = vrot.slane %v1046, 2
      %v1049 = vor.u32 %v1045, %v1048
      %v1050 = vsel %vm1033, %v1041, %v1049
      %v1052 = vshrl.u32 %v1029, 16
      %v1054 = vrot.slane %v1052, 1
      %v1055 = vshll.u32 %v1029, 16
      %v1057 = vrot.slane %v1055, 2
      %v1058 = vor.u32 %v1054, %v1057
      %v1059 = vsel %vm1033, %v1049, %v1058
      %v1061 = vshrl.u32 %v1030, 16
      %v1063 = vrot.slane %v1061, 1
      %v1064 = vshll.u32 %v1030, 16
      %v1066 = vrot.slane %v1064, 2
      %v1067 = vor.u32 %v1063, %v1066
      %v1068 = vsel %vm1033, %v1058, %v1067
      %v1070 = vshrl.u32 %v1031, 16
      %v1072 = vrot.slane %v1070, 1
      %v1073 = vshll.u32 %v1031, 16
      %v1075 = vrot.slane %v1073, 2
      %v1076 = vor.u32 %v1072, %v1075
      %v1077 = vsel %vm1033, %v1067, %v1076
      %v1079 = vshrl.u32 %v1032, 16
      %v1081 = vrot.slane %v1079, 1
      %v1082 = vshll.u32 %v1032, 16
      %v1084 = vrot.slane %v1082, 2
      %v1085 = vor.u32 %v1081, %v1084
      %v1086 = vsel %vm1033, %v1076, %v1085
      %v1108 = vunpack.c.l.b16 %v989
      %v1109 = vunpack.c.l.b16 %v990
      %v1110 = vunpack.c.l.b16 %v991
      %v1111 = vunpack.c.l.b16 %v992
      %v1112 = vunpack.c.l.b16 %v993
      %v1113 = vunpack.c.l.b16 %v994
      %v1114 = vunpack.c.l.b16 %v995
      %v1115 = vunpack.c.l.b16 %v996
      %v1116 = vunpack.c.l.b16 %v997
      %v1117 = vunpack.c.l.b16 %v998
      %v1118 = vunpack.c.l.b16 %v999
      %v1119 = vunpack.c.l.b16 %v1000
      %v1120 = vunpack.c.l.b16 %v1001
      %v1121 = vunpack.c.l.b16 %v1002
      %v1122 = vunpack.c.l.b16 %v1003
      %v1123 = vunpack.c.l.b16 %v1004
      %v1124 = vpack.c.b16 %v1109, %v1108
      %v1125 = vpack.c.b16 %v1111, %v1110
      %v1126 = vpack.c.b16 %v1113, %v1112
      %v1127 = vpack.c.b16 %v1115, %v1114
      %v1128 = vpack.c.b16 %v1117, %v1116
      %v1129 = vpack.c.b16 %v1119, %v1118
      %v1130 = vpack.c.b16 %v1121, %v1120
      %v1131 = vpack.c.b16 %v1123, %v1122
      %1140 = vmatpush.bf16.msra.mxu0 %v1131
      %1141 = vmatpush.bf16.msra.mxu0 %v1130
      %1142 = vmatpush.bf16.msra.mxu0 %v1129
      %1143 = vmatpush.bf16.msra.mxu0 %v1128
      %1144 = vmatpush.bf16.msra.mxu0 %v1127
      %1145 = vmatpush.bf16.msra.mxu0 %v1126
      %1146 = vmatpush.bf16.msra.mxu0 %v1125
      %1147 = vmatpush.bf16.msra.mxu0 %v1124
      %1148 = vmatmul.bf16.gmra.mxu0 %v1050
      %v1149 = vpop.f32.mrf.mxu0
      %v1150 = vadd.f32 0.0, %v1149
      %v1151 = vpop.f32.mrf.mxu0
      %v1152 = vadd.f32 0.0, %v1151
      %1153 = vmatmul.bf16.gmra.mxu0 %v1059
      %v1154 = vpop.f32.mrf.mxu0
      %v1155 = vadd.f32 0.0, %v1154
      %v1156 = vpop.f32.mrf.mxu0
      %v1157 = vadd.f32 0.0, %v1156
      %1158 = vmatmul.bf16.gmra.mxu0 %v1068
      %v1159 = vpop.f32.mrf.mxu0
      %v1160 = vadd.f32 0.0, %v1159
      %v1161 = vpop.f32.mrf.mxu0
      %v1162 = vadd.f32 0.0, %v1161
      %1163 = vmatmul.bf16.gmra.mxu0 %v1077
      %v1164 = vpop.f32.mrf.mxu0
      %v1165 = vadd.f32 0.0, %v1164
      %v1166 = vpop.f32.mrf.mxu0
      %v1167 = vadd.f32 0.0, %v1166
      %1168 = vmatmul.bf16.gmra.mxu0 %v1086
      %v1169 = vpop.f32.mrf.mxu0
      %v1170 = vadd.f32 0.0, %v1169
      %v1171 = vpop.f32.mrf.mxu0
      %v1172 = vadd.f32 0.0, %v1171
      %1173 = vdwg.mxu0
      %v1174 = vld [vmem:[#allocation2] sm:$0xff]
      %v1175 = vld [vmem:[#allocation2 + $0x8] sm:$0xff]
      %v1176 = vld [vmem:[#allocation2 + $0x10] sm:$0xff]
      %v1177 = vld [vmem:[#allocation2 + $0x18] sm:$0xff]
      %v1178 = vld [vmem:[#allocation2 + $0x20] sm:$0xff]
      %v1179 = vld [vmem:[#allocation2 + $0x28] sm:$0xff]
      %v1180 = vld [vmem:[#allocation2 + $0x30] sm:$0xff]
      %v1181 = vld [vmem:[#allocation2 + $0x38] sm:$0xff]
      %v1182 = vld [vmem:[#allocation2 + $0x40] sm:$0xff]
      %v1183 = vld [vmem:[#allocation2 + $0x48] sm:$0xff]
      %v1184 = vadd.f32 %v1174, %v1150
      %v1185 = vadd.f32 %v1175, %v1152
      %v1186 = vadd.f32 %v1176, %v1155
      %v1187 = vadd.f32 %v1177, %v1157
      %v1188 = vadd.f32 %v1178, %v1160
      %v1189 = vadd.f32 %v1179, %v1162
      %v1190 = vadd.f32 %v1180, %v1165
      %v1191 = vadd.f32 %v1181, %v1167
      %v1192 = vadd.f32 %v1182, %v1170
      %v1193 = vadd.f32 %v1183, %v1172
      %1194 = vst [vmem:[#allocation2] sm:$0xff] %v1184
      %1195 = vst [vmem:[#allocation2 + $0x8] sm:$0xff] %v1185
      %1196 = vst [vmem:[#allocation2 + $0x10] sm:$0xff] %v1186
      %1197 = vst [vmem:[#allocation2 + $0x18] sm:$0xff] %v1187
      %1198 = vst [vmem:[#allocation2 + $0x20] sm:$0xff] %v1188
      %1199 = vst [vmem:[#allocation2 + $0x28] sm:$0xff] %v1189
      %1200 = vst [vmem:[#allocation2 + $0x30] sm:$0xff] %v1190
      %1201 = vst [vmem:[#allocation2 + $0x38] sm:$0xff] %v1191
      %1202 = vst [vmem:[#allocation2 + $0x40] sm:$0xff] %v1192
      %1203 = vst [vmem:[#allocation2 + $0x48] sm:$0xff] %v1193
      %v1204 = vld [vmem:[%s230 + $0x4] sm:$0xc]
      %v1205 = vld [vmem:[%s230 + $0x8] sm:$0xf]
      %v1206 = vld [vmem:[%s230 + $0xc] sm:$0xf]
      %v1207 = vld [vmem:[%s230 + $0x10] sm:$0xf]
      %v1208 = vld [vmem:[%s230 + $0x14] sm:$0xf]
      %v1209 = vld [vmem:[%s230 + $0x18] sm:$0xf]
      %v1210 = vld [vmem:[%s230 + $0x1c] sm:$0xf]
      %v1211 = vld [vmem:[%s230 + $0x20] sm:$0xf]
      %v1212 = vld [vmem:[%s230 + $0x24] sm:$0xf]
      %v1213 = vld [vmem:[%s230 + $0x28] sm:$0xf]
      %v1214 = vld [vmem:[%s230 + $0x2c] sm:$0x3]
      %s1215 = scalar_lea.vmem %s1, 320
      %v1216 = vld [vmem:[%s1215] sm:$0xf]
      %v1217 = vld [vmem:[%s1215 + $0x4] sm:$0xf]
      %v1218 = vld [vmem:[%s1215 + $0x8] sm:$0xf]
      %v1219 = vld [vmem:[%s1215 + $0xc] sm:$0xf]
      %v1220 = vld [vmem:[%s1215 + $0x10] sm:$0xf]
      %v1221 = vld [vmem:[%s1215 + $0x14] sm:$0xf]
      %v1222 = vld [vmem:[%s1215 + $0x18] sm:$0xf]
      %v1223 = vld [vmem:[%s1215 + $0x1c] sm:$0xf]
      %v1224 = vld [vmem:[%s1215 + $0x20] sm:$0xf]
      %v1225 = vld [vmem:[%s1215 + $0x24] sm:$0xf]
      %v1226 = vld [vmem:[%s1215 + $0x28] sm:$0xf]
      %v1227 = vld [vmem:[%s1215 + $0x2c] sm:$0xf]
      %v1228 = vld [vmem:[%s1215 + $0x30] sm:$0xf]
      %v1229 = vld [vmem:[%s1215 + $0x34] sm:$0xf]
      %v1230 = vld [vmem:[%s1215 + $0x38] sm:$0xf]
      %v1231 = vld [vmem:[%s1215 + $0x3c] sm:$0xf]
      %v1243 = vunpack.c.l.b16 %v1204
      %v1244 = vunpack.c.l.b16 %v1205
      %v1245 = vunpack.c.l.b16 %v1206
      %v1246 = vunpack.c.l.b16 %v1207
      %v1247 = vunpack.c.l.b16 %v1208
      %v1248 = vunpack.c.l.b16 %v1209
      %v1249 = vunpack.c.l.b16 %v1210
      %v1250 = vunpack.c.l.b16 %v1211
      %v1251 = vunpack.c.l.b16 %v1212
      %v1252 = vunpack.c.l.b16 %v1213
      %v1253 = vunpack.c.l.b16 %v1214
      %v1254 = vpack.c.b16 %v1244, %v1243
      %v1255 = vpack.c.b16 %v1246, %v1245
      %v1256 = vpack.c.b16 %v1248, %v1247
      %v1257 = vpack.c.b16 %v1250, %v1249
      %v1258 = vpack.c.b16 %v1252, %v1251
      %v1259 = vpack.c.b16 %v1253, %v1253
      %vm1260 = vcmask 1045504
      %v1261 = vrot.slane %v1254, 2
      %v1262 = vrot.slane %v1255, 2
      %v1263 = vsel %vm1260, %v1261, %v1262
      %v1264 = vrot.slane %v1256, 2
      %v1265 = vsel %vm1260, %v1262, %v1264
      %v1266 = vrot.slane %v1257, 2
      %v1267 = vsel %vm1260, %v1264, %v1266
      %v1268 = vrot.slane %v1258, 2
      %v1269 = vsel %vm1260, %v1266, %v1268
      %v1270 = vrot.slane %v1259, 2
      %v1271 = vsel %vm1260, %v1268, %v1270
      %v1293 = vunpack.c.l.b16 %v1216
      %v1294 = vunpack.c.l.b16 %v1217
      %v1295 = vunpack.c.l.b16 %v1218
      %v1296 = vunpack.c.l.b16 %v1219
      %v1297 = vunpack.c.l.b16 %v1220
      %v1298 = vunpack.c.l.b16 %v1221
      %v1299 = vunpack.c.l.b16 %v1222
      %v1300 = vunpack.c.l.b16 %v1223
      %v1301 = vunpack.c.l.b16 %v1224
      %v1302 = vunpack.c.l.b16 %v1225
      %v1303 = vunpack.c.l.b16 %v1226
      %v1304 = vunpack.c.l.b16 %v1227
      %v1305 = vunpack.c.l.b16 %v1228
      %v1306 = vunpack.c.l.b16 %v1229
      %v1307 = vunpack.c.l.b16 %v1230
      %v1308 = vunpack.c.l.b16 %v1231
      %v1309 = vpack.c.b16 %v1294, %v1293
      %v1310 = vpack.c.b16 %v1296, %v1295
      %v1311 = vpack.c.b16 %v1298, %v1297
      %v1312 = vpack.c.b16 %v1300, %v1299
      %v1313 = vpack.c.b16 %v1302, %v1301
      %v1314 = vpack.c.b16 %v1304, %v1303
      %v1315 = vpack.c.b16 %v1306, %v1305
      %v1316 = vpack.c.b16 %v1308, %v1307
      %1325 = vmatpush.bf16.msra.mxu0 %v1316
      %1326 = vmatpush.bf16.msra.mxu0 %v1315
      %1327 = vmatpush.bf16.msra.mxu0 %v1314
      %1328 = vmatpush.bf16.msra.mxu0 %v1313
      %1329 = vmatpush.bf16.msra.mxu0 %v1312
      %1330 = vmatpush.bf16.msra.mxu0 %v1311
      %1331 = vmatpush.bf16.msra.mxu0 %v1310
      %1332 = vmatpush.bf16.msra.mxu0 %v1309
      %1333 = vmatmul.bf16.gmra.mxu0 %v1263
      %v1334 = vpop.f32.mrf.mxu0
      %v1335 = vadd.f32 0.0, %v1334
      %v1336 = vpop.f32.mrf.mxu0
      %v1337 = vadd.f32 0.0, %v1336
      %1338 = vmatmul.bf16.gmra.mxu0 %v1265
      %v1339 = vpop.f32.mrf.mxu0
      %v1340 = vadd.f32 0.0, %v1339
      %v1341 = vpop.f32.mrf.mxu0
      %v1342 = vadd.f32 0.0, %v1341
      %1343 = vmatmul.bf16.gmra.mxu0 %v1267
      %v1344 = vpop.f32.mrf.mxu0
      %v1345 = vadd.f32 0.0, %v1344
      %v1346 = vpop.f32.mrf.mxu0
      %v1347 = vadd.f32 0.0, %v1346
      %1348 = vmatmul.bf16.gmra.mxu0 %v1269
      %v1349 = vpop.f32.mrf.mxu0
      %v1350 = vadd.f32 0.0, %v1349
      %v1351 = vpop.f32.mrf.mxu0
      %v1352 = vadd.f32 0.0, %v1351
      %1353 = vmatmul.bf16.gmra.mxu0 %v1271
      %v1354 = vpop.f32.mrf.mxu0
      %v1355 = vadd.f32 0.0, %v1354
      %v1356 = vpop.f32.mrf.mxu0
      %v1357 = vadd.f32 0.0, %v1356
      %1358 = vdwg.mxu0
      %v1359 = vld [vmem:[#allocation2] sm:$0xff]
      %v1360 = vld [vmem:[#allocation2 + $0x8] sm:$0xff]
      %v1361 = vld [vmem:[#allocation2 + $0x10] sm:$0xff]
      %v1362 = vld [vmem:[#allocation2 + $0x18] sm:$0xff]
      %v1363 = vld [vmem:[#allocation2 + $0x20] sm:$0xff]
      %v1364 = vld [vmem:[#allocation2 + $0x28] sm:$0xff]
      %v1365 = vld [vmem:[#allocation2 + $0x30] sm:$0xff]
      %v1366 = vld [vmem:[#allocation2 + $0x38] sm:$0xff]
      %v1367 = vld [vmem:[#allocation2 + $0x40] sm:$0xff]
      %v1368 = vld [vmem:[#allocation2 + $0x48] sm:$0xff]
      %v1369 = vadd.f32 %v1359, %v1335
      %v1370 = vadd.f32 %v1360, %v1337
      %v1371 = vadd.f32 %v1361, %v1340
      %v1372 = vadd.f32 %v1362, %v1342
      %v1373 = vadd.f32 %v1363, %v1345
      %v1374 = vadd.f32 %v1364, %v1347
      %v1375 = vadd.f32 %v1365, %v1350
      %v1376 = vadd.f32 %v1366, %v1352
      %v1377 = vadd.f32 %v1367, %v1355
      %v1378 = vadd.f32 %v1368, %v1357
      %1379 = vst [vmem:[#allocation2] sm:$0xff] %v1369
      %1380 = vst [vmem:[#allocation2 + $0x8] sm:$0xff] %v1370
      %1381 = vst [vmem:[#allocation2 + $0x10] sm:$0xff] %v1371
      %1382 = vst [vmem:[#allocation2 + $0x18] sm:$0xff] %v1372
      %1383 = vst [vmem:[#allocation2 + $0x20] sm:$0xff] %v1373
      %1384 = vst [vmem:[#allocation2 + $0x28] sm:$0xff] %v1374
      %1385 = vst [vmem:[#allocation2 + $0x30] sm:$0xff] %v1375
      %1386 = vst [vmem:[#allocation2 + $0x38] sm:$0xff] %v1376
      %1387 = vst [vmem:[#allocation2 + $0x40] sm:$0xff] %v1377
      %1388 = vst [vmem:[#allocation2 + $0x48] sm:$0xff] %v1378
      %v1389 = vld [vmem:[%s230 + $0x8] sm:$0xc]
      %v1390 = vld [vmem:[%s230 + $0xc] sm:$0xf]
      %v1391 = vld [vmem:[%s230 + $0x10] sm:$0xf]
      %v1392 = vld [vmem:[%s230 + $0x14] sm:$0xf]
      %v1393 = vld [vmem:[%s230 + $0x18] sm:$0xf]
      %v1394 = vld [vmem:[%s230 + $0x1c] sm:$0xf]
      %v1395 = vld [vmem:[%s230 + $0x20] sm:$0xf]
      %v1396 = vld [vmem:[%s230 + $0x24] sm:$0xf]
      %v1397 = vld [vmem:[%s230 + $0x28] sm:$0xf]
      %v1398 = vld [vmem:[%s230 + $0x2c] sm:$0xf]
      %v1399 = vld [vmem:[%s230 + $0x30] sm:$0x3]
      %s1400 = scalar_lea.vmem %s1, 384
      %v1401 = vld [vmem:[%s1400] sm:$0xf]
      %v1402 = vld [vmem:[%s1400 + $0x4] sm:$0xf]
      %v1403 = vld [vmem:[%s1400 + $0x8] sm:$0xf]
      %v1404 = vld [vmem:[%s1400 + $0xc] sm:$0xf]
      %v1405 = vld [vmem:[%s1400 + $0x10] sm:$0xf]
      %v1406 = vld [vmem:[%s1400 + $0x14] sm:$0xf]
      %v1407 = vld [vmem:[%s1400 + $0x18] sm:$0xf]
      %v1408 = vld [vmem:[%s1400 + $0x1c] sm:$0xf]
      %v1409 = vld [vmem:[%s1400 + $0x20] sm:$0xf]
      %v1410 = vld [vmem:[%s1400 + $0x24] sm:$0xf]
      %v1411 = vld [vmem:[%s1400 + $0x28] sm:$0xf]
      %v1412 = vld [vmem:[%s1400 + $0x2c] sm:$0xf]
      %v1413 = vld [vmem:[%s1400 + $0x30] sm:$0xf]
      %v1414 = vld [vmem:[%s1400 + $0x34] sm:$0xf]
      %v1415 = vld [vmem:[%s1400 + $0x38] sm:$0xf]
      %v1416 = vld [vmem:[%s1400 + $0x3c] sm:$0xf]
      %v1428 = vunpack.c.l.b16 %v1389
      %v1429 = vunpack.c.l.b16 %v1390
      %v1430 = vunpack.c.l.b16 %v1391
      %v1431 = vunpack.c.l.b16 %v1392
      %v1432 = vunpack.c.l.b16 %v1393
      %v1433 = vunpack.c.l.b16 %v1394
      %v1434 = vunpack.c.l.b16 %v1395
      %v1435 = vunpack.c.l.b16 %v1396
      %v1436 = vunpack.c.l.b16 %v1397
      %v1437 = vunpack.c.l.b16 %v1398
      %v1438 = vunpack.c.l.b16 %v1399
      %v1439 = vpack.c.b16 %v1429, %v1428
      %v1440 = vpack.c.b16 %v1431, %v1430
      %v1441 = vpack.c.b16 %v1433, %v1432
      %v1442 = vpack.c.b16 %v1435, %v1434
      %v1443 = vpack.c.b16 %v1437, %v1436
      %v1444 = vpack.c.b16 %v1438, %v1438
      %v1445 = vrot.slane %v1439, 2
      %v1446 = vrot.slane %v1440, 2
      %v1447 = vsel %vm1260, %v1445, %v1446
      %v1448 = vrot.slane %v1441, 2
      %v1449 = vsel %vm1260, %v1446, %v1448
      %v1450 = vrot.slane %v1442, 2
      %v1451 = vsel %vm1260, %v1448, %v1450
      %v1452 = vrot.slane %v1443, 2
      %v1453 = vsel %vm1260, %v1450, %v1452
      %v1454 = vrot.slane %v1444, 2
      %v1455 = vsel %vm1260, %v1452, %v1454
      %v1477 = vunpack.c.l.b16 %v1401
      %v1478 = vunpack.c.l.b16 %v1402
      %v1479 = vunpack.c.l.b16 %v1403
      %v1480 = vunpack.c.l.b16 %v1404
      %v1481 = vunpack.c.l.b16 %v1405
      %v1482 = vunpack.c.l.b16 %v1406
      %v1483 = vunpack.c.l.b16 %v1407
      %v1484 = vunpack.c.l.b16 %v1408
      %v1485 = vunpack.c.l.b16 %v1409
      %v1486 = vunpack.c.l.b16 %v1410
      %v1487 = vunpack.c.l.b16 %v1411
      %v1488 = vunpack.c.l.b16 %v1412
      %v1489 = vunpack.c.l.b16 %v1413
      %v1490 = vunpack.c.l.b16 %v1414
      %v1491 = vunpack.c.l.b16 %v1415
      %v1492 = vunpack.c.l.b16 %v1416
      %v1493 = vpack.c.b16 %v1478, %v1477
      %v1494 = vpack.c.b16 %v1480, %v1479
      %v1495 = vpack.c.b16 %v1482, %v1481
      %v1496 = vpack.c.b16 %v1484, %v1483
      %v1497 = vpack.c.b16 %v1486, %v1485
      %v1498 = vpack.c.b16 %v1488, %v1487
      %v1499 = vpack.c.b16 %v1490, %v1489
      %v1500 = vpack.c.b16 %v1492, %v1491
      %1509 = vmatpush.bf16.msra.mxu0 %v1500
      %1510 = vmatpush.bf16.msra.mxu0 %v1499
      %1511 = vmatpush.bf16.msra.mxu0 %v1498
      %1512 = vmatpush.bf16.msra.mxu0 %v1497
      %1513 = vmatpush.bf16.msra.mxu0 %v1496
      %1514 = vmatpush.bf16.msra.mxu0 %v1495
      %1515 = vmatpush.bf16.msra.mxu0 %v1494
      %1516 = vmatpush.bf16.msra.mxu0 %v1493
      %1517 = vmatmul.bf16.gmra.mxu0 %v1447
      %v1518 = vpop.f32.mrf.mxu0
      %v1519 = vadd.f32 0.0, %v1518
      %v1520 = vpop.f32.mrf.mxu0
      %v1521 = vadd.f32 0.0, %v1520
      %1522 = vmatmul.bf16.gmra.mxu0 %v1449
      %v1523 = vpop.f32.mrf.mxu0
      %v1524 = vadd.f32 0.0, %v1523
      %v1525 = vpop.f32.mrf.mxu0
      %v1526 = vadd.f32 0.0, %v1525
      %1527 = vmatmul.bf16.gmra.mxu0 %v1451
      %v1528 = vpop.f32.mrf.mxu0
      %v1529 = vadd.f32 0.0, %v1528
      %v1530 = vpop.f32.mrf.mxu0
      %v1531 = vadd.f32 0.0, %v1530
      %1532 = vmatmul.bf16.gmra.mxu0 %v1453
      %v1533 = vpop.f32.mrf.mxu0
      %v1534 = vadd.f32 0.0, %v1533
      %v1535 = vpop.f32.mrf.mxu0
      %v1536 = vadd.f32 0.0, %v1535
      %1537 = vmatmul.bf16.gmra.mxu0 %v1455
      %v1538 = vpop.f32.mrf.mxu0
      %v1539 = vadd.f32 0.0, %v1538
      %v1540 = vpop.f32.mrf.mxu0
      %v1541 = vadd.f32 0.0, %v1540
      %1542 = vdwg.mxu0
      %v1543 = vld [vmem:[#allocation2] sm:$0xff]
      %v1544 = vld [vmem:[#allocation2 + $0x8] sm:$0xff]
      %v1545 = vld [vmem:[#allocation2 + $0x10] sm:$0xff]
      %v1546 = vld [vmem:[#allocation2 + $0x18] sm:$0xff]
      %v1547 = vld [vmem:[#allocation2 + $0x20] sm:$0xff]
      %v1548 = vld [vmem:[#allocation2 + $0x28] sm:$0xff]
      %v1549 = vld [vmem:[#allocation2 + $0x30] sm:$0xff]
      %v1550 = vld [vmem:[#allocation2 + $0x38] sm:$0xff]
      %v1551 = vld [vmem:[#allocation2 + $0x40] sm:$0xff]
      %v1552 = vld [vmem:[#allocation2 + $0x48] sm:$0xff]
      %v1553 = vadd.f32 %v1543, %v1519
      %v1554 = vadd.f32 %v1544, %v1521
      %v1555 = vadd.f32 %v1545, %v1524
      %v1556 = vadd.f32 %v1546, %v1526
      %v1557 = vadd.f32 %v1547, %v1529
      %v1558 = vadd.f32 %v1548, %v1531
      %v1559 = vadd.f32 %v1549, %v1534
      %v1560 = vadd.f32 %v1550, %v1536
      %v1561 = vadd.f32 %v1551, %v1539
      %v1562 = vadd.f32 %v1552, %v1541
      %1563 = vst [vmem:[#allocation2] sm:$0xff] %v1553
      %1564 = vst [vmem:[#allocation2 + $0x8] sm:$0xff] %v1554
      %1565 = vst [vmem:[#allocation2 + $0x10] sm:$0xff] %v1555
      %1566 = vst [vmem:[#allocation2 + $0x18] sm:$0xff] %v1556
      %1567 = vst [vmem:[#allocation2 + $0x20] sm:$0xff] %v1557
      %1568 = vst [vmem:[#allocation2 + $0x28] sm:$0xff] %v1558
      %1569 = vst [vmem:[#allocation2 + $0x30] sm:$0xff] %v1559
      %1570 = vst [vmem:[#allocation2 + $0x38] sm:$0xff] %v1560
      %1571 = vst [vmem:[#allocation2 + $0x40] sm:$0xff] %v1561
      %1572 = vst [vmem:[#allocation2 + $0x48] sm:$0xff] %v1562
      %v1573 = vld [vmem:[%s230 + $0x8] sm:$0xc]
      %v1574 = vld [vmem:[%s230 + $0xc] sm:$0xf]
      %v1575 = vld [vmem:[%s230 + $0x10] sm:$0xf]
      %v1576 = vld [vmem:[%s230 + $0x14] sm:$0xf]
      %v1577 = vld [vmem:[%s230 + $0x18] sm:$0xf]
      %v1578 = vld [vmem:[%s230 + $0x1c] sm:$0xf]
      %v1579 = vld [vmem:[%s230 + $0x20] sm:$0xf]
      %v1580 = vld [vmem:[%s230 + $0x24] sm:$0xf]
      %v1581 = vld [vmem:[%s230 + $0x28] sm:$0xf]
      %v1582 = vld [vmem:[%s230 + $0x2c] sm:$0xf]
      %v1583 = vld [vmem:[%s230 + $0x30] sm:$0x7]
      %s1584 = scalar_lea.vmem %s1, 448
      %v1585 = vld [vmem:[%s1584] sm:$0xf]
      %v1586 = vld [vmem:[%s1584 + $0x4] sm:$0xf]
      %v1587 = vld [vmem:[%s1584 + $0x8] sm:$0xf]
      %v1588 = vld [vmem:[%s1584 + $0xc] sm:$0xf]
      %v1589 = vld [vmem:[%s1584 + $0x10] sm:$0xf]
      %v1590 = vld [vmem:[%s1584 + $0x14] sm:$0xf]
      %v1591 = vld [vmem:[%s1584 + $0x18] sm:$0xf]
      %v1592 = vld [vmem:[%s1584 + $0x1c] sm:$0xf]
      %v1593 = vld [vmem:[%s1584 + $0x20] sm:$0xf]
      %v1594 = vld [vmem:[%s1584 + $0x24] sm:$0xf]
      %v1595 = vld [vmem:[%s1584 + $0x28] sm:$0xf]
      %v1596 = vld [vmem:[%s1584 + $0x2c] sm:$0xf]
      %v1597 = vld [vmem:[%s1584 + $0x30] sm:$0xf]
      %v1598 = vld [vmem:[%s1584 + $0x34] sm:$0xf]
      %v1599 = vld [vmem:[%s1584 + $0x38] sm:$0xf]
      %v1600 = vld [vmem:[%s1584 + $0x3c] sm:$0xf]
      %v1612 = vunpack.c.l.b16 %v1573
      %v1613 = vunpack.c.l.b16 %v1574
      %v1614 = vunpack.c.l.b16 %v1575
      %v1615 = vunpack.c.l.b16 %v1576
      %v1616 = vunpack.c.l.b16 %v1577
      %v1617 = vunpack.c.l.b16 %v1578
      %v1618 = vunpack.c.l.b16 %v1579
      %v1619 = vunpack.c.l.b16 %v1580
      %v1620 = vunpack.c.l.b16 %v1581
      %v1621 = vunpack.c.l.b16 %v1582
      %v1622 = vunpack.c.l.b16 %v1583
      %v1623 = vpack.c.b16 %v1613, %v1612
      %v1624 = vpack.c.b16 %v1615, %v1614
      %v1625 = vpack.c.b16 %v1617, %v1616
      %v1626 = vpack.c.b16 %v1619, %v1618
      %v1627 = vpack.c.b16 %v1621, %v1620
      %v1628 = vpack.c.b16 %v1622, %v1622
      %vm1629 = vsmask.f32 5376
      %v1631 = vshrl.u32 %v1623, 16
      %v1633 = vrot.slane %v1631, 2
      %v1634 = vshll.u32 %v1623, 16
      %v1636 = vrot.slane %v1634, 3
      %v1637 = vor.u32 %v1633, %v1636
      %v1639 = vshrl.u32 %v1624, 16
      %v1641 = vrot.slane %v1639, 2
      %v1642 = vshll.u32 %v1624, 16
      %v1644 = vrot.slane %v1642, 3
      %v1645 = vor.u32 %v1641, %v1644
      %v1646 = vsel %vm1629, %v1637, %v1645
      %v1648 = vshrl.u32 %v1625, 16
      %v1650 = vrot.slane %v1648, 2
      %v1651 = vshll.u32 %v1625, 16
      %v1653 = vrot.slane %v1651, 3
      %v1654 = vor.u32 %v1650, %v1653
      %v1655 = vsel %vm1629, %v1645, %v1654
      %v1657 = vshrl.u32 %v1626, 16
      %v1659 = vrot.slane %v1657, 2
      %v1660 = vshll.u32 %v1626, 16
      %v1662 = vrot.slane %v1660, 3
      %v1663 = vor.u32 %v1659, %v1662
      %v1664 = vsel %vm1629, %v1654, %v1663
      %v1666 = vshrl.u32 %v1627, 16
      %v1668 = vrot.slane %v1666, 2
      %v1669 = vshll.u32 %v1627, 16
      %v1671 = vrot.slane %v1669, 3
      %v1672 = vor.u32 %v1668, %v1671
      %v1673 = vsel %vm1629, %v1663, %v1672
      %v1675 = vshrl.u32 %v1628, 16
      %v1677 = vrot.slane %v1675, 2
      %v1678 = vshll.u32 %v1628, 16
      %v1680 = vrot.slane %v1678, 3
      %v1681 = vor.u32 %v1677, %v1680
      %v1682 = vsel %vm1629, %v1672, %v1681
      %v1704 = vunpack.c.l.b16 %v1585
      %v1705 = vunpack.c.l.b16 %v1586
      %v1706 = vunpack.c.l.b16 %v1587
      %v1707 = vunpack.c.l.b16 %v1588
      %v1708 = vunpack.c.l.b16 %v1589
      %v1709 = vunpack.c.l.b16 %v1590
      %v1710 = vunpack.c.l.b16 %v1591
      %v1711 = vunpack.c.l.b16 %v1592
      %v1712 = vunpack.c.l.b16 %v1593
      %v1713 = vunpack.c.l.b16 %v1594
      %v1714 = vunpack.c.l.b16 %v1595
      %v1715 = vunpack.c.l.b16 %v1596
      %v1716 = vunpack.c.l.b16 %v1597
      %v1717 = vunpack.c.l.b16 %v1598
      %v1718 = vunpack.c.l.b16 %v1599
      %v1719 = vunpack.c.l.b16 %v1600
      %v1720 = vpack.c.b16 %v1705, %v1704
      %v1721 = vpack.c.b16 %v1707, %v1706
      %v1722 = vpack.c.b16 %v1709, %v1708
      %v1723 = vpack.c.b16 %v1711, %v1710
      %v1724 = vpack.c.b16 %v1713, %v1712
      %v1725 = vpack.c.b16 %v1715, %v1714
      %v1726 = vpack.c.b16 %v1717, %v1716
      %v1727 = vpack.c.b16 %v1719, %v1718
      %1736 = vmatpush.bf16.msra.mxu0 %v1727
      %1737 = vmatpush.bf16.msra.mxu0 %v1726
      %1738 = vmatpush.bf16.msra.mxu0 %v1725
      %1739 = vmatpush.bf16.msra.mxu0 %v1724
      %1740 = vmatpush.bf16.msra.mxu0 %v1723
      %1741 = vmatpush.bf16.msra.mxu0 %v1722
      %1742 = vmatpush.bf16.msra.mxu0 %v1721
      %1743 = vmatpush.bf16.msra.mxu0 %v1720
      %1744 = vmatmul.bf16.gmra.mxu0 %v1646
      %v1745 = vpop.f32.mrf.mxu0
      %v1746 = vadd.f32 0.0, %v1745
      %v1747 = vpop.f32.mrf.mxu0
      %v1748 = vadd.f32 0.0, %v1747
      %1749 = vmatmul.bf16.gmra.mxu0 %v1655
      %v1750 = vpop.f32.mrf.mxu0
      %v1751 = vadd.f32 0.0, %v1750
      %v1752 = vpop.f32.mrf.mxu0
      %v1753 = vadd.f32 0.0, %v1752
      %1754 = vmatmul.bf16.gmra.mxu0 %v1664
      %v1755 = vpop.f32.mrf.mxu0
      %v1756 = vadd.f32 0.0, %v1755
      %v1757 = vpop.f32.mrf.mxu0
      %v1758 = vadd.f32 0.0, %v1757
      %1759 = vmatmul.bf16.gmra.mxu0 %v1673
      %v1760 = vpop.f32.mrf.mxu0
      %v1761 = vadd.f32 0.0, %v1760
      %v1762 = vpop.f32.mrf.mxu0
      %v1763 = vadd.f32 0.0, %v1762
      %1764 = vmatmul.bf16.gmra.mxu0 %v1682
      %v1765 = vpop.f32.mrf.mxu0
      %v1766 = vadd.f32 0.0, %v1765
      %v1767 = vpop.f32.mrf.mxu0
      %v1768 = vadd.f32 0.0, %v1767
      %1769 = vdwg.mxu0
      %v1770 = vld [vmem:[#allocation2] sm:$0xff]
      %v1771 = vld [vmem:[#allocation2 + $0x8] sm:$0xff]
      %v1772 = vld [vmem:[#allocation2 + $0x10] sm:$0xff]
      %v1773 = vld [vmem:[#allocation2 + $0x18] sm:$0xff]
      %v1774 = vld [vmem:[#allocation2 + $0x20] sm:$0xff]
      %v1775 = vld [vmem:[#allocation2 + $0x28] sm:$0xff]
      %v1776 = vld [vmem:[#allocation2 + $0x30] sm:$0xff]
      %v1777 = vld [vmem:[#allocation2 + $0x38] sm:$0xff]
      %v1778 = vld [vmem:[#allocation2 + $0x40] sm:$0xff]
      %v1779 = vld [vmem:[#allocation2 + $0x48] sm:$0xff]
      %v1780 = vadd.f32 %v1770, %v1746
      %v1781 = vadd.f32 %v1771, %v1748
      %v1782 = vadd.f32 %v1772, %v1751
      %v1783 = vadd.f32 %v1773, %v1753
      %v1784 = vadd.f32 %v1774, %v1756
      %v1785 = vadd.f32 %v1775, %v1758
      %v1786 = vadd.f32 %v1776, %v1761
      %v1787 = vadd.f32 %v1777, %v1763
      %v1788 = vadd.f32 %v1778, %v1766
      %v1789 = vadd.f32 %v1779, %v1768
      %1790 = vst [vmem:[#allocation2] sm:$0xff] %v1780
      %1791 = vst [vmem:[#allocation2 + $0x8] sm:$0xff] %v1781
      %1792 = vst [vmem:[#allocation2 + $0x10] sm:$0xff] %v1782
      %1793 = vst [vmem:[#allocation2 + $0x18] sm:$0xff] %v1783
      %1794 = vst [vmem:[#allocation2 + $0x20] sm:$0xff] %v1784
      %1795 = vst [vmem:[#allocation2 + $0x28] sm:$0xff] %v1785
      %1796 = vst [vmem:[#allocation2 + $0x30] sm:$0xff] %v1786
      %1797 = vst [vmem:[#allocation2 + $0x38] sm:$0xff] %v1787
      %1798 = vst [vmem:[#allocation2 + $0x40] sm:$0xff] %v1788
      %1799 = vst [vmem:[#allocation2 + $0x48] sm:$0xff] %v1789
      %v1800 = vld [vmem:[%s230 + $0x8] sm:$0x8]
      %v1801 = vld [vmem:[%s230 + $0xc] sm:$0xf]
      %v1802 = vld [vmem:[%s230 + $0x10] sm:$0xf]
      %v1803 = vld [vmem:[%s230 + $0x14] sm:$0xf]
      %v1804 = vld [vmem:[%s230 + $0x18] sm:$0xf]
      %v1805 = vld [vmem:[%s230 + $0x1c] sm:$0xf]
      %v1806 = vld [vmem:[%s230 + $0x20] sm:$0xf]
      %v1807 = vld [vmem:[%s230 + $0x24] sm:$0xf]
      %v1808 = vld [vmem:[%s230 + $0x28] sm:$0xf]
      %v1809 = vld [vmem:[%s230 + $0x2c] sm:$0xf]
      %v1810 = vld [vmem:[%s230 + $0x30] sm:$0x7]
      %s1811 = scalar_lea.vmem %s1, 512
      %v1812 = vld [vmem:[%s1811] sm:$0xf]
      %v1813 = vld [vmem:[%s1811 + $0x4] sm:$0xf]
      %v1814 = vld [vmem:[%s1811 + $0x8] sm:$0xf]
      %v1815 = vld [vmem:[%s1811 + $0xc] sm:$0xf]
      %v1816 = vld [vmem:[%s1811 + $0x10] sm:$0xf]
      %v1817 = vld [vmem:[%s1811 + $0x14] sm:$0xf]
      %v1818 = vld [vmem:[%s1811 + $0x18] sm:$0xf]
      %v1819 = vld [vmem:[%s1811 + $0x1c] sm:$0xf]
      %v1820 = vld [vmem:[%s1811 + $0x20] sm:$0xf]
      %v1821 = vld [vmem:[%s1811 + $0x24] sm:$0xf]
      %v1822 = vld [vmem:[%s1811 + $0x28] sm:$0xf]
      %v1823 = vld [vmem:[%s1811 + $0x2c] sm:$0xf]
      %v1824 = vld [vmem:[%s1811 + $0x30] sm:$0xf]
      %v1825 = vld [vmem:[%s1811 + $0x34] sm:$0xf]
      %v1826 = vld [vmem:[%s1811 + $0x38] sm:$0xf]
      %v1827 = vld [vmem:[%s1811 + $0x3c] sm:$0xf]
      %v1839 = vunpack.c.l.b16 %v1800
      %v1840 = vunpack.c.l.b16 %v1801
      %v1841 = vunpack.c.l.b16 %v1802
      %v1842 = vunpack.c.l.b16 %v1803
      %v1843 = vunpack.c.l.b16 %v1804
      %v1844 = vunpack.c.l.b16 %v1805
      %v1845 = vunpack.c.l.b16 %v1806
      %v1846 = vunpack.c.l.b16 %v1807
      %v1847 = vunpack.c.l.b16 %v1808
      %v1848 = vunpack.c.l.b16 %v1809
      %v1849 = vunpack.c.l.b16 %v1810
      %v1850 = vpack.c.b16 %v1840, %v1839
      %v1851 = vpack.c.b16 %v1842, %v1841
      %v1852 = vpack.c.b16 %v1844, %v1843
      %v1853 = vpack.c.b16 %v1846, %v1845
      %v1854 = vpack.c.b16 %v1848, %v1847
      %v1855 = vpack.c.b16 %v1849, %v1849
      %vm1856 = vcmask 1044480
      %v1857 = vrot.slane %v1850, 3
      %v1858 = vrot.slane %v1851, 3
      %v1859 = vsel %vm1856, %v1857, %v1858
      %v1860 = vrot.slane %v1852, 3
      %v1861 = vsel %vm1856, %v1858, %v1860
      %v1862 = vrot.slane %v1853, 3
      %v1863 = vsel %vm1856, %v1860, %v1862
      %v1864 = vrot.slane %v1854, 3
      %v1865 = vsel %vm1856, %v1862, %v1864
      %v1866 = vrot.slane %v1855, 3
      %v1867 = vsel %vm1856, %v1864, %v1866
      %v1889 = vunpack.c.l.b16 %v1812
      %v1890 = vunpack.c.l.b16 %v1813
      %v1891 = vunpack.c.l.b16 %v1814
      %v1892 = vunpack.c.l.b16 %v1815
      %v1893 = vunpack.c.l.b16 %v1816
      %v1894 = vunpack.c.l.b16 %v1817
      %v1895 = vunpack.c.l.b16 %v1818
      %v1896 = vunpack.c.l.b16 %v1819
      %v1897 = vunpack.c.l.b16 %v1820
      %v1898 = vunpack.c.l.b16 %v1821
      %v1899 = vunpack.c.l.b16 %v1822
      %v1900 = vunpack.c.l.b16 %v1823
      %v1901 = vunpack.c.l.b16 %v1824
      %v1902 = vunpack.c.l.b16 %v1825
      %v1903 = vunpack.c.l.b16 %v1826
      %v1904 = vunpack.c.l.b16 %v1827
      %v1905 = vpack.c.b16 %v1890, %v1889
      %v1906 = vpack.c.b16 %v1892, %v1891
      %v1907 = vpack.c.b16 %v1894, %v1893
      %v1908 = vpack.c.b16 %v1896, %v1895
      %v1909 = vpack.c.b16 %v1898, %v1897
      %v1910 = vpack.c.b16 %v1900, %v1899
      %v1911 = vpack.c.b16 %v1902, %v1901
      %v1912 = vpack.c.b16 %v1904, %v1903
      %1921 = vmatpush.bf16.msra.mxu0 %v1912
      %1922 = vmatpush.bf16.msra.mxu0 %v1911
      %1923 = vmatpush.bf16.msra.mxu0 %v1910
      %1924 = vmatpush.bf16.msra.mxu0 %v1909
      %1925 = vmatpush.bf16.msra.mxu0 %v1908
      %1926 = vmatpush.bf16.msra.mxu0 %v1907
      %1927 = vmatpush.bf16.msra.mxu0 %v1906
      %1928 = vmatpush.bf16.msra.mxu0 %v1905
      %1929 = vmatmul.bf16.gmra.mxu0 %v1859
      %v1930 = vpop.f32.mrf.mxu0
      %v1931 = vadd.f32 0.0, %v1930
      %v1932 = vpop.f32.mrf.mxu0
      %v1933 = vadd.f32 0.0, %v1932
      %1934 = vmatmul.bf16.gmra.mxu0 %v1861
      %v1935 = vpop.f32.mrf.mxu0
      %v1936 = vadd.f32 0.0, %v1935
      %v1937 = vpop.f32.mrf.mxu0
      %v1938 = vadd.f32 0.0, %v1937
      %1939 = vmatmul.bf16.gmra.mxu0 %v1863
      %v1940 = vpop.f32.mrf.mxu0
      %v1941 = vadd.f32 0.0, %v1940
      %v1942 = vpop.f32.mrf.mxu0
      %v1943 = vadd.f32 0.0, %v1942
      %1944 = vmatmul.bf16.gmra.mxu0 %v1865
      %v1945 = vpop.f32.mrf.mxu0
      %v1946 = vadd.f32 0.0, %v1945
      %v1947 = vpop.f32.mrf.mxu0
      %v1948 = vadd.f32 0.0, %v1947
      %1949 = vmatmul.bf16.gmra.mxu0 %v1867
      %v1950 = vpop.f32.mrf.mxu0
      %v1951 = vadd.f32 0.0, %v1950
      %v1952 = vpop.f32.mrf.mxu0
      %v1953 = vadd.f32 0.0, %v1952
      %1954 = vdwg.mxu0
      %v1955 = vld [vmem:[#allocation2] sm:$0xff]
      %v1956 = vld [vmem:[#allocation2 + $0x8] sm:$0xff]
      %v1957 = vld [vmem:[#allocation2 + $0x10] sm:$0xff]
      %v1958 = vld [vmem:[#allocation2 + $0x18] sm:$0xff]
      %v1959 = vld [vmem:[#allocation2 + $0x20] sm:$0xff]
      %v1960 = vld [vmem:[#allocation2 + $0x28] sm:$0xff]
      %v1961 = vld [vmem:[#allocation2 + $0x30] sm:$0xff]
      %v1962 = vld [vmem:[#allocation2 + $0x38] sm:$0xff]
      %v1963 = vld [vmem:[#allocation2 + $0x40] sm:$0xff]
      %v1964 = vld [vmem:[#allocation2 + $0x48] sm:$0xff]
      %v1965 = vadd.f32 %v1955, %v1931
      %v1966 = vadd.f32 %v1956, %v1933
      %v1967 = vadd.f32 %v1957, %v1936
      %v1968 = vadd.f32 %v1958, %v1938
      %v1969 = vadd.f32 %v1959, %v1941
      %v1970 = vadd.f32 %v1960, %v1943
      %v1971 = vadd.f32 %v1961, %v1946
      %v1972 = vadd.f32 %v1962, %v1948
      %v1973 = vadd.f32 %v1963, %v1951
      %v1974 = vadd.f32 %v1964, %v1953
      %1975 = vst [vmem:[#allocation2] sm:$0xff] %v1965
      %1976 = vst [vmem:[#allocation2 + $0x8] sm:$0xff] %v1966
      %1977 = vst [vmem:[#allocation2 + $0x10] sm:$0xff] %v1967
      %1978 = vst [vmem:[#allocation2 + $0x18] sm:$0xff] %v1968
      %1979 = vst [vmem:[#allocation2 + $0x20] sm:$0xff] %v1969
      %1980 = vst [vmem:[#allocation2 + $0x28] sm:$0xff] %v1970
      %1981 = vst [vmem:[#allocation2 + $0x30] sm:$0xff] %v1971
      %1982 = vst [vmem:[#allocation2 + $0x38] sm:$0xff] %v1972
      %1983 = vst [vmem:[#allocation2 + $0x40] sm:$0xff] %v1973
      %1984 = vst [vmem:[#allocation2 + $0x48] sm:$0xff] %v1974
      %v1985 = vld [vmem:[#allocation2] sm:$0xff]
      %v1986 = vld [vmem:[#allocation2 + $0x8] sm:$0xff]
      %v1987 = vld [vmem:[#allocation2 + $0x10] sm:$0xff]
      %v1988 = vld [vmem:[#allocation2 + $0x18] sm:$0xff]
      %v1989 = vld [vmem:[#allocation2 + $0x20] sm:$0xff]
      %v1990 = vld [vmem:[#allocation2 + $0x28] sm:$0xff]
      %v1991 = vld [vmem:[#allocation2 + $0x30] sm:$0xff]
      %v1992 = vld [vmem:[#allocation2 + $0x38] sm:$0xff]
      %v1993 = vld [vmem:[#allocation2 + $0x40] sm:$0xff]
      %v1994 = vld [vmem:[#allocation2 + $0x48] sm:$0xff]
      %v1995 = vpack.c.bf16 %v1985, %v1985
      %v1996 = vpack.c.bf16 %v1986, %v1986
      %v1997 = vpack.c.bf16 %v1987, %v1987
      %v1998 = vpack.c.bf16 %v1988, %v1988
      %v1999 = vpack.c.bf16 %v1989, %v1989
      %v2000 = vpack.c.bf16 %v1990, %v1990
      %v2001 = vpack.c.bf16 %v1991, %v1991
      %v2002 = vpack.c.bf16 %v1992, %v1992
      %v2003 = vpack.c.bf16 %v1993, %v1993
      %v2004 = vpack.c.bf16 %v1994, %v1994
      %2005 = vst [vmem:[%s235] sm:$0xf] %v1995
      %2006 = vst [vmem:[%s235 + $0x4] sm:$0xf] %v1996
      %2007 = vst [vmem:[%s235 + $0x8] sm:$0xf] %v1997
      %2008 = vst [vmem:[%s235 + $0xc] sm:$0xf] %v1998
      %2009 = vst [vmem:[%s235 + $0x10] sm:$0xf] %v1999
      %2010 = vst [vmem:[%s235 + $0x14] sm:$0xf] %v2000
      %2011 = vst [vmem:[%s235 + $0x18] sm:$0xf] %v2001
      %2012 = vst [vmem:[%s235 + $0x1c] sm:$0xf] %v2002
      %2013 = vst [vmem:[%s235 + $0x20] sm:$0xf] %v2003
      %2014 = vst [vmem:[%s235 + $0x24] sm:$0xf] %v2004
      %v2015 = vld [vmem:[%s2] sm:$0xff]
      %v2016 = vld [vmem:[%s2 + $0x8] sm:$0xff]
      %v2017 = vld [vmem:[%s2 + $0x10] sm:$0xff]
      %v2018 = vld [vmem:[%s2 + $0x18] sm:$0xff]
      %v2019 = vld [vmem:[%s2 + $0x20] sm:$0xff]
      %v2020 = vld [vmem:[%s2 + $0x28] sm:$0xff]
      %v2021 = vld [vmem:[%s2 + $0x30] sm:$0xff]
      %v2022 = vld [vmem:[%s2 + $0x38] sm:$0xff]
      %v2023 = vld [vmem:[%s2 + $0x40] sm:$0xff]
      %v2024 = vld [vmem:[%s2 + $0x48] sm:$0xff]
      %2026 = vset.pattern.permute.xlu0 0
      %2027 = vperm.xlu0 %2026, %v2015
      %v2028 = vpop.permute.xlu0 %2027
      %2031 = vset.pattern.permute.xlu0 0
      %2032 = vperm.xlu0 %2031, %v2016
      %v2033 = vpop.permute.xlu0 %2032
      %2036 = vset.pattern.permute.xlu0 0
      %2037 = vperm.xlu0 %2036, %v2017
      %v2038 = vpop.permute.xlu0 %2037
      %2041 = vset.pattern.permute.xlu0 0
      %2042 = vperm.xlu0 %2041, %v2018
      %v2043 = vpop.permute.xlu0 %2042
      %2046 = vset.pattern.permute.xlu0 0
      %2047 = vperm.xlu0 %2046, %v2019
      %v2048 = vpop.permute.xlu0 %2047
      %2051 = vset.pattern.permute.xlu0 0
      %2052 = vperm.xlu0 %2051, %v2020
      %v2053 = vpop.permute.xlu0 %2052
      %2056 = vset.pattern.permute.xlu0 0
      %2057 = vperm.xlu0 %2056, %v2021
      %v2058 = vpop.permute.xlu0 %2057
      %2061 = vset.pattern.permute.xlu0 0
      %2062 = vperm.xlu0 %2061, %v2022
      %v2063 = vpop.permute.xlu0 %2062
      %2066 = vset.pattern.permute.xlu0 0
      %2067 = vperm.xlu0 %2066, %v2023
      %v2068 = vpop.permute.xlu0 %2067
      %2071 = vset.pattern.permute.xlu0 0
      %2072 = vperm.xlu0 %2071, %v2024
      %v2073 = vpop.permute.xlu0 %2072
      %v2075 = vmul.f32 %v1985, %v2028
      %v2076 = vmul.f32 %v1986, %v2033
      %v2077 = vmul.f32 %v1987, %v2038
      %v2078 = vmul.f32 %v1988, %v2043
      %v2079 = vmul.f32 %v1989, %v2048
      %v2080 = vmul.f32 %v1990, %v2053
      %v2081 = vmul.f32 %v1991, %v2058
      %v2082 = vmul.f32 %v1992, %v2063
      %v2083 = vmul.f32 %v1993, %v2068
      %v2084 = vmul.f32 %v1994, %v2073
      %v2085 = vadd.f32 %v2075, %v2076
      %v2086 = vadd.f32 %v2085, %v2077
      %v2087 = vadd.f32 %v2086, %v2078
      %v2088 = vadd.f32 %v2087, %v2079
      %v2089 = vadd.f32 %v2088, %v2080
      %v2090 = vadd.f32 %v2089, %v2081
      %v2091 = vadd.f32 %v2090, %v2082
      %v2092 = vadd.f32 %v2091, %v2083
      %v2093 = vadd.f32 %v2092, %v2084
      %v2094 = vrot.slane %v2093, 4
      %v2095 = vadd.f32 %v2093, %v2094
      %v2096 = vrot.slane %v2095, 2
      %v2097 = vadd.f32 %v2095, %v2096
      %v2098 = vrot.slane %v2097, 1
      %v2099 = vadd.f32 %v2097, %v2098
      %2100 = vst [vmem:[%s238] sm:$0x1] %v2099
      %v2101 = vmul.f32 %v1985, %v1985
      %v2102 = vmul.f32 %v1986, %v1986
      %v2103 = vmul.f32 %v1987, %v1987
      %v2104 = vmul.f32 %v1988, %v1988
      %v2105 = vmul.f32 %v1989, %v1989
      %v2106 = vmul.f32 %v1990, %v1990
      %v2107 = vmul.f32 %v1991, %v1991
      %v2108 = vmul.f32 %v1992, %v1992
      %v2109 = vmul.f32 %v1993, %v1993
      %v2110 = vmul.f32 %v1994, %v1994
      %v2111 = vmul.f32 %v2101, %v2028
      %v2112 = vmul.f32 %v2102, %v2033
      %v2113 = vmul.f32 %v2103, %v2038
      %v2114 = vmul.f32 %v2104, %v2043
      %v2115 = vmul.f32 %v2105, %v2048
      %v2116 = vmul.f32 %v2106, %v2053
      %v2117 = vmul.f32 %v2107, %v2058
      %v2118 = vmul.f32 %v2108, %v2063
      %v2119 = vmul.f32 %v2109, %v2068
      %v2120 = vmul.f32 %v2110, %v2073
      %v2121 = vadd.f32 %v2111, %v2112
      %v2122 = vadd.f32 %v2121, %v2113
      %v2123 = vadd.f32 %v2122, %v2114
      %v2124 = vadd.f32 %v2123, %v2115
      %v2125 = vadd.f32 %v2124, %v2116
      %v2126 = vadd.f32 %v2125, %v2117
      %v2127 = vadd.f32 %v2126, %v2118
      %v2128 = vadd.f32 %v2127, %v2119
      %v2129 = vadd.f32 %v2128, %v2120
      %v2130 = vrot.slane %v2129, 4
      %v2131 = vadd.f32 %v2129, %v2130
      %v2132 = vrot.slane %v2131, 2
      %v2133 = vadd.f32 %v2131, %v2132
      %v2134 = vrot.slane %v2133, 1
      %v2135 = vadd.f32 %v2133, %v2134
      %2136 = vst [vmem:[%s241] sm:$0x1] %v2135
      %p2137 = scmp.lt.s32.totalorder %s17, 1
      %s2138 = scalar_select %p2137, %s17, 1
      %s2139 = smul.addr %s2138, 10
      %s2140 = smul.addr %s2139, 4
      %s2141 = scalar_lea.vmem %s3, %s2140
      %p2142 = scmp.lt.s32.totalorder %s17, 1
      %s2143 = scalar_select %p2142, %s17, 1
      %s2144 = scalar_lea.vmem %s4, %s2143
      %p2145 = scmp.lt.s32.totalorder %s17, 1
      %s2146 = scalar_select %p2145, %s17, 1
      %s2147 = scalar_lea.vmem %s5, %s2146
      // Predicated region
      $region33: #{_lambda_.5} parent=31 // pred_check
        %p2148 = pneg %p103
      $region34: #{_lambda_.5} parent=31 // pred_check_branch
        %2150 = sbr.rel (%p2148) target = $region36
      $region35: #{_lambda_.5} parent=31 // pred_region
        _
      $region36: #{_lambda_.5} parent=31 // pred_fallthru
        _
      // Predicated region
      $region37: #{_lambda_.5} parent=31 // pred_check
        %p2151 = pneg %p129
      $region38: #{_lambda_.5} parent=31 // pred_check_branch
        %2153 = sbr.rel (%p2151) target = $region40
      $region39: #{_lambda_.5} parent=31 // pred_region
        _
      $region40: #{_lambda_.5} parent=31 // pred_fallthru
        _
      // Predicated region
      $region41: #{_lambda_.5} parent=31 // pred_check
        %p2154 = pneg %p155
      $region42: #{_lambda_.5} parent=31 // pred_check_branch
        %2156 = sbr.rel (%p2154) target = $region44
      $region43: #{_lambda_.5} parent=31 // pred_region
        _
      $region44: #{_lambda_.5} parent=31 // pred_fallthru
        _
    $region32: #{_lambda_.5} parent=5 // pred_fallthru
      _
    %p2157 = scmp.le.s32.totalorder 2, %s12
    // Predicated region
    $region45: #{_lambda_.5} parent=5 // pred_check
      %p2158 = pneg %p2157
    $region46: #{_lambda_.5} parent=5 // pred_check_branch
      %2160 = sbr.rel (%p2158) target = $region48
    $region47: #{_lambda_.5} parent=5 // pred_region
      %s2161 = ssub.s32 %s12, 2
      // Predicated region
      $region49: #{_lambda_.5} parent=47 // pred_check
        %p2162 = pneg %p109
      $region50: #{_lambda_.5} parent=47 // pred_check_branch
        %2164 = sbr.rel (%p2162) target = $region52
      $region51: #{_lambda_.5} parent=47 // pred_region
        %p2165 = scmp.lt.s32.totalorder %s18, 1
        %s2166 = scalar_select %p2165, %s18, 1
        %s2167 = smul.addr %s2166, 10
        %s2168 = smul.addr %s2167, 4
        %s2169 = scalar_lea.vmem %s3, %s2168
      $region52: #{_lambda_.5} parent=47 // pred_fallthru
        _
      // Predicated region
      $region53: #{_lambda_.5} parent=47 // pred_check
        %p2170 = pneg %p135
      $region54: #{_lambda_.5} parent=47 // pred_check_branch
        %2172 = sbr.rel (%p2170) target = $region56
      $region55: #{_lambda_.5} parent=47 // pred_region
        %p2173 = scmp.lt.s32.totalorder %s18, 1
        %s2174 = scalar_select %p2173, %s18, 1
        %s2175 = scalar_lea.vmem %s4, %s2174
      $region56: #{_lambda_.5} parent=47 // pred_fallthru
        _
      // Predicated region
      $region57: #{_lambda_.5} parent=47 // pred_check
        %p2176 = pneg %p161
      $region58: #{_lambda_.5} parent=47 // pred_check_branch
        %2178 = sbr.rel (%p2176) target = $region60
      $region59: #{_lambda_.5} parent=47 // pred_region
        %p2179 = scmp.lt.s32.totalorder %s18, 1
        %s2180 = scalar_select %p2179, %s18, 1
        %s2181 = scalar_lea.vmem %s5, %s2180
      $region60: #{_lambda_.5} parent=47 // pred_fallthru
        _
    $region48: #{_lambda_.5} parent=5 // pred_fallthru
      _
  $region6: #{_lambda_.5} parent=0 // loop_footer
    %s16 = sadd.s32 1, %s12
  $region7: #{_lambda_.5} parent=0 // loop_footer_branch
    %11 = sbr.rel target = $region3
  $region8: #{_lambda_.5} parent=0 // loop_exit
    _

</llo_original>
